<compile_context>
chip_gen: v7x
topology: tpu7x:2x2x1
jax: 0.10.0
libtpu: 0.0.40
codegen_flags: <defaults>
</compile_context>

<pallas_src>
import math
import numpy as np
import jax
import jax.numpy as jnp
from jax import lax
from jax.experimental import pallas as pl
from jax.experimental.pallas import tpu as pltpu


# ----------------------------------------------------------------------------
# Fused Handler kernel (one batch element per grid step)
# ----------------------------------------------------------------------------
def _make_handler_kernel(T, C_HID, NHEAD):
    Dh = C_HID // NHEAD
    scale = 1.0 / math.sqrt(Dh)
    bf16 = jnp.bfloat16
    f32 = jnp.float32

    def kernel(x_ref,
               w_pre1, b_pre1, w_prea, b_prea, w_pre2, b_pre2,
               w_qkv, b_qkv, w_atto, b_atto,
               w_sm0, b_sm0, w_sm1, b_sm1,
               w_po1, b_po1, w_poa, b_poa, w_po2, b_po2,
               o_ref):
        # Edge masks for the 3-tap conv halo (shared by all conv layers).
        row = lax.broadcasted_iota(jnp.int32, (T, 1), 0)
        not_first = row > 0          # valid x[t-1]
        not_last = row < (T - 1)     # valid x[t+1]

        def conv3(xv, w_ref, b_ref, relu):
            # 3-tap conv (stride 1, pad 1) = three shifted matmuls accumulated
            # in f32.  Halo via sublane roll (XLU) + edge mask -- no concats.
            xm = jnp.where(not_first, pltpu.roll(xv, shift=1, axis=0), 0.0)      # x[t-1]
            xp = jnp.where(not_last, pltpu.roll(xv, shift=T - 1, axis=0), 0.0)   # x[t+1]
            y = jnp.dot(xm.astype(bf16), w_ref[0], preferred_element_type=f32)
            y = y + jnp.dot(xv.astype(bf16), w_ref[1], preferred_element_type=f32)
            y = y + jnp.dot(xp.astype(bf16), w_ref[2], preferred_element_type=f32)
            y = y + b_ref[...]
            return jnp.maximum(y, 0.0) if relu else y

        def conv1(xv, w_ref, b_ref):
            # 1x1 conv == plain channel matmul.
            return jnp.dot(xv.astype(bf16), w_ref[...],
                           preferred_element_type=f32) + b_ref[...]

        x = x_ref[...].astype(f32)                                  # (T, C_IN)

        # ---- pre Block_Unit (act_fn=None): h = conv2(relu(conv1(x))) + adjust(x)
        h = conv3(x, w_pre1, b_pre1, relu=True)
        h = conv3(h, w_pre2, b_pre2, relu=False) + conv1(x, w_prea, b_prea)

        # ---- Smoother: multi-head self-attention + residual.
        # Per-head weights are pre-split in the wrapper, so there is no lane
        # slicing / lane concatenation here; the head output goes straight
        # through its slice of the output projection and accumulates.
        hb = h.astype(bf16)
        attn = jnp.zeros((T, C_HID), f32)
        for hd in range(NHEAD):                                     # small static unroll
            q = (jnp.dot(hb, w_qkv[0, hd], preferred_element_type=f32)
                 + b_qkv[0, hd]) * scale
            k = jnp.dot(hb, w_qkv[1, hd], preferred_element_type=f32) + b_qkv[1, hd]
            v = jnp.dot(hb, w_qkv[2, hd], preferred_element_type=f32) + b_qkv[2, hd]
            # TODO(synk): flash-style KV tiling (running max/sum scratch) for
            # large T instead of materializing the full (T, T) score matrix.
            s = lax.dot_general(q.astype(bf16), k.astype(bf16),
                                (((1,), (1,)), ((), ())),
                                preferred_element_type=f32)          # (T, T)
            s = s - jnp.max(s, axis=-1, keepdims=True)
            p = jnp.exp(s)
            p = p * pl.reciprocal(jnp.sum(p, axis=-1, keepdims=True), approx=True)
            oh = jnp.dot(p.astype(bf16), v.astype(bf16),
                         preferred_element_type=f32)                 # (T, Dh)
            attn = attn + jnp.dot(oh.astype(bf16), w_atto[hd],
                                  preferred_element_type=f32)        # (T, C_HID)
        a = h + attn + b_atto[...]                                   # src + self_attn(src)

        # ---- Smoother conv FFN + residual
        c = conv3(a, w_sm0, b_sm0, relu=True)
        a = a + conv3(c, w_sm1, b_sm1, relu=False)

        # ---- post Block_Unit (act_fn=Sigmoid() -> module applies F.relu)
        o1 = conv3(a, w_po1, b_po1, relu=True)
        o2 = conv3(o1, w_po2, b_po2, relu=True)
        o_ref[...] = (o2 + conv1(a, w_poa, b_poa)).astype(o_ref.dtype)   # (T, C_OUT_P)

    return kernel


# ----------------------------------------------------------------------------
# Wrapper: weight re-layout + pallas_call with grid over batch
# ----------------------------------------------------------------------------
def handler_forward(params, x, *, nhead):
    p = params
    B, T, C_IN = x.shape
    C_HID = p["pre_c1_b"].shape[0]
    D_HID = p["sm_c0_b"].shape[0]
    C_OUT = p["post_c2_b"].shape[0]
    C_OUT_P = ((C_OUT + 127) // 128) * 128           # lane-dense output channels
    assert C_HID % nhead == 0
    Dh = C_HID // nhead
    bf16, f32 = jnp.bfloat16, jnp.float32

    def taps(w):        # conv (Cout, Cin, 3) -> (3, Cin, Cout) bf16 (one mat per tap)
        return jnp.transpose(w, (2, 1, 0)).astype(bf16)

    def mat1(w):        # 1x1 conv (Cout, Cin, 1) -> (Cin, Cout) bf16
        return jnp.transpose(w[:, :, 0], (1, 0)).astype(bf16)

    def brow(b, n=None):                              # bias -> (1, n) f32, zero-padded
        if n is not None and n > b.shape[0]:
            b = jnp.pad(b, (0, n - b.shape[0]))
        return b.reshape(1, -1).astype(f32)

    def pad_oc(w, n):                                 # pad conv output channels (dim 0)
        return jnp.pad(w, ((0, n - w.shape[0]), (0, 0), (0, 0)))

    def pad_ic(w, n):                                 # pad conv input channels (dim 1)
        return jnp.pad(w, ((0, 0), (0, n - w.shape[1]), (0, 0)))

    def heads_in(w):    # (C_HID, C_HID), used as x @ w  ->  (H, C_HID, Dh)
        return jnp.transpose(w.reshape(C_HID, nhead, Dh), (1, 0, 2))

    # Attention weights packed per-head (no in-kernel lane slicing).
    w_qkv = jnp.stack([heads_in(p["attn_wq"]), heads_in(p["attn_wk"]),
                       heads_in(p["attn_wv"])], axis=0).astype(bf16)   # (3,H,C,Dh)
    b_qkv = jnp.stack([p["attn_bq"], p["attn_bk"], p["attn_bv"]],
                      axis=0).reshape(3, nhead, 1, Dh).astype(f32)     # (3,H,1,Dh)
    w_atto = p["attn_wo"].reshape(nhead, Dh, C_HID).astype(bf16)       # (H,Dh,C)
    b_atto = brow(p["attn_bo"])

    args = [
        x,
        taps(p["pre_c1_w"]), brow(p["pre_c1_b"]),
        mat1(p["pre_adj_w"]), brow(p["pre_adj_b"]),
        taps(p["pre_c2_w"]), brow(p["pre_c2_b"]),
        w_qkv, b_qkv, w_atto, b_atto,
        taps(p["sm_c0_w"]), brow(p["sm_c0_b"]),
        taps(p["sm_c1_w"]), brow(p["sm_c1_b"]),
        taps(pad_oc(p["post_c1_w"], C_OUT_P)), brow(p["post_c1_b"], C_OUT_P),
        mat1(pad_oc(p["post_adj_w"], C_OUT_P)), brow(p["post_adj_b"], C_OUT_P),
        taps(pad_ic(pad_oc(p["post_c2_w"], C_OUT_P), C_OUT_P)), brow(p["post_c2_b"], C_OUT_P),
    ]

    kernel = _make_handler_kernel(T, C_HID, nhead)

    # x / o are tiled over batch; weights use constant index_maps so they are
    # fetched once and stay VMEM-resident across the whole grid.
    in_specs = [pl.BlockSpec((None, T, C_IN), lambda b: (b, 0, 0))]
    for a in args[1:]:
        in_specs.append(
            pl.BlockSpec(a.shape, (lambda nd: (lambda b: (0,) * nd))(a.ndim)))

    # Explicit scoped-VMEM budget (re-derive / flash-tile the attention for
    # large T); clamp so it is valid on v7x's 64 MiB VMEM too.
    wbytes = sum(int(np.prod(a.shape)) * a.dtype.itemsize for a in args[1:])
    act_bytes = 4 * T * (C_IN + 8 * C_HID + D_HID + 4 * C_OUT_P) + 4 * nhead * T * T
    vmem_limit = int(min(64 * 2 ** 20, max(32 * 2 ** 20, 4 * (wbytes + act_bytes))))

    out = pl.pallas_call(
        kernel,
        out_shape=jax.ShapeDtypeStruct((B, T, C_OUT_P), x.dtype),
        grid=(B,),
        in_specs=in_specs,
        out_specs=pl.BlockSpec((None, T, C_OUT_P), lambda b: (b, 0, 0)),
        compiler_params=pltpu.CompilerParams(
            dimension_semantics=("parallel",),
            vmem_limit_bytes=vmem_limit),
    )(*args)
    return out[:, :, :C_OUT]                          # (B, T, c_out)


# ----------------------------------------------------------------------------
# Pure-JAX reference (correctness check only; run at "highest" precision)
# ----------------------------------------------------------------------------
def _conv1d_ref(x, w, b, relu=False):
    K = w.shape[2]
    pad = K // 2
    y = lax.conv_general_dilated(x, w, (1,), [(pad, pad)],
                                 dimension_numbers=("NWC", "OIW", "NWC"))
    y = y + b[None, None, :]
    return jnp.maximum(y, 0.0) if relu else y


def _mha_ref(x, wq, wk, wv, bq, bk, bv, wo, bo, nhead):
    B, T, D = x.shape
    Dh = D // nhead
    q = (x @ wq + bq).reshape(B, T, nhead, Dh)
    k = (x @ wk + bk).reshape(B, T, nhead, Dh)
    v = (x @ wv + bv).reshape(B, T, nhead, Dh)
    s = jnp.einsum("bqhd,bkhd->bhqk", q, k) / math.sqrt(Dh)
    pr = jax.nn.softmax(s, axis=-1)
    o = jnp.einsum("bhqk,bkhd->bqhd", pr, v).reshape(B, T, D)
    return o @ wo + bo + x


def handler_ref(params, x, *, nhead):
    p = params
    h = _conv1d_ref(x, p["pre_c1_w"], p["pre_c1_b"], relu=True)
    adj = _conv1d_ref(x, p["pre_adj_w"], p["pre_adj_b"])
    h = _conv1d_ref(h, p["pre_c2_w"], p["pre_c2_b"]) + adj
    a = _mha_ref(h, p["attn_wq"], p["attn_wk"], p["attn_wv"],
                 p["attn_bq"], p["attn_bk"], p["attn_bv"],
                 p["attn_wo"], p["attn_bo"], nhead)
    c = _conv1d_ref(a, p["sm_c0_w"], p["sm_c0_b"], relu=True)
    a = _conv1d_ref(c, p["sm_c1_w"], p["sm_c1_b"]) + a
    o = _conv1d_ref(a, p["post_c1_w"], p["post_c1_b"], relu=True)
    adj2 = _conv1d_ref(a, p["post_adj_w"], p["post_adj_b"])
    o = _conv1d_ref(o, p["post_c2_w"], p["post_c2_b"], relu=True) + adj2
    return o


# ----------------------------------------------------------------------------
# Deterministic parameter init (shapes follow the module's __init__)
# ----------------------------------------------------------------------------
def init_params(key, c_in, c_hid, c_out, d_hid=256):
    ks = jax.random.split(key, 20)
    n = lambda k, shp, std=0.01: std * jax.random.normal(k, shp, jnp.float32)
    D = c_hid
    # PyTorch MHA: in_proj_weight (3D, D); q = x @ in_proj[:D].T -> store transposed mats.
    in_proj = 0.1 * jax.random.normal(ks[10], (3 * D, D), jnp.float32)
    in_b = 0.01 * jax.random.normal(ks[11], (3 * D,), jnp.float32)
    return dict(
        pre_c1_w=n(ks[0], (c_hid, c_in, 3)),  pre_c1_b=n(ks[1], (c_hid,)),
        pre_c2_w=n(ks[2], (c_hid, c_hid, 3)), pre_c2_b=n(ks[3], (c_hid,)),
        pre_adj_w=n(ks[4], (c_hid, c_in, 1)), pre_adj_b=n(ks[5], (c_hid,)),
        attn_wq=in_proj[:D].T, attn_wk=in_proj[D:2 * D].T, attn_wv=in_proj[2 * D:].T,
        attn_bq=in_b[:D], attn_bk=in_b[D:2 * D], attn_bv=in_b[2 * D:],
        attn_wo=(0.1 * jax.random.normal(ks[12], (D, D), jnp.float32)).T,
        attn_bo=0.01 * jax.random.normal(ks[13], (D,), jnp.float32),
        sm_c0_w=n(ks[6], (d_hid, c_hid, 3)),  sm_c0_b=n(ks[7], (d_hid,)),
        sm_c1_w=n(ks[8], (c_hid, d_hid, 3)),  sm_c1_b=n(ks[9], (c_hid,)),
        post_c1_w=n(ks[14], (c_out, c_hid, 3)), post_c1_b=n(ks[15], (c_out,)),
        post_c2_w=n(ks[16], (c_out, c_out, 3)), post_c2_b=n(ks[17], (c_out,)),
        post_adj_w=n(ks[18], (c_out, c_hid, 1)), post_adj_b=n(ks[19], (c_out,)),
    )


if __name__ == "__main__":
    B, T, C_IN, C_HID, C_OUT, NHEAD = 2, 16, 6, 64, 6, 2
    key = jax.random.PRNGKey(0)
    kx, kp = jax.random.split(key)
    x = jax.random.normal(kx, (B, T, C_IN), jnp.float32)   # PyTorch input (B, T, c_in)
    params = init_params(kp, C_IN, C_HID, C_OUT)

    fwd = jax.jit(handler_forward, static_argnames=("nhead",))
    out = jax.block_until_ready(fwd(params, x, nhead=NHEAD))
    assert out.shape == (B, T, C_OUT)

    with jax.default_matmul_precision("highest"):
        ref = handler_ref(params, x, nhead=NHEAD)
    # Precision policy: bf16 MXU operands + approx reciprocal in-kernel vs f32
    # reference -> relaxed tolerance (intentional, not a bug hider).
    np.testing.assert_allclose(np.asarray(out), np.asarray(ref), rtol=2e-2, atol=1e-3)

    print("KERNEL_OK")
</pallas_src>

<mosaic_0001>
module attributes {stable_mosaic.version = 11 : i64} {
  func.func @kernel(%arg0: i32, %arg1: memref<1x16x6xf32, #tpu.memory_space<vmem>>, %arg2: memref<3x6x64xbf16, #tpu.memory_space<vmem>>, %arg3: memref<1x64xf32, #tpu.memory_space<vmem>>, %arg4: memref<6x64xbf16, #tpu.memory_space<vmem>>, %arg5: memref<1x64xf32, #tpu.memory_space<vmem>>, %arg6: memref<3x64x64xbf16, #tpu.memory_space<vmem>>, %arg7: memref<1x64xf32, #tpu.memory_space<vmem>>, %arg8: memref<3x2x64x32xbf16, #tpu.memory_space<vmem>>, %arg9: memref<3x2x1x32xf32, #tpu.memory_space<vmem>>, %arg10: memref<2x32x64xbf16, #tpu.memory_space<vmem>>, %arg11: memref<1x64xf32, #tpu.memory_space<vmem>>, %arg12: memref<3x64x256xbf16, #tpu.memory_space<vmem>>, %arg13: memref<1x256xf32, #tpu.memory_space<vmem>>, %arg14: memref<3x256x64xbf16, #tpu.memory_space<vmem>>, %arg15: memref<1x64xf32, #tpu.memory_space<vmem>>, %arg16: memref<3x64x128xbf16, #tpu.memory_space<vmem>>, %arg17: memref<1x128xf32, #tpu.memory_space<vmem>>, %arg18: memref<64x128xbf16, #tpu.memory_space<vmem>>, %arg19: memref<1x128xf32, #tpu.memory_space<vmem>>, %arg20: memref<3x128x128xbf16, #tpu.memory_space<vmem>>, %arg21: memref<1x128xf32, #tpu.memory_space<vmem>>, %arg22: memref<1x16x128xf32, #tpu.memory_space<vmem>>) attributes {dimension_semantics = [#tpu.dimension_semantics<parallel>], iteration_bounds = array<i64: 2>, scalar_prefetch = 0 : i64, scratch_operands = 0 : i64, tpu.core_type = #tpu.core_type<tc>, window_params = [{transform_indices = @transform_0, window_bounds = array<i64: 1, 16, 6>}, {pipeline_mode = #tpu.pipeline_mode<synchronous>, transform_indices = @transform_1, window_bounds = array<i64: 3, 6, 64>}, {pipeline_mode = #tpu.pipeline_mode<synchronous>, transform_indices = @transform_2, window_bounds = array<i64: 1, 64>}, {pipeline_mode = #tpu.pipeline_mode<synchronous>, transform_indices = @transform_3, window_bounds = array<i64: 6, 64>}, {pipeline_mode = #tpu.pipeline_mode<synchronous>, transform_indices = @transform_4, window_bounds = array<i64: 1, 64>}, {pipeline_mode = #tpu.pipeline_mode<synchronous>, transform_indices = @transform_5, window_bounds = array<i64: 3, 64, 64>}, {pipeline_mode = #tpu.pipeline_mode<synchronous>, transform_indices = @transform_6, window_bounds = array<i64: 1, 64>}, {pipeline_mode = #tpu.pipeline_mode<synchronous>, transform_indices = @transform_7, window_bounds = array<i64: 3, 2, 64, 32>}, {pipeline_mode = #tpu.pipeline_mode<synchronous>, transform_indices = @transform_8, window_bounds = array<i64: 3, 2, 1, 32>}, {pipeline_mode = #tpu.pipeline_mode<synchronous>, transform_indices = @transform_9, window_bounds = array<i64: 2, 32, 64>}, {pipeline_mode = #tpu.pipeline_mode<synchronous>, transform_indices = @transform_10, window_bounds = array<i64: 1, 64>}, {pipeline_mode = #tpu.pipeline_mode<synchronous>, transform_indices = @transform_11, window_bounds = array<i64: 3, 64, 256>}, {pipeline_mode = #tpu.pipeline_mode<synchronous>, transform_indices = @transform_12, window_bounds = array<i64: 1, 256>}, {pipeline_mode = #tpu.pipeline_mode<synchronous>, transform_indices = @transform_13, window_bounds = array<i64: 3, 256, 64>}, {pipeline_mode = #tpu.pipeline_mode<synchronous>, transform_indices = @transform_14, window_bounds = array<i64: 1, 64>}, {pipeline_mode = #tpu.pipeline_mode<synchronous>, transform_indices = @transform_15, window_bounds = array<i64: 3, 64, 128>}, {pipeline_mode = #tpu.pipeline_mode<synchronous>, transform_indices = @transform_16, window_bounds = array<i64: 1, 128>}, {pipeline_mode = #tpu.pipeline_mode<synchronous>, transform_indices = @transform_17, window_bounds = array<i64: 64, 128>}, {pipeline_mode = #tpu.pipeline_mode<synchronous>, transform_indices = @transform_18, window_bounds = array<i64: 1, 128>}, {pipeline_mode = #tpu.pipeline_mode<synchronous>, transform_indices = @transform_19, window_bounds = array<i64: 3, 128, 128>}, {pipeline_mode = #tpu.pipeline_mode<synchronous>, transform_indices = @transform_20, window_bounds = array<i64: 1, 128>}, {transform_indices = @transform_21, window_bounds = array<i64: 1, 16, 128>}]} {
    %0 = tpu.iota {dimensions = array<i32: 0>} : vector<16x1xi32>
    %c0_i32 = arith.constant 0 : i32
    %1 = vector.broadcast %c0_i32 : i32 to vector<16x1xi32>
    %2 = arith.cmpi sgt, %0, %1 : vector<16x1xi32>
    %c15_i32 = arith.constant 15 : i32
    %3 = vector.broadcast %c15_i32 : i32 to vector<16x1xi32>
    %4 = arith.cmpi slt, %0, %3 : vector<16x1xi32>
    %c0 = arith.constant 0 : index
    %c0_0 = arith.constant 0 : index
    %c0_1 = arith.constant 0 : index
    %5 = vector.load %arg1[%c0, %c0_0, %c0_1] : memref<1x16x6xf32, #tpu.memory_space<vmem>>, vector<1x16x6xf32>
    %6 = vector.shape_cast %5 : vector<1x16x6xf32> to vector<16x6xf32>
    %c1_i32 = arith.constant 1 : i32
    %7 = tpu.dynamic_rotate %6 by %c1_i32 dim 0 : vector<16x6xf32>, i32 -> vector<16x6xf32>
    %cst = arith.constant 0.000000e+00 : f32
    %8 = vector.shape_cast %2 : vector<16x1xi1> to vector<16x1xi1>
    %9 = vector.broadcast %8 : vector<16x1xi1> to vector<16x6xi1>
    %10 = vector.broadcast %cst : f32 to vector<16x6xf32>
    %11 = arith.select %9, %7, %10 : vector<16x6xi1>, vector<16x6xf32>
    %c15_i32_2 = arith.constant 15 : i32
    %12 = tpu.dynamic_rotate %6 by %c15_i32_2 dim 0 : vector<16x6xf32>, i32 -> vector<16x6xf32>
    %cst_3 = arith.constant 0.000000e+00 : f32
    %13 = vector.shape_cast %4 : vector<16x1xi1> to vector<16x1xi1>
    %14 = vector.broadcast %13 : vector<16x1xi1> to vector<16x6xi1>
    %15 = vector.broadcast %cst_3 : f32 to vector<16x6xf32>
    %16 = arith.select %14, %12, %15 : vector<16x6xi1>, vector<16x6xf32>
    %17 = arith.truncf %11 : vector<16x6xf32> to vector<16x6xbf16>
    %c0_4 = arith.constant 0 : index
    %c0_5 = arith.constant 0 : index
    %c0_6 = arith.constant 0 : index
    %18 = vector.load %arg2[%c0_4, %c0_5, %c0_6] : memref<3x6x64xbf16, #tpu.memory_space<vmem>>, vector<1x6x64xbf16>
    %19 = vector.shape_cast %18 : vector<1x6x64xbf16> to vector<6x64xbf16>
    %cst_7 = arith.constant dense<0.000000e+00> : vector<16x64xf32>
    %20 = tpu.matmul %17, %19, %cst_7 {dimension_numbers = #tpu.dot_dimension_numbers<[1], [0], [0], [1], [0, 0, 1, 1], [], []>} : vector<16x6xbf16>, vector<6x64xbf16>, vector<16x64xf32> -> vector<16x64xf32>
    %21 = arith.truncf %6 : vector<16x6xf32> to vector<16x6xbf16>
    %c1 = arith.constant 1 : index
    %c0_8 = arith.constant 0 : index
    %c0_9 = arith.constant 0 : index
    %22 = vector.load %arg2[%c1, %c0_8, %c0_9] : memref<3x6x64xbf16, #tpu.memory_space<vmem>>, vector<1x6x64xbf16>
    %23 = vector.shape_cast %22 : vector<1x6x64xbf16> to vector<6x64xbf16>
    %cst_10 = arith.constant dense<0.000000e+00> : vector<16x64xf32>
    %24 = tpu.matmul %21, %23, %cst_10 {dimension_numbers = #tpu.dot_dimension_numbers<[1], [0], [0], [1], [0, 0, 1, 1], [], []>} : vector<16x6xbf16>, vector<6x64xbf16>, vector<16x64xf32> -> vector<16x64xf32>
    %25 = arith.addf %20, %24 : vector<16x64xf32>
    %26 = arith.truncf %16 : vector<16x6xf32> to vector<16x6xbf16>
    %c2 = arith.constant 2 : index
    %c0_11 = arith.constant 0 : index
    %c0_12 = arith.constant 0 : index
    %27 = vector.load %arg2[%c2, %c0_11, %c0_12] : memref<3x6x64xbf16, #tpu.memory_space<vmem>>, vector<1x6x64xbf16>
    %28 = vector.shape_cast %27 : vector<1x6x64xbf16> to vector<6x64xbf16>
    %cst_13 = arith.constant dense<0.000000e+00> : vector<16x64xf32>
    %29 = tpu.matmul %26, %28, %cst_13 {dimension_numbers = #tpu.dot_dimension_numbers<[1], [0], [0], [1], [0, 0, 1, 1], [], []>} : vector<16x6xbf16>, vector<6x64xbf16>, vector<16x64xf32> -> vector<16x64xf32>
    %30 = arith.addf %25, %29 : vector<16x64xf32>
    %c0_14 = arith.constant 0 : index
    %c0_15 = arith.constant 0 : index
    %31 = vector.load %arg3[%c0_14, %c0_15] : memref<1x64xf32, #tpu.memory_space<vmem>>, vector<1x64xf32>
    %32 = vector.broadcast %31 : vector<1x64xf32> to vector<16x64xf32>
    %33 = arith.addf %30, %32 : vector<16x64xf32>
    %cst_16 = arith.constant 0.000000e+00 : f32
    %34 = vector.broadcast %cst_16 : f32 to vector<16x64xf32>
    %35 = arith.maximumf %33, %34 : vector<16x64xf32>
    %c1_i32_17 = arith.constant 1 : i32
    %36 = tpu.dynamic_rotate %35 by %c1_i32_17 dim 0 : vector<16x64xf32>, i32 -> vector<16x64xf32>
    %cst_18 = arith.constant 0.000000e+00 : f32
    %37 = vector.shape_cast %2 : vector<16x1xi1> to vector<16x1xi1>
    %38 = vector.broadcast %37 : vector<16x1xi1> to vector<16x64xi1>
    %39 = vector.broadcast %cst_18 : f32 to vector<16x64xf32>
    %40 = arith.select %38, %36, %39 : vector<16x64xi1>, vector<16x64xf32>
    %c15_i32_19 = arith.constant 15 : i32
    %41 = tpu.dynamic_rotate %35 by %c15_i32_19 dim 0 : vector<16x64xf32>, i32 -> vector<16x64xf32>
    %cst_20 = arith.constant 0.000000e+00 : f32
    %42 = vector.shape_cast %4 : vector<16x1xi1> to vector<16x1xi1>
    %43 = vector.broadcast %42 : vector<16x1xi1> to vector<16x64xi1>
    %44 = vector.broadcast %cst_20 : f32 to vector<16x64xf32>
    %45 = arith.select %43, %41, %44 : vector<16x64xi1>, vector<16x64xf32>
    %46 = arith.truncf %40 : vector<16x64xf32> to vector<16x64xbf16>
    %c0_21 = arith.constant 0 : index
    %c0_22 = arith.constant 0 : index
    %c0_23 = arith.constant 0 : index
    %47 = vector.load %arg6[%c0_21, %c0_22, %c0_23] : memref<3x64x64xbf16, #tpu.memory_space<vmem>>, vector<1x64x64xbf16>
    %48 = vector.shape_cast %47 : vector<1x64x64xbf16> to vector<64x64xbf16>
    %cst_24 = arith.constant dense<0.000000e+00> : vector<16x64xf32>
    %49 = tpu.matmul %46, %48, %cst_24 {dimension_numbers = #tpu.dot_dimension_numbers<[1], [0], [0], [1], [0, 0, 1, 1], [], []>} : vector<16x64xbf16>, vector<64x64xbf16>, vector<16x64xf32> -> vector<16x64xf32>
    %50 = arith.truncf %35 : vector<16x64xf32> to vector<16x64xbf16>
    %c1_25 = arith.constant 1 : index
    %c0_26 = arith.constant 0 : index
    %c0_27 = arith.constant 0 : index
    %51 = vector.load %arg6[%c1_25, %c0_26, %c0_27] : memref<3x64x64xbf16, #tpu.memory_space<vmem>>, vector<1x64x64xbf16>
    %52 = vector.shape_cast %51 : vector<1x64x64xbf16> to vector<64x64xbf16>
    %cst_28 = arith.constant dense<0.000000e+00> : vector<16x64xf32>
    %53 = tpu.matmul %50, %52, %cst_28 {dimension_numbers = #tpu.dot_dimension_numbers<[1], [0], [0], [1], [0, 0, 1, 1], [], []>} : vector<16x64xbf16>, vector<64x64xbf16>, vector<16x64xf32> -> vector<16x64xf32>
    %54 = arith.addf %49, %53 : vector<16x64xf32>
    %55 = arith.truncf %45 : vector<16x64xf32> to vector<16x64xbf16>
    %c2_29 = arith.constant 2 : index
    %c0_30 = arith.constant 0 : index
    %c0_31 = arith.constant 0 : index
    %56 = vector.load %arg6[%c2_29, %c0_30, %c0_31] : memref<3x64x64xbf16, #tpu.memory_space<vmem>>, vector<1x64x64xbf16>
    %57 = vector.shape_cast %56 : vector<1x64x64xbf16> to vector<64x64xbf16>
    %cst_32 = arith.constant dense<0.000000e+00> : vector<16x64xf32>
    %58 = tpu.matmul %55, %57, %cst_32 {dimension_numbers = #tpu.dot_dimension_numbers<[1], [0], [0], [1], [0, 0, 1, 1], [], []>} : vector<16x64xbf16>, vector<64x64xbf16>, vector<16x64xf32> -> vector<16x64xf32>
    %59 = arith.addf %54, %58 : vector<16x64xf32>
    %c0_33 = arith.constant 0 : index
    %c0_34 = arith.constant 0 : index
    %60 = vector.load %arg7[%c0_33, %c0_34] : memref<1x64xf32, #tpu.memory_space<vmem>>, vector<1x64xf32>
    %61 = vector.broadcast %60 : vector<1x64xf32> to vector<16x64xf32>
    %62 = arith.addf %59, %61 : vector<16x64xf32>
    %63 = arith.truncf %6 : vector<16x6xf32> to vector<16x6xbf16>
    %c0_35 = arith.constant 0 : index
    %c0_36 = arith.constant 0 : index
    %64 = vector.load %arg4[%c0_35, %c0_36] : memref<6x64xbf16, #tpu.memory_space<vmem>>, vector<6x64xbf16>
    %cst_37 = arith.constant dense<0.000000e+00> : vector<16x64xf32>
    %65 = tpu.matmul %63, %64, %cst_37 {dimension_numbers = #tpu.dot_dimension_numbers<[1], [0], [0], [1], [0, 0, 1, 1], [], []>} : vector<16x6xbf16>, vector<6x64xbf16>, vector<16x64xf32> -> vector<16x64xf32>
    %c0_38 = arith.constant 0 : index
    %c0_39 = arith.constant 0 : index
    %66 = vector.load %arg5[%c0_38, %c0_39] : memref<1x64xf32, #tpu.memory_space<vmem>>, vector<1x64xf32>
    %67 = vector.broadcast %66 : vector<1x64xf32> to vector<16x64xf32>
    %68 = arith.addf %65, %67 : vector<16x64xf32>
    %69 = arith.addf %62, %68 : vector<16x64xf32>
    %70 = arith.truncf %69 : vector<16x64xf32> to vector<16x64xbf16>
    %cst_40 = arith.constant 0.000000e+00 : f32
    %71 = vector.broadcast %cst_40 : f32 to vector<16x64xf32>
    %c0_41 = arith.constant 0 : index
    %c0_42 = arith.constant 0 : index
    %c0_43 = arith.constant 0 : index
    %c0_44 = arith.constant 0 : index
    %72 = vector.load %arg8[%c0_41, %c0_42, %c0_43, %c0_44] : memref<3x2x64x32xbf16, #tpu.memory_space<vmem>>, vector<1x1x64x32xbf16>
    %73 = vector.shape_cast %72 : vector<1x1x64x32xbf16> to vector<64x32xbf16>
    %cst_45 = arith.constant dense<0.000000e+00> : vector<16x32xf32>
    %74 = tpu.matmul %70, %73, %cst_45 {dimension_numbers = #tpu.dot_dimension_numbers<[1], [0], [0], [1], [0, 0, 1, 1], [], []>} : vector<16x64xbf16>, vector<64x32xbf16>, vector<16x32xf32> -> vector<16x32xf32>
    %c0_46 = arith.constant 0 : index
    %c0_47 = arith.constant 0 : index
    %c0_48 = arith.constant 0 : index
    %c0_49 = arith.constant 0 : index
    %75 = vector.load %arg9[%c0_46, %c0_47, %c0_48, %c0_49] : memref<3x2x1x32xf32, #tpu.memory_space<vmem>>, vector<1x1x1x32xf32>
    %76 = vector.shape_cast %75 : vector<1x1x1x32xf32> to vector<1x32xf32>
    %77 = vector.broadcast %76 : vector<1x32xf32> to vector<16x32xf32>
    %78 = arith.addf %74, %77 : vector<16x32xf32>
    %cst_50 = arith.constant 0.176776692 : f32
    %79 = vector.broadcast %cst_50 : f32 to vector<16x32xf32>
    %80 = arith.mulf %78, %79 : vector<16x32xf32>
    %c1_51 = arith.constant 1 : index
    %c0_52 = arith.constant 0 : index
    %c0_53 = arith.constant 0 : index
    %c0_54 = arith.constant 0 : index
    %81 = vector.load %arg8[%c1_51, %c0_52, %c0_53, %c0_54] : memref<3x2x64x32xbf16, #tpu.memory_space<vmem>>, vector<1x1x64x32xbf16>
    %82 = vector.shape_cast %81 : vector<1x1x64x32xbf16> to vector<64x32xbf16>
    %cst_55 = arith.constant dense<0.000000e+00> : vector<16x32xf32>
    %83 = tpu.matmul %70, %82, %cst_55 {dimension_numbers = #tpu.dot_dimension_numbers<[1], [0], [0], [1], [0, 0, 1, 1], [], []>} : vector<16x64xbf16>, vector<64x32xbf16>, vector<16x32xf32> -> vector<16x32xf32>
    %c1_56 = arith.constant 1 : index
    %c0_57 = arith.constant 0 : index
    %c0_58 = arith.constant 0 : index
    %c0_59 = arith.constant 0 : index
    %84 = vector.load %arg9[%c1_56, %c0_57, %c0_58, %c0_59] : memref<3x2x1x32xf32, #tpu.memory_space<vmem>>, vector<1x1x1x32xf32>
    %85 = vector.shape_cast %84 : vector<1x1x1x32xf32> to vector<1x32xf32>
    %86 = vector.broadcast %85 : vector<1x32xf32> to vector<16x32xf32>
    %87 = arith.addf %83, %86 : vector<16x32xf32>
    %c2_60 = arith.constant 2 : index
    %c0_61 = arith.constant 0 : index
    %c0_62 = arith.constant 0 : index
    %c0_63 = arith.constant 0 : index
    %88 = vector.load %arg8[%c2_60, %c0_61, %c0_62, %c0_63] : memref<3x2x64x32xbf16, #tpu.memory_space<vmem>>, vector<1x1x64x32xbf16>
    %89 = vector.shape_cast %88 : vector<1x1x64x32xbf16> to vector<64x32xbf16>
    %cst_64 = arith.constant dense<0.000000e+00> : vector<16x32xf32>
    %90 = tpu.matmul %70, %89, %cst_64 {dimension_numbers = #tpu.dot_dimension_numbers<[1], [0], [0], [1], [0, 0, 1, 1], [], []>} : vector<16x64xbf16>, vector<64x32xbf16>, vector<16x32xf32> -> vector<16x32xf32>
    %c2_65 = arith.constant 2 : index
    %c0_66 = arith.constant 0 : index
    %c0_67 = arith.constant 0 : index
    %c0_68 = arith.constant 0 : index
    %91 = vector.load %arg9[%c2_65, %c0_66, %c0_67, %c0_68] : memref<3x2x1x32xf32, #tpu.memory_space<vmem>>, vector<1x1x1x32xf32>
    %92 = vector.shape_cast %91 : vector<1x1x1x32xf32> to vector<1x32xf32>
    %93 = vector.broadcast %92 : vector<1x32xf32> to vector<16x32xf32>
    %94 = arith.addf %90, %93 : vector<16x32xf32>
    %95 = arith.truncf %80 : vector<16x32xf32> to vector<16x32xbf16>
    %96 = arith.truncf %87 : vector<16x32xf32> to vector<16x32xbf16>
    %cst_69 = arith.constant dense<0.000000e+00> : vector<16x16xf32>
    %97 = tpu.matmul %95, %96, %cst_69 {dimension_numbers = #tpu.dot_dimension_numbers<[1], [1], [0], [0], [0, 0, 1, 0], [], []>} : vector<16x32xbf16>, vector<16x32xbf16>, vector<16x16xf32> -> vector<16x16xf32>
    %cst_70 = arith.constant dense<0xFF800000> : vector<16xf32>
    %98 = vector.multi_reduction <maximumf>, %97, %cst_70 [1] : vector<16x16xf32> to vector<16xf32>
    %99 = vector.shape_cast %98 : vector<16xf32> to vector<16x1xf32>
    %100 = vector.broadcast %99 : vector<16x1xf32> to vector<16x16xf32>
    %101 = arith.subf %97, %100 : vector<16x16xf32>
    %102 = math.exp %101 : vector<16x16xf32>
    %cst_71 = arith.constant dense<0.000000e+00> : vector<16xf32>
    %103 = vector.multi_reduction <add>, %102, %cst_71 [1] : vector<16x16xf32> to vector<16xf32>
    %104 = vector.shape_cast %103 : vector<16xf32> to vector<16x1xf32>
    %105 = tpu.reciprocal %104 {approx = true} : vector<16x1xf32> -> vector<16x1xf32>
    %106 = vector.broadcast %105 : vector<16x1xf32> to vector<16x16xf32>
    %107 = arith.mulf %102, %106 : vector<16x16xf32>
    %108 = arith.truncf %107 : vector<16x16xf32> to vector<16x16xbf16>
    %109 = arith.truncf %94 : vector<16x32xf32> to vector<16x32xbf16>
    %cst_72 = arith.constant dense<0.000000e+00> : vector<16x32xf32>
    %110 = tpu.matmul %108, %109, %cst_72 {dimension_numbers = #tpu.dot_dimension_numbers<[1], [0], [0], [1], [0, 0, 1, 1], [], []>} : vector<16x16xbf16>, vector<16x32xbf16>, vector<16x32xf32> -> vector<16x32xf32>
    %111 = arith.truncf %110 : vector<16x32xf32> to vector<16x32xbf16>
    %c0_73 = arith.constant 0 : index
    %c0_74 = arith.constant 0 : index
    %c0_75 = arith.constant 0 : index
    %112 = vector.load %arg10[%c0_73, %c0_74, %c0_75] : memref<2x32x64xbf16, #tpu.memory_space<vmem>>, vector<1x32x64xbf16>
    %113 = vector.shape_cast %112 : vector<1x32x64xbf16> to vector<32x64xbf16>
    %cst_76 = arith.constant dense<0.000000e+00> : vector<16x64xf32>
    %114 = tpu.matmul %111, %113, %cst_76 {dimension_numbers = #tpu.dot_dimension_numbers<[1], [0], [0], [1], [0, 0, 1, 1], [], []>} : vector<16x32xbf16>, vector<32x64xbf16>, vector<16x64xf32> -> vector<16x64xf32>
    %115 = arith.addf %71, %114 : vector<16x64xf32>
    %c0_77 = arith.constant 0 : index
    %c1_78 = arith.constant 1 : index
    %c0_79 = arith.constant 0 : index
    %c0_80 = arith.constant 0 : index
    %116 = vector.load %arg8[%c0_77, %c1_78, %c0_79, %c0_80] : memref<3x2x64x32xbf16, #tpu.memory_space<vmem>>, vector<1x1x64x32xbf16>
    %117 = vector.shape_cast %116 : vector<1x1x64x32xbf16> to vector<64x32xbf16>
    %cst_81 = arith.constant dense<0.000000e+00> : vector<16x32xf32>
    %118 = tpu.matmul %70, %117, %cst_81 {dimension_numbers = #tpu.dot_dimension_numbers<[1], [0], [0], [1], [0, 0, 1, 1], [], []>} : vector<16x64xbf16>, vector<64x32xbf16>, vector<16x32xf32> -> vector<16x32xf32>
    %c0_82 = arith.constant 0 : index
    %c1_83 = arith.constant 1 : index
    %c0_84 = arith.constant 0 : index
    %c0_85 = arith.constant 0 : index
    %119 = vector.load %arg9[%c0_82, %c1_83, %c0_84, %c0_85] : memref<3x2x1x32xf32, #tpu.memory_space<vmem>>, vector<1x1x1x32xf32>
    %120 = vector.shape_cast %119 : vector<1x1x1x32xf32> to vector<1x32xf32>
    %121 = vector.broadcast %120 : vector<1x32xf32> to vector<16x32xf32>
    %122 = arith.addf %118, %121 : vector<16x32xf32>
    %cst_86 = arith.constant 0.176776692 : f32
    %123 = vector.broadcast %cst_86 : f32 to vector<16x32xf32>
    %124 = arith.mulf %122, %123 : vector<16x32xf32>
    %c1_87 = arith.constant 1 : index
    %c1_88 = arith.constant 1 : index
    %c0_89 = arith.constant 0 : index
    %c0_90 = arith.constant 0 : index
    %125 = vector.load %arg8[%c1_87, %c1_88, %c0_89, %c0_90] : memref<3x2x64x32xbf16, #tpu.memory_space<vmem>>, vector<1x1x64x32xbf16>
    %126 = vector.shape_cast %125 : vector<1x1x64x32xbf16> to vector<64x32xbf16>
    %cst_91 = arith.constant dense<0.000000e+00> : vector<16x32xf32>
    %127 = tpu.matmul %70, %126, %cst_91 {dimension_numbers = #tpu.dot_dimension_numbers<[1], [0], [0], [1], [0, 0, 1, 1], [], []>} : vector<16x64xbf16>, vector<64x32xbf16>, vector<16x32xf32> -> vector<16x32xf32>
    %c1_92 = arith.constant 1 : index
    %c1_93 = arith.constant 1 : index
    %c0_94 = arith.constant 0 : index
    %c0_95 = arith.constant 0 : index
    %128 = vector.load %arg9[%c1_92, %c1_93, %c0_94, %c0_95] : memref<3x2x1x32xf32, #tpu.memory_space<vmem>>, vector<1x1x1x32xf32>
    %129 = vector.shape_cast %128 : vector<1x1x1x32xf32> to vector<1x32xf32>
    %130 = vector.broadcast %129 : vector<1x32xf32> to vector<16x32xf32>
    %131 = arith.addf %127, %130 : vector<16x32xf32>
    %c2_96 = arith.constant 2 : index
    %c1_97 = arith.constant 1 : index
    %c0_98 = arith.constant 0 : index
    %c0_99 = arith.constant 0 : index
    %132 = vector.load %arg8[%c2_96, %c1_97, %c0_98, %c0_99] : memref<3x2x64x32xbf16, #tpu.memory_space<vmem>>, vector<1x1x64x32xbf16>
    %133 = vector.shape_cast %132 : vector<1x1x64x32xbf16> to vector<64x32xbf16>
    %cst_100 = arith.constant dense<0.000000e+00> : vector<16x32xf32>
    %134 = tpu.matmul %70, %133, %cst_100 {dimension_numbers = #tpu.dot_dimension_numbers<[1], [0], [0], [1], [0, 0, 1, 1], [], []>} : vector<16x64xbf16>, vector<64x32xbf16>, vector<16x32xf32> -> vector<16x32xf32>
    %c2_101 = arith.constant 2 : index
    %c1_102 = arith.constant 1 : index
    %c0_103 = arith.constant 0 : index
    %c0_104 = arith.constant 0 : index
    %135 = vector.load %arg9[%c2_101, %c1_102, %c0_103, %c0_104] : memref<3x2x1x32xf32, #tpu.memory_space<vmem>>, vector<1x1x1x32xf32>
    %136 = vector.shape_cast %135 : vector<1x1x1x32xf32> to vector<1x32xf32>
    %137 = vector.broadcast %136 : vector<1x32xf32> to vector<16x32xf32>
    %138 = arith.addf %134, %137 : vector<16x32xf32>
    %139 = arith.truncf %124 : vector<16x32xf32> to vector<16x32xbf16>
    %140 = arith.truncf %131 : vector<16x32xf32> to vector<16x32xbf16>
    %cst_105 = arith.constant dense<0.000000e+00> : vector<16x16xf32>
    %141 = tpu.matmul %139, %140, %cst_105 {dimension_numbers = #tpu.dot_dimension_numbers<[1], [1], [0], [0], [0, 0, 1, 0], [], []>} : vector<16x32xbf16>, vector<16x32xbf16>, vector<16x16xf32> -> vector<16x16xf32>
    %cst_106 = arith.constant dense<0xFF800000> : vector<16xf32>
    %142 = vector.multi_reduction <maximumf>, %141, %cst_106 [1] : vector<16x16xf32> to vector<16xf32>
    %143 = vector.shape_cast %142 : vector<16xf32> to vector<16x1xf32>
    %144 = vector.broadcast %143 : vector<16x1xf32> to vector<16x16xf32>
    %145 = arith.subf %141, %144 : vector<16x16xf32>
    %146 = math.exp %145 : vector<16x16xf32>
    %cst_107 = arith.constant dense<0.000000e+00> : vector<16xf32>
    %147 = vector.multi_reduction <add>, %146, %cst_107 [1] : vector<16x16xf32> to vector<16xf32>
    %148 = vector.shape_cast %147 : vector<16xf32> to vector<16x1xf32>
    %149 = tpu.reciprocal %148 {approx = true} : vector<16x1xf32> -> vector<16x1xf32>
    %150 = vector.broadcast %149 : vector<16x1xf32> to vector<16x16xf32>
    %151 = arith.mulf %146, %150 : vector<16x16xf32>
    %152 = arith.truncf %151 : vector<16x16xf32> to vector<16x16xbf16>
    %153 = arith.truncf %138 : vector<16x32xf32> to vector<16x32xbf16>
    %cst_108 = arith.constant dense<0.000000e+00> : vector<16x32xf32>
    %154 = tpu.matmul %152, %153, %cst_108 {dimension_numbers = #tpu.dot_dimension_numbers<[1], [0], [0], [1], [0, 0, 1, 1], [], []>} : vector<16x16xbf16>, vector<16x32xbf16>, vector<16x32xf32> -> vector<16x32xf32>
    %155 = arith.truncf %154 : vector<16x32xf32> to vector<16x32xbf16>
    %c1_109 = arith.constant 1 : index
    %c0_110 = arith.constant 0 : index
    %c0_111 = arith.constant 0 : index
    %156 = vector.load %arg10[%c1_109, %c0_110, %c0_111] : memref<2x32x64xbf16, #tpu.memory_space<vmem>>, vector<1x32x64xbf16>
    %157 = vector.shape_cast %156 : vector<1x32x64xbf16> to vector<32x64xbf16>
    %cst_112 = arith.constant dense<0.000000e+00> : vector<16x64xf32>
    %158 = tpu.matmul %155, %157, %cst_112 {dimension_numbers = #tpu.dot_dimension_numbers<[1], [0], [0], [1], [0, 0, 1, 1], [], []>} : vector<16x32xbf16>, vector<32x64xbf16>, vector<16x64xf32> -> vector<16x64xf32>
    %159 = arith.addf %115, %158 : vector<16x64xf32>
    %160 = arith.addf %69, %159 : vector<16x64xf32>
    %c0_113 = arith.constant 0 : index
    %c0_114 = arith.constant 0 : index
    %161 = vector.load %arg11[%c0_113, %c0_114] : memref<1x64xf32, #tpu.memory_space<vmem>>, vector<1x64xf32>
    %162 = vector.broadcast %161 : vector<1x64xf32> to vector<16x64xf32>
    %163 = arith.addf %160, %162 : vector<16x64xf32>
    %c1_i32_115 = arith.constant 1 : i32
    %164 = tpu.dynamic_rotate %163 by %c1_i32_115 dim 0 : vector<16x64xf32>, i32 -> vector<16x64xf32>
    %cst_116 = arith.constant 0.000000e+00 : f32
    %165 = vector.shape_cast %2 : vector<16x1xi1> to vector<16x1xi1>
    %166 = vector.broadcast %165 : vector<16x1xi1> to vector<16x64xi1>
    %167 = vector.broadcast %cst_116 : f32 to vector<16x64xf32>
    %168 = arith.select %166, %164, %167 : vector<16x64xi1>, vector<16x64xf32>
    %c15_i32_117 = arith.constant 15 : i32
    %169 = tpu.dynamic_rotate %163 by %c15_i32_117 dim 0 : vector<16x64xf32>, i32 -> vector<16x64xf32>
    %cst_118 = arith.constant 0.000000e+00 : f32
    %170 = vector.shape_cast %4 : vector<16x1xi1> to vector<16x1xi1>
    %171 = vector.broadcast %170 : vector<16x1xi1> to vector<16x64xi1>
    %172 = vector.broadcast %cst_118 : f32 to vector<16x64xf32>
    %173 = arith.select %171, %169, %172 : vector<16x64xi1>, vector<16x64xf32>
    %174 = arith.truncf %168 : vector<16x64xf32> to vector<16x64xbf16>
    %c0_119 = arith.constant 0 : index
    %c0_120 = arith.constant 0 : index
    %c0_121 = arith.constant 0 : index
    %175 = vector.load %arg12[%c0_119, %c0_120, %c0_121] : memref<3x64x256xbf16, #tpu.memory_space<vmem>>, vector<1x64x256xbf16>
    %176 = vector.shape_cast %175 : vector<1x64x256xbf16> to vector<64x256xbf16>
    %cst_122 = arith.constant dense<0.000000e+00> : vector<16x256xf32>
    %177 = tpu.matmul %174, %176, %cst_122 {dimension_numbers = #tpu.dot_dimension_numbers<[1], [0], [0], [1], [0, 0, 1, 1], [], []>} : vector<16x64xbf16>, vector<64x256xbf16>, vector<16x256xf32> -> vector<16x256xf32>
    %178 = arith.truncf %163 : vector<16x64xf32> to vector<16x64xbf16>
    %c1_123 = arith.constant 1 : index
    %c0_124 = arith.constant 0 : index
    %c0_125 = arith.constant 0 : index
    %179 = vector.load %arg12[%c1_123, %c0_124, %c0_125] : memref<3x64x256xbf16, #tpu.memory_space<vmem>>, vector<1x64x256xbf16>
    %180 = vector.shape_cast %179 : vector<1x64x256xbf16> to vector<64x256xbf16>
    %cst_126 = arith.constant dense<0.000000e+00> : vector<16x256xf32>
    %181 = tpu.matmul %178, %180, %cst_126 {dimension_numbers = #tpu.dot_dimension_numbers<[1], [0], [0], [1], [0, 0, 1, 1], [], []>} : vector<16x64xbf16>, vector<64x256xbf16>, vector<16x256xf32> -> vector<16x256xf32>
    %182 = arith.addf %177, %181 : vector<16x256xf32>
    %183 = arith.truncf %173 : vector<16x64xf32> to vector<16x64xbf16>
    %c2_127 = arith.constant 2 : index
    %c0_128 = arith.constant 0 : index
    %c0_129 = arith.constant 0 : index
    %184 = vector.load %arg12[%c2_127, %c0_128, %c0_129] : memref<3x64x256xbf16, #tpu.memory_space<vmem>>, vector<1x64x256xbf16>
    %185 = vector.shape_cast %184 : vector<1x64x256xbf16> to vector<64x256xbf16>
    %cst_130 = arith.constant dense<0.000000e+00> : vector<16x256xf32>
    %186 = tpu.matmul %183, %185, %cst_130 {dimension_numbers = #tpu.dot_dimension_numbers<[1], [0], [0], [1], [0, 0, 1, 1], [], []>} : vector<16x64xbf16>, vector<64x256xbf16>, vector<16x256xf32> -> vector<16x256xf32>
    %187 = arith.addf %182, %186 : vector<16x256xf32>
    %c0_131 = arith.constant 0 : index
    %c0_132 = arith.constant 0 : index
    %188 = vector.load %arg13[%c0_131, %c0_132] : memref<1x256xf32, #tpu.memory_space<vmem>>, vector<1x256xf32>
    %189 = vector.broadcast %188 : vector<1x256xf32> to vector<16x256xf32>
    %190 = arith.addf %187, %189 : vector<16x256xf32>
    %cst_133 = arith.constant 0.000000e+00 : f32
    %191 = vector.broadcast %cst_133 : f32 to vector<16x256xf32>
    %192 = arith.maximumf %190, %191 : vector<16x256xf32>
    %c1_i32_134 = arith.constant 1 : i32
    %193 = tpu.dynamic_rotate %192 by %c1_i32_134 dim 0 : vector<16x256xf32>, i32 -> vector<16x256xf32>
    %cst_135 = arith.constant 0.000000e+00 : f32
    %194 = vector.shape_cast %2 : vector<16x1xi1> to vector<16x1xi1>
    %195 = vector.broadcast %194 : vector<16x1xi1> to vector<16x256xi1>
    %196 = vector.broadcast %cst_135 : f32 to vector<16x256xf32>
    %197 = arith.select %195, %193, %196 : vector<16x256xi1>, vector<16x256xf32>
    %c15_i32_136 = arith.constant 15 : i32
    %198 = tpu.dynamic_rotate %192 by %c15_i32_136 dim 0 : vector<16x256xf32>, i32 -> vector<16x256xf32>
    %cst_137 = arith.constant 0.000000e+00 : f32
    %199 = vector.shape_cast %4 : vector<16x1xi1> to vector<16x1xi1>
    %200 = vector.broadcast %199 : vector<16x1xi1> to vector<16x256xi1>
    %201 = vector.broadcast %cst_137 : f32 to vector<16x256xf32>
    %202 = arith.select %200, %198, %201 : vector<16x256xi1>, vector<16x256xf32>
    %203 = arith.truncf %197 : vector<16x256xf32> to vector<16x256xbf16>
    %c0_138 = arith.constant 0 : index
    %c0_139 = arith.constant 0 : index
    %c0_140 = arith.constant 0 : index
    %204 = vector.load %arg14[%c0_138, %c0_139, %c0_140] : memref<3x256x64xbf16, #tpu.memory_space<vmem>>, vector<1x256x64xbf16>
    %205 = vector.shape_cast %204 : vector<1x256x64xbf16> to vector<256x64xbf16>
    %cst_141 = arith.constant dense<0.000000e+00> : vector<16x64xf32>
    %206 = tpu.matmul %203, %205, %cst_141 {dimension_numbers = #tpu.dot_dimension_numbers<[1], [0], [0], [1], [0, 0, 1, 1], [], []>} : vector<16x256xbf16>, vector<256x64xbf16>, vector<16x64xf32> -> vector<16x64xf32>
    %207 = arith.truncf %192 : vector<16x256xf32> to vector<16x256xbf16>
    %c1_142 = arith.constant 1 : index
    %c0_143 = arith.constant 0 : index
    %c0_144 = arith.constant 0 : index
    %208 = vector.load %arg14[%c1_142, %c0_143, %c0_144] : memref<3x256x64xbf16, #tpu.memory_space<vmem>>, vector<1x256x64xbf16>
    %209 = vector.shape_cast %208 : vector<1x256x64xbf16> to vector<256x64xbf16>
    %cst_145 = arith.constant dense<0.000000e+00> : vector<16x64xf32>
    %210 = tpu.matmul %207, %209, %cst_145 {dimension_numbers = #tpu.dot_dimension_numbers<[1], [0], [0], [1], [0, 0, 1, 1], [], []>} : vector<16x256xbf16>, vector<256x64xbf16>, vector<16x64xf32> -> vector<16x64xf32>
    %211 = arith.addf %206, %210 : vector<16x64xf32>
    %212 = arith.truncf %202 : vector<16x256xf32> to vector<16x256xbf16>
    %c2_146 = arith.constant 2 : index
    %c0_147 = arith.constant 0 : index
    %c0_148 = arith.constant 0 : index
    %213 = vector.load %arg14[%c2_146, %c0_147, %c0_148] : memref<3x256x64xbf16, #tpu.memory_space<vmem>>, vector<1x256x64xbf16>
    %214 = vector.shape_cast %213 : vector<1x256x64xbf16> to vector<256x64xbf16>
    %cst_149 = arith.constant dense<0.000000e+00> : vector<16x64xf32>
    %215 = tpu.matmul %212, %214, %cst_149 {dimension_numbers = #tpu.dot_dimension_numbers<[1], [0], [0], [1], [0, 0, 1, 1], [], []>} : vector<16x256xbf16>, vector<256x64xbf16>, vector<16x64xf32> -> vector<16x64xf32>
    %216 = arith.addf %211, %215 : vector<16x64xf32>
    %c0_150 = arith.constant 0 : index
    %c0_151 = arith.constant 0 : index
    %217 = vector.load %arg15[%c0_150, %c0_151] : memref<1x64xf32, #tpu.memory_space<vmem>>, vector<1x64xf32>
    %218 = vector.broadcast %217 : vector<1x64xf32> to vector<16x64xf32>
    %219 = arith.addf %216, %218 : vector<16x64xf32>
    %220 = arith.addf %163, %219 : vector<16x64xf32>
    %c1_i32_152 = arith.constant 1 : i32
    %221 = tpu.dynamic_rotate %220 by %c1_i32_152 dim 0 : vector<16x64xf32>, i32 -> vector<16x64xf32>
    %cst_153 = arith.constant 0.000000e+00 : f32
    %222 = vector.shape_cast %2 : vector<16x1xi1> to vector<16x1xi1>
    %223 = vector.broadcast %222 : vector<16x1xi1> to vector<16x64xi1>
    %224 = vector.broadcast %cst_153 : f32 to vector<16x64xf32>
    %225 = arith.select %223, %221, %224 : vector<16x64xi1>, vector<16x64xf32>
    %c15_i32_154 = arith.constant 15 : i32
    %226 = tpu.dynamic_rotate %220 by %c15_i32_154 dim 0 : vector<16x64xf32>, i32 -> vector<16x64xf32>
    %cst_155 = arith.constant 0.000000e+00 : f32
    %227 = vector.shape_cast %4 : vector<16x1xi1> to vector<16x1xi1>
    %228 = vector.broadcast %227 : vector<16x1xi1> to vector<16x64xi1>
    %229 = vector.broadcast %cst_155 : f32 to vector<16x64xf32>
    %230 = arith.select %228, %226, %229 : vector<16x64xi1>, vector<16x64xf32>
    %231 = arith.truncf %225 : vector<16x64xf32> to vector<16x64xbf16>
    %c0_156 = arith.constant 0 : index
    %c0_157 = arith.constant 0 : index
    %c0_158 = arith.constant 0 : index
    %232 = vector.load %arg16[%c0_156, %c0_157, %c0_158] : memref<3x64x128xbf16, #tpu.memory_space<vmem>>, vector<1x64x128xbf16>
    %233 = vector.shape_cast %232 : vector<1x64x128xbf16> to vector<64x128xbf16>
    %cst_159 = arith.constant dense<0.000000e+00> : vector<16x128xf32>
    %234 = tpu.matmul %231, %233, %cst_159 {dimension_numbers = #tpu.dot_dimension_numbers<[1], [0], [0], [1], [0, 0, 1, 1], [], []>} : vector<16x64xbf16>, vector<64x128xbf16>, vector<16x128xf32> -> vector<16x128xf32>
    %235 = arith.truncf %220 : vector<16x64xf32> to vector<16x64xbf16>
    %c1_160 = arith.constant 1 : index
    %c0_161 = arith.constant 0 : index
    %c0_162 = arith.constant 0 : index
    %236 = vector.load %arg16[%c1_160, %c0_161, %c0_162] : memref<3x64x128xbf16, #tpu.memory_space<vmem>>, vector<1x64x128xbf16>
    %237 = vector.shape_cast %236 : vector<1x64x128xbf16> to vector<64x128xbf16>
    %cst_163 = arith.constant dense<0.000000e+00> : vector<16x128xf32>
    %238 = tpu.matmul %235, %237, %cst_163 {dimension_numbers = #tpu.dot_dimension_numbers<[1], [0], [0], [1], [0, 0, 1, 1], [], []>} : vector<16x64xbf16>, vector<64x128xbf16>, vector<16x128xf32> -> vector<16x128xf32>
    %239 = arith.addf %234, %238 : vector<16x128xf32>
    %240 = arith.truncf %230 : vector<16x64xf32> to vector<16x64xbf16>
    %c2_164 = arith.constant 2 : index
    %c0_165 = arith.constant 0 : index
    %c0_166 = arith.constant 0 : index
    %241 = vector.load %arg16[%c2_164, %c0_165, %c0_166] : memref<3x64x128xbf16, #tpu.memory_space<vmem>>, vector<1x64x128xbf16>
    %242 = vector.shape_cast %241 : vector<1x64x128xbf16> to vector<64x128xbf16>
    %cst_167 = arith.constant dense<0.000000e+00> : vector<16x128xf32>
    %243 = tpu.matmul %240, %242, %cst_167 {dimension_numbers = #tpu.dot_dimension_numbers<[1], [0], [0], [1], [0, 0, 1, 1], [], []>} : vector<16x64xbf16>, vector<64x128xbf16>, vector<16x128xf32> -> vector<16x128xf32>
    %244 = arith.addf %239, %243 : vector<16x128xf32>
    %c0_168 = arith.constant 0 : index
    %c0_169 = arith.constant 0 : index
    %245 = vector.load %arg17[%c0_168, %c0_169] : memref<1x128xf32, #tpu.memory_space<vmem>>, vector<1x128xf32>
    %246 = vector.broadcast %245 : vector<1x128xf32> to vector<16x128xf32>
    %247 = arith.addf %244, %246 : vector<16x128xf32>
    %cst_170 = arith.constant 0.000000e+00 : f32
    %248 = vector.broadcast %cst_170 : f32 to vector<16x128xf32>
    %249 = arith.maximumf %247, %248 : vector<16x128xf32>
    %c1_i32_171 = arith.constant 1 : i32
    %250 = tpu.dynamic_rotate %249 by %c1_i32_171 dim 0 : vector<16x128xf32>, i32 -> vector<16x128xf32>
    %cst_172 = arith.constant 0.000000e+00 : f32
    %251 = vector.shape_cast %2 : vector<16x1xi1> to vector<16x1xi1>
    %252 = vector.broadcast %251 : vector<16x1xi1> to vector<16x128xi1>
    %253 = vector.broadcast %cst_172 : f32 to vector<16x128xf32>
    %254 = arith.select %252, %250, %253 : vector<16x128xi1>, vector<16x128xf32>
    %c15_i32_173 = arith.constant 15 : i32
    %255 = tpu.dynamic_rotate %249 by %c15_i32_173 dim 0 : vector<16x128xf32>, i32 -> vector<16x128xf32>
    %cst_174 = arith.constant 0.000000e+00 : f32
    %256 = vector.shape_cast %4 : vector<16x1xi1> to vector<16x1xi1>
    %257 = vector.broadcast %256 : vector<16x1xi1> to vector<16x128xi1>
    %258 = vector.broadcast %cst_174 : f32 to vector<16x128xf32>
    %259 = arith.select %257, %255, %258 : vector<16x128xi1>, vector<16x128xf32>
    %260 = arith.truncf %254 : vector<16x128xf32> to vector<16x128xbf16>
    %c0_175 = arith.constant 0 : index
    %c0_176 = arith.constant 0 : index
    %c0_177 = arith.constant 0 : index
    %261 = vector.load %arg20[%c0_175, %c0_176, %c0_177] : memref<3x128x128xbf16, #tpu.memory_space<vmem>>, vector<1x128x128xbf16>
    %262 = vector.shape_cast %261 : vector<1x128x128xbf16> to vector<128x128xbf16>
    %cst_178 = arith.constant dense<0.000000e+00> : vector<16x128xf32>
    %263 = tpu.matmul %260, %262, %cst_178 {dimension_numbers = #tpu.dot_dimension_numbers<[1], [0], [0], [1], [0, 0, 1, 1], [], []>} : vector<16x128xbf16>, vector<128x128xbf16>, vector<16x128xf32> -> vector<16x128xf32>
    %264 = arith.truncf %249 : vector<16x128xf32> to vector<16x128xbf16>
    %c1_179 = arith.constant 1 : index
    %c0_180 = arith.constant 0 : index
    %c0_181 = arith.constant 0 : index
    %265 = vector.load %arg20[%c1_179, %c0_180, %c0_181] : memref<3x128x128xbf16, #tpu.memory_space<vmem>>, vector<1x128x128xbf16>
    %266 = vector.shape_cast %265 : vector<1x128x128xbf16> to vector<128x128xbf16>
    %cst_182 = arith.constant dense<0.000000e+00> : vector<16x128xf32>
    %267 = tpu.matmul %264, %266, %cst_182 {dimension_numbers = #tpu.dot_dimension_numbers<[1], [0], [0], [1], [0, 0, 1, 1], [], []>} : vector<16x128xbf16>, vector<128x128xbf16>, vector<16x128xf32> -> vector<16x128xf32>
    %268 = arith.addf %263, %267 : vector<16x128xf32>
    %269 = arith.truncf %259 : vector<16x128xf32> to vector<16x128xbf16>
    %c2_183 = arith.constant 2 : index
    %c0_184 = arith.constant 0 : index
    %c0_185 = arith.constant 0 : index
    %270 = vector.load %arg20[%c2_183, %c0_184, %c0_185] : memref<3x128x128xbf16, #tpu.memory_space<vmem>>, vector<1x128x128xbf16>
    %271 = vector.shape_cast %270 : vector<1x128x128xbf16> to vector<128x128xbf16>
    %cst_186 = arith.constant dense<0.000000e+00> : vector<16x128xf32>
    %272 = tpu.matmul %269, %271, %cst_186 {dimension_numbers = #tpu.dot_dimension_numbers<[1], [0], [0], [1], [0, 0, 1, 1], [], []>} : vector<16x128xbf16>, vector<128x128xbf16>, vector<16x128xf32> -> vector<16x128xf32>
    %273 = arith.addf %268, %272 : vector<16x128xf32>
    %c0_187 = arith.constant 0 : index
    %c0_188 = arith.constant 0 : index
    %274 = vector.load %arg21[%c0_187, %c0_188] : memref<1x128xf32, #tpu.memory_space<vmem>>, vector<1x128xf32>
    %275 = vector.broadcast %274 : vector<1x128xf32> to vector<16x128xf32>
    %276 = arith.addf %273, %275 : vector<16x128xf32>
    %cst_189 = arith.constant 0.000000e+00 : f32
    %277 = vector.broadcast %cst_189 : f32 to vector<16x128xf32>
    %278 = arith.maximumf %276, %277 : vector<16x128xf32>
    %279 = arith.truncf %220 : vector<16x64xf32> to vector<16x64xbf16>
    %c0_190 = arith.constant 0 : index
    %c0_191 = arith.constant 0 : index
    %280 = vector.load %arg18[%c0_190, %c0_191] : memref<64x128xbf16, #tpu.memory_space<vmem>>, vector<64x128xbf16>
    %cst_192 = arith.constant dense<0.000000e+00> : vector<16x128xf32>
    %281 = tpu.matmul %279, %280, %cst_192 {dimension_numbers = #tpu.dot_dimension_numbers<[1], [0], [0], [1], [0, 0, 1, 1], [], []>} : vector<16x64xbf16>, vector<64x128xbf16>, vector<16x128xf32> -> vector<16x128xf32>
    %c0_193 = arith.constant 0 : index
    %c0_194 = arith.constant 0 : index
    %282 = vector.load %arg19[%c0_193, %c0_194] : memref<1x128xf32, #tpu.memory_space<vmem>>, vector<1x128xf32>
    %283 = vector.broadcast %282 : vector<1x128xf32> to vector<16x128xf32>
    %284 = arith.addf %281, %283 : vector<16x128xf32>
    %285 = arith.addf %278, %284 : vector<16x128xf32>
    %c0_195 = arith.constant 0 : index
    %c0_196 = arith.constant 0 : index
    %c0_197 = arith.constant 0 : index
    %286 = vector.load %arg22[%c0_195, %c0_196, %c0_197] : memref<1x16x128xf32, #tpu.memory_space<vmem>>, vector<1x16x128xf32>
    %287 = vector.shape_cast %286 : vector<1x16x128xf32> to vector<16x128xf32>
    %288 = vector.shape_cast %285 : vector<16x128xf32> to vector<1x16x128xf32>
    tpu.vector_store %arg22[%c0_195, %c0_196, %c0_197], %288 {strides = array<i32>} : memref<1x16x128xf32, #tpu.memory_space<vmem>>, vector<1x16x128xf32>,
    return
  }
  func.func @transform_0(%arg0: i32) -> (i32, i32, i32) {
    %c0_i32 = arith.constant 0 : i32
    %c0_i32_0 = arith.constant 0 : i32
    %c0_i32_1 = arith.constant 0 : i32
    return %arg0, %c0_i32, %c0_i32_0 : i32, i32, i32
  }
  func.func @transform_1(%arg0: i32) -> (i32, i32, i32) {
    %c0_i32 = arith.constant 0 : i32
    %c0_i32_0 = arith.constant 0 : i32
    %c0_i32_1 = arith.constant 0 : i32
    %c0_i32_2 = arith.constant 0 : i32
    return %c0_i32, %c0_i32_0, %c0_i32_1 : i32, i32, i32
  }
  func.func @transform_2(%arg0: i32) -> (i32, i32) {
    %c0_i32 = arith.constant 0 : i32
    %c0_i32_0 = arith.constant 0 : i32
    %c0_i32_1 = arith.constant 0 : i32
    return %c0_i32, %c0_i32_0 : i32, i32
  }
  func.func @transform_3(%arg0: i32) -> (i32, i32) {
    %c0_i32 = arith.constant 0 : i32
    %c0_i32_0 = arith.constant 0 : i32
    %c0_i32_1 = arith.constant 0 : i32
    return %c0_i32, %c0_i32_0 : i32, i32
  }
  func.func @transform_4(%arg0: i32) -> (i32, i32) {
    %c0_i32 = arith.constant 0 : i32
    %c0_i32_0 = arith.constant 0 : i32
    %c0_i32_1 = arith.constant 0 : i32
    return %c0_i32, %c0_i32_0 : i32, i32
  }
  func.func @transform_5(%arg0: i32) -> (i32, i32, i32) {
    %c0_i32 = arith.constant 0 : i32
    %c0_i32_0 = arith.constant 0 : i32
    %c0_i32_1 = arith.constant 0 : i32
    %c0_i32_2 = arith.constant 0 : i32
    return %c0_i32, %c0_i32_0, %c0_i32_1 : i32, i32, i32
  }
  func.func @transform_6(%arg0: i32) -> (i32, i32) {
    %c0_i32 = arith.constant 0 : i32
    %c0_i32_0 = arith.constant 0 : i32
    %c0_i32_1 = arith.constant 0 : i32
    return %c0_i32, %c0_i32_0 : i32, i32
  }
  func.func @transform_7(%arg0: i32) -> (i32, i32, i32, i32) {
    %c0_i32 = arith.constant 0 : i32
    %c0_i32_0 = arith.constant 0 : i32
    %c0_i32_1 = arith.constant 0 : i32
    %c0_i32_2 = arith.constant 0 : i32
    %c0_i32_3 = arith.constant 0 : i32
    return %c0_i32, %c0_i32_0, %c0_i32_1, %c0_i32_2 : i32, i32, i32, i32
  }
  func.func @transform_8(%arg0: i32) -> (i32, i32, i32, i32) {
    %c0_i32 = arith.constant 0 : i32
    %c0_i32_0 = arith.constant 0 : i32
    %c0_i32_1 = arith.constant 0 : i32
    %c0_i32_2 = arith.constant 0 : i32
    %c0_i32_3 = arith.constant 0 : i32
    return %c0_i32, %c0_i32_0, %c0_i32_1, %c0_i32_2 : i32, i32, i32, i32
  }
  func.func @transform_9(%arg0: i32) -> (i32, i32, i32) {
    %c0_i32 = arith.constant 0 : i32
    %c0_i32_0 = arith.constant 0 : i32
    %c0_i32_1 = arith.constant 0 : i32
    %c0_i32_2 = arith.constant 0 : i32
    return %c0_i32, %c0_i32_0, %c0_i32_1 : i32, i32, i32
  }
  func.func @transform_10(%arg0: i32) -> (i32, i32) {
    %c0_i32 = arith.constant 0 : i32
    %c0_i32_0 = arith.constant 0 : i32
    %c0_i32_1 = arith.constant 0 : i32
    return %c0_i32, %c0_i32_0 : i32, i32
  }
  func.func @transform_11(%arg0: i32) -> (i32, i32, i32) {
    %c0_i32 = arith.constant 0 : i32
    %c0_i32_0 = arith.constant 0 : i32
    %c0_i32_1 = arith.constant 0 : i32
    %c0_i32_2 = arith.constant 0 : i32
    return %c0_i32, %c0_i32_0, %c0_i32_1 : i32, i32, i32
  }
  func.func @transform_12(%arg0: i32) -> (i32, i32) {
    %c0_i32 = arith.constant 0 : i32
    %c0_i32_0 = arith.constant 0 : i32
    %c0_i32_1 = arith.constant 0 : i32
    return %c0_i32, %c0_i32_0 : i32, i32
  }
  func.func @transform_13(%arg0: i32) -> (i32, i32, i32) {
    %c0_i32 = arith.constant 0 : i32
    %c0_i32_0 = arith.constant 0 : i32
    %c0_i32_1 = arith.constant 0 : i32
    %c0_i32_2 = arith.constant 0 : i32
    return %c0_i32, %c0_i32_0, %c0_i32_1 : i32, i32, i32
  }
  func.func @transform_14(%arg0: i32) -> (i32, i32) {
    %c0_i32 = arith.constant 0 : i32
    %c0_i32_0 = arith.constant 0 : i32
    %c0_i32_1 = arith.constant 0 : i32
    return %c0_i32, %c0_i32_0 : i32, i32
  }
  func.func @transform_15(%arg0: i32) -> (i32, i32, i32) {
    %c0_i32 = arith.constant 0 : i32
    %c0_i32_0 = arith.constant 0 : i32
    %c0_i32_1 = arith.constant 0 : i32
    %c0_i32_2 = arith.constant 0 : i32
    return %c0_i32, %c0_i32_0, %c0_i32_1 : i32, i32, i32
  }
  func.func @transform_16(%arg0: i32) -> (i32, i32) {
    %c0_i32 = arith.constant 0 : i32
    %c0_i32_0 = arith.constant 0 : i32
    %c0_i32_1 = arith.constant 0 : i32
    return %c0_i32, %c0_i32_0 : i32, i32
  }
  func.func @transform_17(%arg0: i32) -> (i32, i32) {
    %c0_i32 = arith.constant 0 : i32
    %c0_i32_0 = arith.constant 0 : i32
    %c0_i32_1 = arith.constant 0 : i32
    return %c0_i32, %c0_i32_0 : i32, i32
  }
  func.func @transform_18(%arg0: i32) -> (i32, i32) {
    %c0_i32 = arith.constant 0 : i32
    %c0_i32_0 = arith.constant 0 : i32
    %c0_i32_1 = arith.constant 0 : i32
    return %c0_i32, %c0_i32_0 : i32, i32
  }
  func.func @transform_19(%arg0: i32) -> (i32, i32, i32) {
    %c0_i32 = arith.constant 0 : i32
    %c0_i32_0 = arith.constant 0 : i32
    %c0_i32_1 = arith.constant 0 : i32
    %c0_i32_2 = arith.constant 0 : i32
    return %c0_i32, %c0_i32_0, %c0_i32_1 : i32, i32, i32
  }
  func.func @transform_20(%arg0: i32) -> (i32, i32) {
    %c0_i32 = arith.constant 0 : i32
    %c0_i32_0 = arith.constant 0 : i32
    %c0_i32_1 = arith.constant 0 : i32
    return %c0_i32, %c0_i32_0 : i32, i32
  }
  func.func @transform_21(%arg0: i32) -> (i32, i32, i32) {
    %c0_i32 = arith.constant 0 : i32
    %c0_i32_0 = arith.constant 0 : i32
    %c0_i32_1 = arith.constant 0 : i32
    return %arg0, %c0_i32, %c0_i32_0 : i32, i32, i32
  }
}

</mosaic_0001>

<llo_original>
// kernel: handler_forward.1
$region0: #{handler_forward.1}
  #allocation0 [shape = 'u32[]', space=smem, size = 0x4, offset = 0x4, fixed_abs, tag = 'smem constant byte address 0x4 - core index']
  #allocation1 [shape = 'u32[144,128]{1,0:T(1,128)}', space=vmem, size = 0x12000, scoped, tag = 'internal scratch']
  %s0 = inlined_call_operand.vmem [shape: f32[2,16,6], index: 0, kind: input, shape index: {}]
  %s1 = inlined_call_operand.vmem [shape: bf16[3,6,64], index: 1, kind: input, shape index: {}]
  %s2 = inlined_call_operand.vmem [shape: f32[1,64], index: 2, kind: input, shape index: {}]
  %s3 = inlined_call_operand.vmem [shape: bf16[6,64], index: 3, kind: input, shape index: {}]
  %s4 = inlined_call_operand.vmem [shape: f32[1,64], index: 4, kind: input, shape index: {}]
  %s5 = inlined_call_operand.vmem [shape: bf16[3,64,64], index: 5, kind: input, shape index: {}]
  %s6 = inlined_call_operand.vmem [shape: f32[1,64], index: 6, kind: input, shape index: {}]
  %s7 = inlined_call_operand.vmem [shape: bf16[3,2,64,32], index: 7, kind: input, shape index: {}]
  %s8 = inlined_call_operand.vmem [shape: f32[3,2,1,32], index: 8, kind: input, shape index: {}]
  %s9 = inlined_call_operand.vmem [shape: bf16[2,32,64], index: 9, kind: input, shape index: {}]
  %s10 = inlined_call_operand.vmem [shape: f32[1,64], index: 10, kind: input, shape index: {}]
  %s11 = inlined_call_operand.vmem [shape: bf16[3,64,256], index: 11, kind: input, shape index: {}]
  %s12 = inlined_call_operand.vmem [shape: f32[1,256], index: 12, kind: input, shape index: {}]
  %s13 = inlined_call_operand.vmem [shape: bf16[3,256,64], index: 13, kind: input, shape index: {}]
  %s14 = inlined_call_operand.vmem [shape: f32[1,64], index: 14, kind: input, shape index: {}]
  %s15 = inlined_call_operand.vmem [shape: bf16[3,64,128], index: 15, kind: input, shape index: {}]
  %s16 = inlined_call_operand.vmem [shape: f32[1,128], index: 16, kind: input, shape index: {}]
  %s17 = inlined_call_operand.vmem [shape: bf16[64,128], index: 17, kind: input, shape index: {}]
  %s18 = inlined_call_operand.vmem [shape: f32[1,128], index: 18, kind: input, shape index: {}]
  %s19 = inlined_call_operand.vmem [shape: bf16[3,128,128], index: 19, kind: input, shape index: {}]
  %s20 = inlined_call_operand.vmem [shape: f32[1,128], index: 20, kind: input, shape index: {}]
  %s21 = inlined_call_operand.vmem [shape: f32[2,16,128], index: 21, kind: output, shape index: {}]
  %s22 = sld [smem:[#allocation0]]
  $region117: #{handler_forward.1} parent=0
    _
  %s24 = ssub.s32 1, %s22
  %s25 = scalar_select 0, %s24, %s22
  loop: start=0, step=1, limit=4
  $region2: #{handler_forward.1} parent=0 // loop_pre_header
    _
  $region3: #{handler_forward.1} parent=0 // loop_header
    %s27 = sphi 0, %s31
    %p28 = scmp.ge.s32.totalorder %s27, 4
    %s37 = sphi 0, %s39
    %s40 = sphi 0, %s37
    %s41 = sphi 0, %s40
    %s57 = sphi 0, %s41
    %s61 = sphi 0, %s61
    %s63 = sphi 0, %s61
    %s64 = sphi 0, %s63
    %s78 = sphi 0, %s64
    %s82 = sphi 0, %s82
    %s84 = sphi 0, %s82
    %s85 = sphi 0, %s84
    %s99 = sphi 0, %s85
    %s103 = sphi 0, %s103
    %s105 = sphi 0, %s103
    %s106 = sphi 0, %s105
    %s120 = sphi 0, %s106
    %s124 = sphi 0, %s124
    %s126 = sphi 0, %s124
    %s127 = sphi 0, %s126
    %s141 = sphi 0, %s127
    %s145 = sphi 0, %s145
    %s147 = sphi 0, %s145
    %s148 = sphi 0, %s147
    %s162 = sphi 0, %s148
    %s166 = sphi 0, %s166
    %s168 = sphi 0, %s166
    %s169 = sphi 0, %s168
    %s183 = sphi 0, %s169
    %s187 = sphi 0, %s187
    %s189 = sphi 0, %s187
    %s190 = sphi 0, %s189
    %s204 = sphi 0, %s190
    %s208 = sphi 0, %s208
    %s210 = sphi 0, %s208
    %s211 = sphi 0, %s210
    %s225 = sphi 0, %s211
    %s229 = sphi 0, %s229
    %s231 = sphi 0, %s229
    %s232 = sphi 0, %s231
    %s246 = sphi 0, %s232
    %s250 = sphi 0, %s250
    %s252 = sphi 0, %s250
    %s253 = sphi 0, %s252
    %s267 = sphi 0, %s253
    %s271 = sphi 0, %s271
    %s273 = sphi 0, %s271
    %s274 = sphi 0, %s273
    %s288 = sphi 0, %s274
    %s292 = sphi 0, %s292
    %s294 = sphi 0, %s292
    %s295 = sphi 0, %s294
    %s309 = sphi 0, %s295
    %s313 = sphi 0, %s313
    %s315 = sphi 0, %s313
    %s316 = sphi 0, %s315
    %s330 = sphi 0, %s316
    %s334 = sphi 0, %s334
    %s336 = sphi 0, %s334
    %s337 = sphi 0, %s336
    %s351 = sphi 0, %s337
    %s355 = sphi 0, %s355
    %s357 = sphi 0, %s355
    %s358 = sphi 0, %s357
    %s372 = sphi 0, %s358
    %s376 = sphi 0, %s376
    %s378 = sphi 0, %s376
    %s379 = sphi 0, %s378
    %s393 = sphi 0, %s379
    %s397 = sphi 0, %s397
    %s399 = sphi 0, %s397
    %s400 = sphi 0, %s399
    %s414 = sphi 0, %s400
    %s418 = sphi 0, %s418
    %s420 = sphi 0, %s418
    %s421 = sphi 0, %s420
    %s435 = sphi 0, %s421
    %s439 = sphi 0, %s439
    %s441 = sphi 0, %s439
    %s442 = sphi 0, %s441
    %s456 = sphi 0, %s442
    %s460 = sphi 0, %s460
    %s462 = sphi 0, %s460
    %s463 = sphi 0, %s462
    %s477 = sphi 0, %s463
    %s483 = sphi 0, %s485
    %s486 = sphi 0, %s483
    %s487 = sphi 0, %s486
    %s503 = sphi 0, %s487
  $region4: #{handler_forward.1} parent=0 // loop_header_branch
    %30 = sbr.rel (%p28) target = $region8
  $region5: #{handler_forward.1} parent=0 // loop_body
    %s32 = ssub.s32 %s27, 1
    %s33 = ssub.s32 %s27, 2
    %s34 = sadd.s32 %s27, 1
    %s35 = ssub.s32 %s27, %s34
    %p36 = scmp.eq.s32.totalorder %s35, 0
    %s38 = sadd.s32 %s37, 1
    %s39 = scalar_select %p36, %s37, %s38
    %p42 = pneg %p36
    %p43 = scmp.eq.s32.totalorder %s27, 1
    %p44 = por %p42, %p43
    %p45 = scmp.ne.s32.totalorder %s37, %s40
    %p46 = scmp.eq.s32.totalorder %s27, 0
    %p47 = por %p45, %p46
    %p48 = scmp.ne.s32.totalorder %s37, %s40
    %p49 = scmp.eq.s32.totalorder %s32, 1
    %p50 = por %p48, %p49
    %p51 = scmp.ne.s32.totalorder %s40, %s41
    %p52 = scmp.eq.s32.totalorder %s32, 0
    %p53 = por %p51, %p52
    %p54 = scmp.ne.s32.totalorder %s40, %s41
    %p55 = scmp.eq.s32.totalorder %s33, 1
    %p56 = por %p54, %p55
    %p58 = scmp.ne.s32.totalorder %s41, %s57
    %p59 = scmp.eq.s32.totalorder %s33, 0
    %p60 = por %p58, %p59
    %s62 = sadd.s32 %s61, 1
    %p65 = scmp.eq.s32.totalorder %s27, 1
    %p66 = scmp.ne.s32.totalorder %s61, %s63
    %p67 = scmp.eq.s32.totalorder %s27, 0
    %p68 = por %p66, %p67
    %p69 = scmp.ne.s32.totalorder %s61, %s63
    %p70 = scmp.eq.s32.totalorder %s32, 1
    %p71 = por %p69, %p70
    %p72 = scmp.ne.s32.totalorder %s63, %s64
    %p73 = scmp.eq.s32.totalorder %s32, 0
    %p74 = por %p72, %p73
    %p75 = scmp.ne.s32.totalorder %s63, %s64
    %p76 = scmp.eq.s32.totalorder %s33, 1
    %p77 = por %p75, %p76
    %p79 = scmp.ne.s32.totalorder %s64, %s78
    %p80 = scmp.eq.s32.totalorder %s33, 0
    %p81 = por %p79, %p80
    %s83 = sadd.s32 %s82, 1
    %p86 = scmp.eq.s32.totalorder %s27, 1
    %p87 = scmp.ne.s32.totalorder %s82, %s84
    %p88 = scmp.eq.s32.totalorder %s27, 0
    %p89 = por %p87, %p88
    %p90 = scmp.ne.s32.totalorder %s82, %s84
    %p91 = scmp.eq.s32.totalorder %s32, 1
    %p92 = por %p90, %p91
    %p93 = scmp.ne.s32.totalorder %s84, %s85
    %p94 = scmp.eq.s32.totalorder %s32, 0
    %p95 = por %p93, %p94
    %p96 = scmp.ne.s32.totalorder %s84, %s85
    %p97 = scmp.eq.s32.totalorder %s33, 1
    %p98 = por %p96, %p97
    %p100 = scmp.ne.s32.totalorder %s85, %s99
    %p101 = scmp.eq.s32.totalorder %s33, 0
    %p102 = por %p100, %p101
    %s104 = sadd.s32 %s103, 1
    %p107 = scmp.eq.s32.totalorder %s27, 1
    %p108 = scmp.ne.s32.totalorder %s103, %s105
    %p109 = scmp.eq.s32.totalorder %s27, 0
    %p110 = por %p108, %p109
    %p111 = scmp.ne.s32.totalorder %s103, %s105
    %p112 = scmp.eq.s32.totalorder %s32, 1
    %p113 = por %p111, %p112
    %p114 = scmp.ne.s32.totalorder %s105, %s106
    %p115 = scmp.eq.s32.totalorder %s32, 0
    %p116 = por %p114, %p115
    %p117 = scmp.ne.s32.totalorder %s105, %s106
    %p118 = scmp.eq.s32.totalorder %s33, 1
    %p119 = por %p117, %p118
    %p121 = scmp.ne.s32.totalorder %s106, %s120
    %p122 = scmp.eq.s32.totalorder %s33, 0
    %p123 = por %p121, %p122
    %s125 = sadd.s32 %s124, 1
    %p128 = scmp.eq.s32.totalorder %s27, 1
    %p129 = scmp.ne.s32.totalorder %s124, %s126
    %p130 = scmp.eq.s32.totalorder %s27, 0
    %p131 = por %p129, %p130
    %p132 = scmp.ne.s32.totalorder %s124, %s126
    %p133 = scmp.eq.s32.totalorder %s32, 1
    %p134 = por %p132, %p133
    %p135 = scmp.ne.s32.totalorder %s126, %s127
    %p136 = scmp.eq.s32.totalorder %s32, 0
    %p137 = por %p135, %p136
    %p138 = scmp.ne.s32.totalorder %s126, %s127
    %p139 = scmp.eq.s32.totalorder %s33, 1
    %p140 = por %p138, %p139
    %p142 = scmp.ne.s32.totalorder %s127, %s141
    %p143 = scmp.eq.s32.totalorder %s33, 0
    %p144 = por %p142, %p143
    %s146 = sadd.s32 %s145, 1
    %p149 = scmp.eq.s32.totalorder %s27, 1
    %p150 = scmp.ne.s32.totalorder %s145, %s147
    %p151 = scmp.eq.s32.totalorder %s27, 0
    %p152 = por %p150, %p151
    %p153 = scmp.ne.s32.totalorder %s145, %s147
    %p154 = scmp.eq.s32.totalorder %s32, 1
    %p155 = por %p153, %p154
    %p156 = scmp.ne.s32.totalorder %s147, %s148
    %p157 = scmp.eq.s32.totalorder %s32, 0
    %p158 = por %p156, %p157
    %p159 = scmp.ne.s32.totalorder %s147, %s148
    %p160 = scmp.eq.s32.totalorder %s33, 1
    %p161 = por %p159, %p160
    %p163 = scmp.ne.s32.totalorder %s148, %s162
    %p164 = scmp.eq.s32.totalorder %s33, 0
    %p165 = por %p163, %p164
    %s167 = sadd.s32 %s166, 1
    %p170 = scmp.eq.s32.totalorder %s27, 1
    %p171 = scmp.ne.s32.totalorder %s166, %s168
    %p172 = scmp.eq.s32.totalorder %s27, 0
    %p173 = por %p171, %p172
    %p174 = scmp.ne.s32.totalorder %s166, %s168
    %p175 = scmp.eq.s32.totalorder %s32, 1
    %p176 = por %p174, %p175
    %p177 = scmp.ne.s32.totalorder %s168, %s169
    %p178 = scmp.eq.s32.totalorder %s32, 0
    %p179 = por %p177, %p178
    %p180 = scmp.ne.s32.totalorder %s168, %s169
    %p181 = scmp.eq.s32.totalorder %s33, 1
    %p182 = por %p180, %p181
    %p184 = scmp.ne.s32.totalorder %s169, %s183
    %p185 = scmp.eq.s32.totalorder %s33, 0
    %p186 = por %p184, %p185
    %s188 = sadd.s32 %s187, 1
    %p191 = scmp.eq.s32.totalorder %s27, 1
    %p192 = scmp.ne.s32.totalorder %s187, %s189
    %p193 = scmp.eq.s32.totalorder %s27, 0
    %p194 = por %p192, %p193
    %p195 = scmp.ne.s32.totalorder %s187, %s189
    %p196 = scmp.eq.s32.totalorder %s32, 1
    %p197 = por %p195, %p196
    %p198 = scmp.ne.s32.totalorder %s189, %s190
    %p199 = scmp.eq.s32.totalorder %s32, 0
    %p200 = por %p198, %p199
    %p201 = scmp.ne.s32.totalorder %s189, %s190
    %p202 = scmp.eq.s32.totalorder %s33, 1
    %p203 = por %p201, %p202
    %p205 = scmp.ne.s32.totalorder %s190, %s204
    %p206 = scmp.eq.s32.totalorder %s33, 0
    %p207 = por %p205, %p206
    %s209 = sadd.s32 %s208, 1
    %p212 = scmp.eq.s32.totalorder %s27, 1
    %p213 = scmp.ne.s32.totalorder %s208, %s210
    %p214 = scmp.eq.s32.totalorder %s27, 0
    %p215 = por %p213, %p214
    %p216 = scmp.ne.s32.totalorder %s208, %s210
    %p217 = scmp.eq.s32.totalorder %s32, 1
    %p218 = por %p216, %p217
    %p219 = scmp.ne.s32.totalorder %s210, %s211
    %p220 = scmp.eq.s32.totalorder %s32, 0
    %p221 = por %p219, %p220
    %p222 = scmp.ne.s32.totalorder %s210, %s211
    %p223 = scmp.eq.s32.totalorder %s33, 1
    %p224 = por %p222, %p223
    %p226 = scmp.ne.s32.totalorder %s211, %s225
    %p227 = scmp.eq.s32.totalorder %s33, 0
    %p228 = por %p226, %p227
    %s230 = sadd.s32 %s229, 1
    %p233 = scmp.eq.s32.totalorder %s27, 1
    %p234 = scmp.ne.s32.totalorder %s229, %s231
    %p235 = scmp.eq.s32.totalorder %s27, 0
    %p236 = por %p234, %p235
    %p237 = scmp.ne.s32.totalorder %s229, %s231
    %p238 = scmp.eq.s32.totalorder %s32, 1
    %p239 = por %p237, %p238
    %p240 = scmp.ne.s32.totalorder %s231, %s232
    %p241 = scmp.eq.s32.totalorder %s32, 0
    %p242 = por %p240, %p241
    %p243 = scmp.ne.s32.totalorder %s231, %s232
    %p244 = scmp.eq.s32.totalorder %s33, 1
    %p245 = por %p243, %p244
    %p247 = scmp.ne.s32.totalorder %s232, %s246
    %p248 = scmp.eq.s32.totalorder %s33, 0
    %p249 = por %p247, %p248
    %s251 = sadd.s32 %s250, 1
    %p254 = scmp.eq.s32.totalorder %s27, 1
    %p255 = scmp.ne.s32.totalorder %s250, %s252
    %p256 = scmp.eq.s32.totalorder %s27, 0
    %p257 = por %p255, %p256
    %p258 = scmp.ne.s32.totalorder %s250, %s252
    %p259 = scmp.eq.s32.totalorder %s32, 1
    %p260 = por %p258, %p259
    %p261 = scmp.ne.s32.totalorder %s252, %s253
    %p262 = scmp.eq.s32.totalorder %s32, 0
    %p263 = por %p261, %p262
    %p264 = scmp.ne.s32.totalorder %s252, %s253
    %p265 = scmp.eq.s32.totalorder %s33, 1
    %p266 = por %p264, %p265
    %p268 = scmp.ne.s32.totalorder %s253, %s267
    %p269 = scmp.eq.s32.totalorder %s33, 0
    %p270 = por %p268, %p269
    %s272 = sadd.s32 %s271, 1
    %p275 = scmp.eq.s32.totalorder %s27, 1
    %p276 = scmp.ne.s32.totalorder %s271, %s273
    %p277 = scmp.eq.s32.totalorder %s27, 0
    %p278 = por %p276, %p277
    %p279 = scmp.ne.s32.totalorder %s271, %s273
    %p280 = scmp.eq.s32.totalorder %s32, 1
    %p281 = por %p279, %p280
    %p282 = scmp.ne.s32.totalorder %s273, %s274
    %p283 = scmp.eq.s32.totalorder %s32, 0
    %p284 = por %p282, %p283
    %p285 = scmp.ne.s32.totalorder %s273, %s274
    %p286 = scmp.eq.s32.totalorder %s33, 1
    %p287 = por %p285, %p286
    %p289 = scmp.ne.s32.totalorder %s274, %s288
    %p290 = scmp.eq.s32.totalorder %s33, 0
    %p291 = por %p289, %p290
    %s293 = sadd.s32 %s292, 1
    %p296 = scmp.eq.s32.totalorder %s27, 1
    %p297 = scmp.ne.s32.totalorder %s292, %s294
    %p298 = scmp.eq.s32.totalorder %s27, 0
    %p299 = por %p297, %p298
    %p300 = scmp.ne.s32.totalorder %s292, %s294
    %p301 = scmp.eq.s32.totalorder %s32, 1
    %p302 = por %p300, %p301
    %p303 = scmp.ne.s32.totalorder %s294, %s295
    %p304 = scmp.eq.s32.totalorder %s32, 0
    %p305 = por %p303, %p304
    %p306 = scmp.ne.s32.totalorder %s294, %s295
    %p307 = scmp.eq.s32.totalorder %s33, 1
    %p308 = por %p306, %p307
    %p310 = scmp.ne.s32.totalorder %s295, %s309
    %p311 = scmp.eq.s32.totalorder %s33, 0
    %p312 = por %p310, %p311
    %s314 = sadd.s32 %s313, 1
    %p317 = scmp.eq.s32.totalorder %s27, 1
    %p318 = scmp.ne.s32.totalorder %s313, %s315
    %p319 = scmp.eq.s32.totalorder %s27, 0
    %p320 = por %p318, %p319
    %p321 = scmp.ne.s32.totalorder %s313, %s315
    %p322 = scmp.eq.s32.totalorder %s32, 1
    %p323 = por %p321, %p322
    %p324 = scmp.ne.s32.totalorder %s315, %s316
    %p325 = scmp.eq.s32.totalorder %s32, 0
    %p326 = por %p324, %p325
    %p327 = scmp.ne.s32.totalorder %s315, %s316
    %p328 = scmp.eq.s32.totalorder %s33, 1
    %p329 = por %p327, %p328
    %p331 = scmp.ne.s32.totalorder %s316, %s330
    %p332 = scmp.eq.s32.totalorder %s33, 0
    %p333 = por %p331, %p332
    %s335 = sadd.s32 %s334, 1
    %p338 = scmp.eq.s32.totalorder %s27, 1
    %p339 = scmp.ne.s32.totalorder %s334, %s336
    %p340 = scmp.eq.s32.totalorder %s27, 0
    %p341 = por %p339, %p340
    %p342 = scmp.ne.s32.totalorder %s334, %s336
    %p343 = scmp.eq.s32.totalorder %s32, 1
    %p344 = por %p342, %p343
    %p345 = scmp.ne.s32.totalorder %s336, %s337
    %p346 = scmp.eq.s32.totalorder %s32, 0
    %p347 = por %p345, %p346
    %p348 = scmp.ne.s32.totalorder %s336, %s337
    %p349 = scmp.eq.s32.totalorder %s33, 1
    %p350 = por %p348, %p349
    %p352 = scmp.ne.s32.totalorder %s337, %s351
    %p353 = scmp.eq.s32.totalorder %s33, 0
    %p354 = por %p352, %p353
    %s356 = sadd.s32 %s355, 1
    %p359 = scmp.eq.s32.totalorder %s27, 1
    %p360 = scmp.ne.s32.totalorder %s355, %s357
    %p361 = scmp.eq.s32.totalorder %s27, 0
    %p362 = por %p360, %p361
    %p363 = scmp.ne.s32.totalorder %s355, %s357
    %p364 = scmp.eq.s32.totalorder %s32, 1
    %p365 = por %p363, %p364
    %p366 = scmp.ne.s32.totalorder %s357, %s358
    %p367 = scmp.eq.s32.totalorder %s32, 0
    %p368 = por %p366, %p367
    %p369 = scmp.ne.s32.totalorder %s357, %s358
    %p370 = scmp.eq.s32.totalorder %s33, 1
    %p371 = por %p369, %p370
    %p373 = scmp.ne.s32.totalorder %s358, %s372
    %p374 = scmp.eq.s32.totalorder %s33, 0
    %p375 = por %p373, %p374
    %s377 = sadd.s32 %s376, 1
    %p380 = scmp.eq.s32.totalorder %s27, 1
    %p381 = scmp.ne.s32.totalorder %s376, %s378
    %p382 = scmp.eq.s32.totalorder %s27, 0
    %p383 = por %p381, %p382
    %p384 = scmp.ne.s32.totalorder %s376, %s378
    %p385 = scmp.eq.s32.totalorder %s32, 1
    %p386 = por %p384, %p385
    %p387 = scmp.ne.s32.totalorder %s378, %s379
    %p388 = scmp.eq.s32.totalorder %s32, 0
    %p389 = por %p387, %p388
    %p390 = scmp.ne.s32.totalorder %s378, %s379
    %p391 = scmp.eq.s32.totalorder %s33, 1
    %p392 = por %p390, %p391
    %p394 = scmp.ne.s32.totalorder %s379, %s393
    %p395 = scmp.eq.s32.totalorder %s33, 0
    %p396 = por %p394, %p395
    %s398 = sadd.s32 %s397, 1
    %p401 = scmp.eq.s32.totalorder %s27, 1
    %p402 = scmp.ne.s32.totalorder %s397, %s399
    %p403 = scmp.eq.s32.totalorder %s27, 0
    %p404 = por %p402, %p403
    %p405 = scmp.ne.s32.totalorder %s397, %s399
    %p406 = scmp.eq.s32.totalorder %s32, 1
    %p407 = por %p405, %p406
    %p408 = scmp.ne.s32.totalorder %s399, %s400
    %p409 = scmp.eq.s32.totalorder %s32, 0
    %p410 = por %p408, %p409
    %p411 = scmp.ne.s32.totalorder %s399, %s400
    %p412 = scmp.eq.s32.totalorder %s33, 1
    %p413 = por %p411, %p412
    %p415 = scmp.ne.s32.totalorder %s400, %s414
    %p416 = scmp.eq.s32.totalorder %s33, 0
    %p417 = por %p415, %p416
    %s419 = sadd.s32 %s418, 1
    %p422 = scmp.eq.s32.totalorder %s27, 1
    %p423 = scmp.ne.s32.totalorder %s418, %s420
    %p424 = scmp.eq.s32.totalorder %s27, 0
    %p425 = por %p423, %p424
    %p426 = scmp.ne.s32.totalorder %s418, %s420
    %p427 = scmp.eq.s32.totalorder %s32, 1
    %p428 = por %p426, %p427
    %p429 = scmp.ne.s32.totalorder %s420, %s421
    %p430 = scmp.eq.s32.totalorder %s32, 0
    %p431 = por %p429, %p430
    %p432 = scmp.ne.s32.totalorder %s420, %s421
    %p433 = scmp.eq.s32.totalorder %s33, 1
    %p434 = por %p432, %p433
    %p436 = scmp.ne.s32.totalorder %s421, %s435
    %p437 = scmp.eq.s32.totalorder %s33, 0
    %p438 = por %p436, %p437
    %s440 = sadd.s32 %s439, 1
    %p443 = scmp.eq.s32.totalorder %s27, 1
    %p444 = scmp.ne.s32.totalorder %s439, %s441
    %p445 = scmp.eq.s32.totalorder %s27, 0
    %p446 = por %p444, %p445
    %p447 = scmp.ne.s32.totalorder %s439, %s441
    %p448 = scmp.eq.s32.totalorder %s32, 1
    %p449 = por %p447, %p448
    %p450 = scmp.ne.s32.totalorder %s441, %s442
    %p451 = scmp.eq.s32.totalorder %s32, 0
    %p452 = por %p450, %p451
    %p453 = scmp.ne.s32.totalorder %s441, %s442
    %p454 = scmp.eq.s32.totalorder %s33, 1
    %p455 = por %p453, %p454
    %p457 = scmp.ne.s32.totalorder %s442, %s456
    %p458 = scmp.eq.s32.totalorder %s33, 0
    %p459 = por %p457, %p458
    %s461 = sadd.s32 %s460, 1
    %p464 = scmp.eq.s32.totalorder %s27, 1
    %p465 = scmp.ne.s32.totalorder %s460, %s462
    %p466 = scmp.eq.s32.totalorder %s27, 0
    %p467 = por %p465, %p466
    %p468 = scmp.ne.s32.totalorder %s460, %s462
    %p469 = scmp.eq.s32.totalorder %s32, 1
    %p470 = por %p468, %p469
    %p471 = scmp.ne.s32.totalorder %s462, %s463
    %p472 = scmp.eq.s32.totalorder %s32, 0
    %p473 = por %p471, %p472
    %p474 = scmp.ne.s32.totalorder %s462, %s463
    %p475 = scmp.eq.s32.totalorder %s33, 1
    %p476 = por %p474, %p475
    %p478 = scmp.ne.s32.totalorder %s463, %s477
    %p479 = scmp.eq.s32.totalorder %s33, 0
    %p480 = por %p478, %p479
    %s481 = ssub.s32 %s27, %s34
    %p482 = scmp.eq.s32.totalorder %s481, 0
    %s484 = sadd.s32 %s483, 1
    %s485 = scalar_select %p482, %s483, %s484
    %p488 = pneg %p482
    %p489 = scmp.eq.s32.totalorder %s27, 1
    %p490 = por %p488, %p489
    %p491 = scmp.ne.s32.totalorder %s483, %s486
    %p492 = scmp.eq.s32.totalorder %s27, 0
    %p493 = por %p491, %p492
    %p494 = scmp.ne.s32.totalorder %s483, %s486
    %p495 = scmp.eq.s32.totalorder %s32, 1
    %p496 = por %p494, %p495
    %p497 = scmp.ne.s32.totalorder %s486, %s487
    %p498 = scmp.eq.s32.totalorder %s32, 0
    %p499 = por %p497, %p498
    %p500 = scmp.ne.s32.totalorder %s486, %s487
    %p501 = scmp.eq.s32.totalorder %s33, 1
    %p502 = por %p500, %p501
    %p504 = scmp.ne.s32.totalorder %s487, %s503
    %p505 = scmp.eq.s32.totalorder %s33, 0
    %p506 = por %p504, %p505
    %p507 = scmp.le.s32.totalorder 1, %s27
    %p508 = scmp.lt.s32.totalorder %s27, 3
    %p509 = pnand %p507, %p508
    %p510 = pneg %p509
    // Predicated region
    $region9: #{handler_forward.1} parent=5 // pred_check
      _
    $region10: #{handler_forward.1} parent=5 // pred_check_branch
      %512 = sbr.rel (%p509) target = $region12
    $region11: #{handler_forward.1} parent=5 // pred_region
      %s513 = ssub.s32 %s27, 1
      // Predicated region
      $region13: #{handler_forward.1} parent=11 // pred_check
        %p514 = pneg %p74
      $region14: #{handler_forward.1} parent=11 // pred_check_branch
        %516 = sbr.rel (%p514) target = $region16
      $region15: #{handler_forward.1} parent=11 // pred_region
        _
      $region16: #{handler_forward.1} parent=11 // pred_fallthru
        _
      // Predicated region
      $region17: #{handler_forward.1} parent=11 // pred_check
        %p517 = pneg %p95
      $region18: #{handler_forward.1} parent=11 // pred_check_branch
        %519 = sbr.rel (%p517) target = $region20
      $region19: #{handler_forward.1} parent=11 // pred_region
        _
      $region20: #{handler_forward.1} parent=11 // pred_fallthru
        _
      // Predicated region
      $region21: #{handler_forward.1} parent=11 // pred_check
        %p520 = pneg %p116
      $region22: #{handler_forward.1} parent=11 // pred_check_branch
        %522 = sbr.rel (%p520) target = $region24
      $region23: #{handler_forward.1} parent=11 // pred_region
        _
      $region24: #{handler_forward.1} parent=11 // pred_fallthru
        _
      // Predicated region
      $region25: #{handler_forward.1} parent=11 // pred_check
        %p523 = pneg %p137
      $region26: #{handler_forward.1} parent=11 // pred_check_branch
        %525 = sbr.rel (%p523) target = $region28
      $region27: #{handler_forward.1} parent=11 // pred_region
        _
      $region28: #{handler_forward.1} parent=11 // pred_fallthru
        _
      // Predicated region
      $region29: #{handler_forward.1} parent=11 // pred_check
        %p526 = pneg %p158
      $region30: #{handler_forward.1} parent=11 // pred_check_branch
        %528 = sbr.rel (%p526) target = $region32
      $region31: #{handler_forward.1} parent=11 // pred_region
        _
      $region32: #{handler_forward.1} parent=11 // pred_fallthru
        _
      // Predicated region
      $region33: #{handler_forward.1} parent=11 // pred_check
        %p529 = pneg %p179
      $region34: #{handler_forward.1} parent=11 // pred_check_branch
        %531 = sbr.rel (%p529) target = $region36
      $region35: #{handler_forward.1} parent=11 // pred_region
        _
      $region36: #{handler_forward.1} parent=11 // pred_fallthru
        _
      // Predicated region
      $region37: #{handler_forward.1} parent=11 // pred_check
        %p532 = pneg %p200
      $region38: #{handler_forward.1} parent=11 // pred_check_branch
        %534 = sbr.rel (%p532) target = $region40
      $region39: #{handler_forward.1} parent=11 // pred_region
        _
      $region40: #{handler_forward.1} parent=11 // pred_fallthru
        _
      // Predicated region
      $region41: #{handler_forward.1} parent=11 // pred_check
        %p535 = pneg %p221
      $region42: #{handler_forward.1} parent=11 // pred_check_branch
        %537 = sbr.rel (%p535) target = $region44
      $region43: #{handler_forward.1} parent=11 // pred_region
        _
      $region44: #{handler_forward.1} parent=11 // pred_fallthru
        _
      // Predicated region
      $region45: #{handler_forward.1} parent=11 // pred_check
        %p538 = pneg %p242
      $region46: #{handler_forward.1} parent=11 // pred_check_branch
        %540 = sbr.rel (%p538) target = $region48
      $region47: #{handler_forward.1} parent=11 // pred_region
        _
      $region48: #{handler_forward.1} parent=11 // pred_fallthru
        _
      // Predicated region
      $region49: #{handler_forward.1} parent=11 // pred_check
        %p541 = pneg %p263
      $region50: #{handler_forward.1} parent=11 // pred_check_branch
        %543 = sbr.rel (%p541) target = $region52
      $region51: #{handler_forward.1} parent=11 // pred_region
        _
      $region52: #{handler_forward.1} parent=11 // pred_fallthru
        _
      // Predicated region
      $region53: #{handler_forward.1} parent=11 // pred_check
        %p544 = pneg %p284
      $region54: #{handler_forward.1} parent=11 // pred_check_branch
        %546 = sbr.rel (%p544) target = $region56
      $region55: #{handler_forward.1} parent=11 // pred_region
        _
      $region56: #{handler_forward.1} parent=11 // pred_fallthru
        _
      // Predicated region
      $region57: #{handler_forward.1} parent=11 // pred_check
        %p547 = pneg %p305
      $region58: #{handler_forward.1} parent=11 // pred_check_branch
        %549 = sbr.rel (%p547) target = $region60
      $region59: #{handler_forward.1} parent=11 // pred_region
        _
      $region60: #{handler_forward.1} parent=11 // pred_fallthru
        _
      // Predicated region
      $region61: #{handler_forward.1} parent=11 // pred_check
        %p550 = pneg %p326
      $region62: #{handler_forward.1} parent=11 // pred_check_branch
        %552 = sbr.rel (%p550) target = $region64
      $region63: #{handler_forward.1} parent=11 // pred_region
        _
      $region64: #{handler_forward.1} parent=11 // pred_fallthru
        _
      // Predicated region
      $region65: #{handler_forward.1} parent=11 // pred_check
        %p553 = pneg %p347
      $region66: #{handler_forward.1} parent=11 // pred_check_branch
        %555 = sbr.rel (%p553) target = $region68
      $region67: #{handler_forward.1} parent=11 // pred_region
        _
      $region68: #{handler_forward.1} parent=11 // pred_fallthru
        _
      // Predicated region
      $region69: #{handler_forward.1} parent=11 // pred_check
        %p556 = pneg %p368
      $region70: #{handler_forward.1} parent=11 // pred_check_branch
        %558 = sbr.rel (%p556) target = $region72
      $region71: #{handler_forward.1} parent=11 // pred_region
        _
      $region72: #{handler_forward.1} parent=11 // pred_fallthru
        _
      // Predicated region
      $region73: #{handler_forward.1} parent=11 // pred_check
        %p559 = pneg %p389
      $region74: #{handler_forward.1} parent=11 // pred_check_branch
        %561 = sbr.rel (%p559) target = $region76
      $region75: #{handler_forward.1} parent=11 // pred_region
        _
      $region76: #{handler_forward.1} parent=11 // pred_fallthru
        _
      // Predicated region
      $region77: #{handler_forward.1} parent=11 // pred_check
        %p562 = pneg %p410
      $region78: #{handler_forward.1} parent=11 // pred_check_branch
        %564 = sbr.rel (%p562) target = $region80
      $region79: #{handler_forward.1} parent=11 // pred_region
        _
      $region80: #{handler_forward.1} parent=11 // pred_fallthru
        _
      // Predicated region
      $region81: #{handler_forward.1} parent=11 // pred_check
        %p565 = pneg %p431
      $region82: #{handler_forward.1} parent=11 // pred_check_branch
        %567 = sbr.rel (%p565) target = $region84
      $region83: #{handler_forward.1} parent=11 // pred_region
        _
      $region84: #{handler_forward.1} parent=11 // pred_fallthru
        _
      // Predicated region
      $region85: #{handler_forward.1} parent=11 // pred_check
        %p568 = pneg %p452
      $region86: #{handler_forward.1} parent=11 // pred_check_branch
        %570 = sbr.rel (%p568) target = $region88
      $region87: #{handler_forward.1} parent=11 // pred_region
        _
      $region88: #{handler_forward.1} parent=11 // pred_fallthru
        _
      // Predicated region
      $region89: #{handler_forward.1} parent=11 // pred_check
        %p571 = pneg %p473
      $region90: #{handler_forward.1} parent=11 // pred_check_branch
        %573 = sbr.rel (%p571) target = $region92
      $region91: #{handler_forward.1} parent=11 // pred_region
        _
      $region92: #{handler_forward.1} parent=11 // pred_fallthru
        _
    $region12: #{handler_forward.1} parent=5 // pred_fallthru
      _
    %p574 = scmp.lt.s32.totalorder %s27, 2
    // Predicated region
    $region93: #{handler_forward.1} parent=5 // pred_check
      %p575 = pneg %p574
    $region94: #{handler_forward.1} parent=5 // pred_check_branch
      %577 = sbr.rel (%p575) target = $region96
    $region95: #{handler_forward.1} parent=5 // pred_region
      // Predicated region
      $region97: #{handler_forward.1} parent=95 // pred_check
        %p578 = pneg %p47
      $region98: #{handler_forward.1} parent=95 // pred_check_branch
        %580 = sbr.rel (%p578) target = $region100
      $region99: #{handler_forward.1} parent=95 // pred_region
        %p581 = scmp.lt.s32.totalorder %s27, 1
        %s582 = scalar_select %p581, %s27, 1
        %s583 = smul.addr %s582, 2
        %s584 = smul.addr %s583, 8
        %s585 = scalar_lea.vmem %s0, %s584
      $region100: #{handler_forward.1} parent=95 // pred_fallthru
        _
    $region96: #{handler_forward.1} parent=5 // pred_fallthru
      _
    %p586 = scmp.le.s32.totalorder 1, %s27
    %p587 = scmp.lt.s32.totalorder %s27, 3
    %p588 = pnand %p586, %p587
    %p589 = pneg %p588
    // Predicated region
    $region101: #{handler_forward.1} parent=5 // pred_check
      _
    $region102: #{handler_forward.1} parent=5 // pred_check_branch
      %591 = sbr.rel (%p588) target = $region104
    $region103: #{handler_forward.1} parent=5 // pred_region
      %s592 = ssub.s32 %s27, 1
      %p593 = scmp.lt.s32.totalorder %s32, 1
      %s594 = scalar_select %p593, %s32, 1
      %s595 = smul.addr %s594, 2
      %s596 = smul.addr %s595, 8
      %s597 = scalar_lea.vmem %s0, %s596
      %p598 = pneg %p53
      %p599 = pneg %p50
      %p600 = pneg %p74
      %p601 = pneg %p71
      %p602 = pneg %p95
      %p603 = pneg %p92
      %p604 = pneg %p116
      %p605 = pneg %p113
      %p606 = pneg %p137
      %p607 = pneg %p134
      %p608 = pneg %p158
      %p609 = pneg %p155
      %p610 = pneg %p179
      %p611 = pneg %p176
      %p612 = pneg %p200
      %p613 = pneg %p197
      %p614 = pneg %p221
      %p615 = pneg %p218
      %p616 = pneg %p242
      %p617 = pneg %p239
      %p618 = pneg %p263
      %p619 = pneg %p260
      %p620 = pneg %p284
      %p621 = pneg %p281
      %p622 = pneg %p305
      %p623 = pneg %p302
      %p624 = pneg %p326
      %p625 = pneg %p323
      %p626 = pneg %p347
      %p627 = pneg %p344
      %p628 = pneg %p368
      %p629 = pneg %p365
      %p630 = pneg %p389
      %p631 = pneg %p386
      %p632 = pneg %p410
      %p633 = pneg %p407
      %p634 = pneg %p431
      %p635 = pneg %p428
      %p636 = pneg %p452
      %p637 = pneg %p449
      %p638 = pneg %p473
      %p639 = pneg %p470
      %p640 = pneg %p499
      %p641 = pneg %p496
      %p642 = scmp.lt.s32.totalorder %s32, 1
      %s643 = scalar_select %p642, %s32, 1
      %s644 = smul.addr %s643, 2
      %s645 = smul.addr %s644, 8
      %s646 = scalar_lea.vmem %s21, %s645
      %p647 = scmp.lt.s32.totalorder %s32, 1
      %s648 = scalar_select %p647, %s32, 1
      %s649 = smul.addr %s648, 2
      %s650 = smul.addr %s649, 8
      %s651 = scalar_lea.vmem %s0, %s650
      %p652 = scmp.lt.s32.totalorder %s32, 1
      %s653 = scalar_select %p652, %s32, 1
      %s654 = smul.addr %s653, 2
      %s655 = smul.addr %s654, 8
      %s656 = scalar_lea.vmem %s21, %s655
      %v658 = vlaneseq
      %v659 = vshrl.u32 %v658, 7
      %v660 = vadd.s32 %v659, 8
      %vm661 = vcmp.gt.s32.totalorder %v659, 0
      %vm662 = vcmp.gt.s32.totalorder %v660, 0
      %vm663 = vcmp.lt.s32.totalorder %v659, 15
      %vm664 = vcmp.lt.s32.totalorder %v660, 15
      %v665 = vld [vmem:[%s651] sm:$0xff]
      %v666 = vld [vmem:[%s651 + $0x8] sm:$0xff]
      %v667 = vrot.slane %v665, 7
      %v668 = vrot.slane %v666, 7
      %vm669 = vcmp.lt.s32.totalorder %v659, 1
      %v670 = vsel %vm669, %v667, %v668
      %v671 = vsel %vm669, %v668, %v667
      %v672 = vsel %vm661, 1, 0
      %v673 = vsel %vm662, 1, 0
      %vm674 = vcmp.eq.s32.totalorder %v672, 1
      %vm675 = vcmp.eq.s32.totalorder %v673, 1
      %v676 = vsel %vm674, %v671, 0.0
      %v677 = vsel %vm675, %v670, 0.0
      %v678 = vrot.slane %v665, 1
      %v679 = vrot.slane %v666, 1
      %vm680 = vcmp.lt.s32.totalorder %v659, 7
      %v681 = vsel %vm680, %v678, %v679
      %v682 = vsel %vm680, %v679, %v678
      %v683 = vsel %vm663, 1, 0
      %v684 = vsel %vm664, 1, 0
      %vm685 = vcmp.eq.s32.totalorder %v683, 1
      %vm686 = vcmp.eq.s32.totalorder %v684, 1
      %v687 = vsel %vm685, %v681, 0.0
      %v688 = vsel %vm686, %v682, 0.0
      %v689 = vpack.c.bf16 %v677, %v676
      %v690 = vld [vmem:[%s1] sm:$0x7]
      %v691 = vpack.c.bf16 %v666, %v665
      %s692 = scalar_lea.vmem %s1, 4
      %v693 = vld [vmem:[%s692] sm:$0x7]
      %vm694 = vcmask 48128
      %v696 = vsel %vm694, %v691, 0
      %vm698 = vcmask 1042432
      %v700 = vsel %vm698, %v693, 0
      %702 = vmatprep.subr.bf16.mxu0 0
      %703 = vmatpush1.bf16.msra.mxu0 %v700
      %704 = vmatprep.subr.bf16.mxu0 0
      %705 = vmatpush1.bf16.msra.mxu0 0
      %706 = vmatprep.subr.bf16.mxu0 0
      %707 = vmatpush1.bf16.msra.mxu0 0
      %708 = vmatprep.subr.bf16.mxu0 0
      %709 = vmatpush1.bf16.msra.mxu0 0
      %710 = vmatprep.subr.bf16.mxu0 0
      %711 = vmatpush1.bf16.msra.mxu0 0
      %712 = vmatprep.subr.bf16.mxu0 0
      %713 = vmatpush1.bf16.msra.mxu0 0
      %714 = vmatprep.subr.bf16.mxu0 0
      %715 = vmatpush1.bf16.msra.mxu0 0
      %716 = vmatprep.subr.bf16.mxu0 0
      %717 = vmatpush1.bf16.msra.mxu0 0
      %718 = vmatprep.subr.bf16.mxu0 0
      %719 = vmatpush1.bf16.msra.mxu0 0
      %720 = vmatprep.subr.bf16.mxu0 0
      %721 = vmatpush1.bf16.msra.mxu0 0
      %722 = vmatprep.subr.bf16.mxu0 0
      %723 = vmatpush1.bf16.msra.mxu0 0
      %724 = vmatprep.subr.bf16.mxu0 0
      %725 = vmatpush1.bf16.msra.mxu0 0
      %726 = vmatprep.subr.bf16.mxu0 0
      %727 = vmatpush1.bf16.msra.mxu0 0
      %728 = vmatprep.subr.bf16.mxu0 0
      %729 = vmatpush1.bf16.msra.mxu0 0
      %730 = vmatprep.subr.bf16.mxu0 0
      %731 = vmatpush1.bf16.msra.mxu0 0
      %732 = vmatprep.subr.bf16.mxu0 0
      %733 = vmatpush1.bf16.msra.mxu0 0
      %734 = vmatprep.mubr.bf16.mxu0 0
      %735 = vmatmul.mubr.bf16.gmra.mrb[0].mxu0 %v696
      %v736 = vpop.f32.mrb[0].mxu0
      %v737 = vadd.f32 0.0, %v736
      %v738 = vpop.f32.mrb[0].mxu0
      %v739 = vpop.f32.mrb[0].mxu0
      %v740 = vadd.f32 0.0, %v739
      %v741 = vpop.f32.mrb[0].mxu0
      %742 = vdwg.mxu0
      %v744 = vsel %vm694, %v689, 0
      %v747 = vsel %vm698, %v690, 0
      %749 = vmatprep.subr.bf16.mxu0 0
      %750 = vmatpush1.bf16.msra.mxu0 %v747
      %751 = vmatprep.subr.bf16.mxu0 0
      %752 = vmatpush1.bf16.msra.mxu0 0
      %753 = vmatprep.subr.bf16.mxu0 0
      %754 = vmatpush1.bf16.msra.mxu0 0
      %755 = vmatprep.subr.bf16.mxu0 0
      %756 = vmatpush1.bf16.msra.mxu0 0
      %757 = vmatprep.subr.bf16.mxu0 0
      %758 = vmatpush1.bf16.msra.mxu0 0
      %759 = vmatprep.subr.bf16.mxu0 0
      %760 = vmatpush1.bf16.msra.mxu0 0
      %761 = vmatprep.subr.bf16.mxu0 0
      %762 = vmatpush1.bf16.msra.mxu0 0
      %763 = vmatprep.subr.bf16.mxu0 0
      %764 = vmatpush1.bf16.msra.mxu0 0
      %765 = vmatprep.subr.bf16.mxu0 0
      %766 = vmatpush1.bf16.msra.mxu0 0
      %767 = vmatprep.subr.bf16.mxu0 0
      %768 = vmatpush1.bf16.msra.mxu0 0
      %769 = vmatprep.subr.bf16.mxu0 0
      %770 = vmatpush1.bf16.msra.mxu0 0
      %771 = vmatprep.subr.bf16.mxu0 0
      %772 = vmatpush1.bf16.msra.mxu0 0
      %773 = vmatprep.subr.bf16.mxu0 0
      %774 = vmatpush1.bf16.msra.mxu0 0
      %775 = vmatprep.subr.bf16.mxu0 0
      %776 = vmatpush1.bf16.msra.mxu0 0
      %777 = vmatprep.subr.bf16.mxu0 0
      %778 = vmatpush1.bf16.msra.mxu0 0
      %779 = vmatprep.subr.bf16.mxu0 0
      %780 = vmatpush1.bf16.msra.mxu0 0
      %781 = vmatprep.mubr.bf16.mxu0 0
      %782 = vmatmul.mubr.bf16.gmra.mrb[0].mxu0 %v744
      %v783 = vpop.f32.mrb[0].mxu0
      %v784 = vadd.f32 %v737, %v783
      %v785 = vpop.f32.mrb[0].mxu0
      %v786 = vpop.f32.mrb[0].mxu0
      %v787 = vadd.f32 %v740, %v786
      %v788 = vpop.f32.mrb[0].mxu0
      %789 = vdwg.mxu0
      %v790 = vpack.c.bf16 %v688, %v687
      %s791 = scalar_lea.vmem %s1, 8
      %v792 = vld [vmem:[%s791] sm:$0x7]
      %v794 = vsel %vm694, %v790, 0
      %v797 = vsel %vm698, %v792, 0
      %799 = vmatprep.subr.bf16.mxu0 0
      %800 = vmatpush1.bf16.msra.mxu0 %v797
      %801 = vmatprep.subr.bf16.mxu0 0
      %802 = vmatpush1.bf16.msra.mxu0 0
      %803 = vmatprep.subr.bf16.mxu0 0
      %804 = vmatpush1.bf16.msra.mxu0 0
      %805 = vmatprep.subr.bf16.mxu0 0
      %806 = vmatpush1.bf16.msra.mxu0 0
      %807 = vmatprep.subr.bf16.mxu0 0
      %808 = vmatpush1.bf16.msra.mxu0 0
      %809 = vmatprep.subr.bf16.mxu0 0
      %810 = vmatpush1.bf16.msra.mxu0 0
      %811 = vmatprep.subr.bf16.mxu0 0
      %812 = vmatpush1.bf16.msra.mxu0 0
      %813 = vmatprep.subr.bf16.mxu0 0
      %814 = vmatpush1.bf16.msra.mxu0 0
      %815 = vmatprep.subr.bf16.mxu0 0
      %816 = vmatpush1.bf16.msra.mxu0 0
      %817 = vmatprep.subr.bf16.mxu0 0
      %818 = vmatpush1.bf16.msra.mxu0 0
      %819 = vmatprep.subr.bf16.mxu0 0
      %820 = vmatpush1.bf16.msra.mxu0 0
      %821 = vmatprep.subr.bf16.mxu0 0
      %822 = vmatpush1.bf16.msra.mxu0 0
      %823 = vmatprep.subr.bf16.mxu0 0
      %824 = vmatpush1.bf16.msra.mxu0 0
      %825 = vmatprep.subr.bf16.mxu0 0
      %826 = vmatpush1.bf16.msra.mxu0 0
      %827 = vmatprep.subr.bf16.mxu0 0
      %828 = vmatpush1.bf16.msra.mxu0 0
      %829 = vmatprep.subr.bf16.mxu0 0
      %830 = vmatpush1.bf16.msra.mxu0 0
      %831 = vmatprep.mubr.bf16.mxu0 0
      %832 = vmatmul.mubr.bf16.gmra.mrb[0].mxu0 %v794
      %v833 = vpop.f32.mrb[0].mxu0
      %v834 = vadd.f32 0.0, %v833
      %v835 = vpop.f32.mrb[0].mxu0
      %v836 = vpop.f32.mrb[0].mxu0
      %v837 = vadd.f32 0.0, %v836
      %v838 = vpop.f32.mrb[0].mxu0
      %839 = vdwg.mxu0
      %v840 = vadd.f32 %v784, %v834
      %v841 = vadd.f32 %v787, %v837
      %v842 = vld [vmem:[%s2] sm:$0x1]
      %v844 = vlaneseq
      %v845 = vshrl.u32 %v844, 7
      %v846 = vsub.s32 0, %v845
      %v847 = vrot.slane %v842, %v846
      %v849 = vadd.f32 %v840, %v847
      %v850 = vadd.f32 %v841, %v847
      %v851 = vmax.f32 %v849, 0.0
      %v852 = vmax.f32 %v850, 0.0
      %v853 = vrot.slane %v851, 7
      %v854 = vrot.slane %v852, 7
      %v855 = vsel %vm669, %v853, %v854
      %v856 = vsel %vm669, %v854, %v853
      %v857 = vsel %vm674, %v856, 0.0
      %v858 = vsel %vm675, %v855, 0.0
      %v859 = vrot.slane %v851, 1
      %v860 = vrot.slane %v852, 1
      %v861 = vsel %vm680, %v859, %v860
      %v862 = vsel %vm680, %v860, %v859
      %v863 = vsel %vm685, %v861, 0.0
      %v864 = vsel %vm686, %v862, 0.0
      %v865 = vpack.c.bf16 %v858, %v857
      %v866 = vld [vmem:[%s5] sm:$0xf]
      %v867 = vld [vmem:[%s5 + $0x4] sm:$0xf]
      %v868 = vld [vmem:[%s5 + $0x8] sm:$0xf]
      %v869 = vld [vmem:[%s5 + $0xc] sm:$0xf]
      %v870 = vld [vmem:[%s5 + $0x10] sm:$0xf]
      %v871 = vld [vmem:[%s5 + $0x14] sm:$0xf]
      %v872 = vld [vmem:[%s5 + $0x18] sm:$0xf]
      %v873 = vld [vmem:[%s5 + $0x1c] sm:$0xf]
      %v874 = vpack.c.bf16 %v852, %v851
      %s875 = scalar_lea.vmem %s5, 32
      %v876 = vld [vmem:[%s875] sm:$0xf]
      %v877 = vld [vmem:[%s875 + $0x4] sm:$0xf]
      %v878 = vld [vmem:[%s875 + $0x8] sm:$0xf]
      %v879 = vld [vmem:[%s875 + $0xc] sm:$0xf]
      %v880 = vld [vmem:[%s875 + $0x10] sm:$0xf]
      %v881 = vld [vmem:[%s875 + $0x14] sm:$0xf]
      %v882 = vld [vmem:[%s875 + $0x18] sm:$0xf]
      %v883 = vld [vmem:[%s875 + $0x1c] sm:$0xf]
      %v892 = vunpack.c.l.b16 %v876
      %v893 = vunpack.c.l.b16 %v877
      %v894 = vunpack.c.l.b16 %v878
      %v895 = vunpack.c.l.b16 %v879
      %v896 = vunpack.c.l.b16 %v880
      %v897 = vunpack.c.l.b16 %v881
      %v898 = vunpack.c.l.b16 %v882
      %v899 = vunpack.c.l.b16 %v883
      %v900 = vpack.c.b16 %v893, %v892
      %v901 = vpack.c.b16 %v895, %v894
      %v902 = vpack.c.b16 %v897, %v896
      %v903 = vpack.c.b16 %v899, %v898
      %vm908 = vcmask 523264
      %v910 = vsel %vm908, %v874, 0
      %912 = vmatprep.subr.bf16.mxu0 0
      %913 = vmatpush1.bf16.msra.mxu0 %v900
      %914 = vmatprep.subr.bf16.mxu0 0
      %915 = vmatpush1.bf16.msra.mxu0 %v901
      %916 = vmatprep.subr.bf16.mxu0 0
      %917 = vmatpush1.bf16.msra.mxu0 %v902
      %918 = vmatprep.subr.bf16.mxu0 0
      %919 = vmatpush1.bf16.msra.mxu0 %v903
      %920 = vmatprep.subr.bf16.mxu0 0
      %921 = vmatpush1.bf16.msra.mxu0 0
      %922 = vmatprep.subr.bf16.mxu0 0
      %923 = vmatpush1.bf16.msra.mxu0 0
      %924 = vmatprep.subr.bf16.mxu0 0
      %925 = vmatpush1.bf16.msra.mxu0 0
      %926 = vmatprep.subr.bf16.mxu0 0
      %927 = vmatpush1.bf16.msra.mxu0 0
      %928 = vmatprep.subr.bf16.mxu0 0
      %929 = vmatpush1.bf16.msra.mxu0 0
      %930 = vmatprep.subr.bf16.mxu0 0
      %931 = vmatpush1.bf16.msra.mxu0 0
      %932 = vmatprep.subr.bf16.mxu0 0
      %933 = vmatpush1.bf16.msra.mxu0 0
      %934 = vmatprep.subr.bf16.mxu0 0
      %935 = vmatpush1.bf16.msra.mxu0 0
      %936 = vmatprep.subr.bf16.mxu0 0
      %937 = vmatpush1.bf16.msra.mxu0 0
      %938 = vmatprep.subr.bf16.mxu0 0
      %939 = vmatpush1.bf16.msra.mxu0 0
      %940 = vmatprep.subr.bf16.mxu0 0
      %941 = vmatpush1.bf16.msra.mxu0 0
      %942 = vmatprep.subr.bf16.mxu0 0
      %943 = vmatpush1.bf16.msra.mxu0 0
      %944 = vmatprep.mubr.bf16.mxu0 0
      %945 = vmatmul.mubr.bf16.gmra.mrb[0].mxu0 %v910
      %v946 = vpop.f32.mrb[0].mxu0
      %v947 = vadd.f32 0.0, %v946
      %v948 = vpop.f32.mrb[0].mxu0
      %v949 = vpop.f32.mrb[0].mxu0
      %v950 = vadd.f32 0.0, %v949
      %v951 = vpop.f32.mrb[0].mxu0
      %952 = vdwg.mxu0
      %v961 = vunpack.c.l.b16 %v866
      %v962 = vunpack.c.l.b16 %v867
      %v963 = vunpack.c.l.b16 %v868
      %v964 = vunpack.c.l.b16 %v869
      %v965 = vunpack.c.l.b16 %v870
      %v966 = vunpack.c.l.b16 %v871
      %v967 = vunpack.c.l.b16 %v872
      %v968 = vunpack.c.l.b16 %v873
      %v969 = vpack.c.b16 %v962, %v961
      %v970 = vpack.c.b16 %v964, %v963
      %v971 = vpack.c.b16 %v966, %v965
      %v972 = vpack.c.b16 %v968, %v967
      %v978 = vsel %vm908, %v865, 0
      %980 = vmatprep.subr.bf16.mxu0 0
      %981 = vmatpush1.bf16.msra.mxu0 %v969
      %982 = vmatprep.subr.bf16.mxu0 0
      %983 = vmatpush1.bf16.msra.mxu0 %v970
      %984 = vmatprep.subr.bf16.mxu0 0
      %985 = vmatpush1.bf16.msra.mxu0 %v971
      %986 = vmatprep.subr.bf16.mxu0 0
      %987 = vmatpush1.bf16.msra.mxu0 %v972
      %988 = vmatprep.subr.bf16.mxu0 0
      %989 = vmatpush1.bf16.msra.mxu0 0
      %990 = vmatprep.subr.bf16.mxu0 0
      %991 = vmatpush1.bf16.msra.mxu0 0
      %992 = vmatprep.subr.bf16.mxu0 0
      %993 = vmatpush1.bf16.msra.mxu0 0
      %994 = vmatprep.subr.bf16.mxu0 0
      %995 = vmatpush1.bf16.msra.mxu0 0
      %996 = vmatprep.subr.bf16.mxu0 0
      %997 = vmatpush1.bf16.msra.mxu0 0
      %998 = vmatprep.subr.bf16.mxu0 0
      %999 = vmatpush1.bf16.msra.mxu0 0
      %1000 = vmatprep.subr.bf16.mxu0 0
      %1001 = vmatpush1.bf16.msra.mxu0 0
      %1002 = vmatprep.subr.bf16.mxu0 0
      %1003 = vmatpush1.bf16.msra.mxu0 0
      %1004 = vmatprep.subr.bf16.mxu0 0
      %1005 = vmatpush1.bf16.msra.mxu0 0
      %1006 = vmatprep.subr.bf16.mxu0 0
      %1007 = vmatpush1.bf16.msra.mxu0 0
      %1008 = vmatprep.subr.bf16.mxu0 0
      %1009 = vmatpush1.bf16.msra.mxu0 0
      %1010 = vmatprep.subr.bf16.mxu0 0
      %1011 = vmatpush1.bf16.msra.mxu0 0
      %1012 = vmatprep.mubr.bf16.mxu0 0
      %1013 = vmatmul.mubr.bf16.gmra.mrb[0].mxu0 %v978
      %v1014 = vpop.f32.mrb[0].mxu0
      %v1015 = vadd.f32 %v947, %v1014
      %v1016 = vpop.f32.mrb[0].mxu0
      %v1017 = vpop.f32.mrb[0].mxu0
      %v1018 = vadd.f32 %v950, %v1017
      %v1019 = vpop.f32.mrb[0].mxu0
      %1020 = vdwg.mxu0
      %v1021 = vpack.c.bf16 %v864, %v863
      %s1022 = scalar_lea.vmem %s5, 64
      %v1023 = vld [vmem:[%s1022] sm:$0xf]
      %v1024 = vld [vmem:[%s1022 + $0x4] sm:$0xf]
      %v1025 = vld [vmem:[%s1022 + $0x8] sm:$0xf]
      %v1026 = vld [vmem:[%s1022 + $0xc] sm:$0xf]
      %v1027 = vld [vmem:[%s1022 + $0x10] sm:$0xf]
      %v1028 = vld [vmem:[%s1022 + $0x14] sm:$0xf]
      %v1029 = vld [vmem:[%s1022 + $0x18] sm:$0xf]
      %v1030 = vld [vmem:[%s1022 + $0x1c] sm:$0xf]
      %v1039 = vunpack.c.l.b16 %v1023
      %v1040 = vunpack.c.l.b16 %v1024
      %v1041 = vunpack.c.l.b16 %v1025
      %v1042 = vunpack.c.l.b16 %v1026
      %v1043 = vunpack.c.l.b16 %v1027
      %v1044 = vunpack.c.l.b16 %v1028
      %v1045 = vunpack.c.l.b16 %v1029
      %v1046 = vunpack.c.l.b16 %v1030
      %v1047 = vpack.c.b16 %v1040, %v1039
      %v1048 = vpack.c.b16 %v1042, %v1041
      %v1049 = vpack.c.b16 %v1044, %v1043
      %v1050 = vpack.c.b16 %v1046, %v1045
      %v1056 = vsel %vm908, %v1021, 0
      %1058 = vmatprep.subr.bf16.mxu0 0
      %1059 = vmatpush1.bf16.msra.mxu0 %v1047
      %1060 = vmatprep.subr.bf16.mxu0 0
      %1061 = vmatpush1.bf16.msra.mxu0 %v1048
      %1062 = vmatprep.subr.bf16.mxu0 0
      %1063 = vmatpush1.bf16.msra.mxu0 %v1049
      %1064 = vmatprep.subr.bf16.mxu0 0
      %1065 = vmatpush1.bf16.msra.mxu0 %v1050
      %1066 = vmatprep.subr.bf16.mxu0 0
      %1067 = vmatpush1.bf16.msra.mxu0 0
      %1068 = vmatprep.subr.bf16.mxu0 0
      %1069 = vmatpush1.bf16.msra.mxu0 0
      %1070 = vmatprep.subr.bf16.mxu0 0
      %1071 = vmatpush1.bf16.msra.mxu0 0
      %1072 = vmatprep.subr.bf16.mxu0 0
      %1073 = vmatpush1.bf16.msra.mxu0 0
      %1074 = vmatprep.subr.bf16.mxu0 0
      %1075 = vmatpush1.bf16.msra.mxu0 0
      %1076 = vmatprep.subr.bf16.mxu0 0
      %1077 = vmatpush1.bf16.msra.mxu0 0
      %1078 = vmatprep.subr.bf16.mxu0 0
      %1079 = vmatpush1.bf16.msra.mxu0 0
      %1080 = vmatprep.subr.bf16.mxu0 0
      %1081 = vmatpush1.bf16.msra.mxu0 0
      %1082 = vmatprep.subr.bf16.mxu0 0
      %1083 = vmatpush1.bf16.msra.mxu0 0
      %1084 = vmatprep.subr.bf16.mxu0 0
      %1085 = vmatpush1.bf16.msra.mxu0 0
      %1086 = vmatprep.subr.bf16.mxu0 0
      %1087 = vmatpush1.bf16.msra.mxu0 0
      %1088 = vmatprep.subr.bf16.mxu0 0
      %1089 = vmatpush1.bf16.msra.mxu0 0
      %1090 = vmatprep.mubr.bf16.mxu0 0
      %1091 = vmatmul.mubr.bf16.gmra.mrb[0].mxu0 %v1056
      %v1092 = vpop.f32.mrb[0].mxu0
      %v1093 = vadd.f32 0.0, %v1092
      %v1094 = vpop.f32.mrb[0].mxu0
      %v1095 = vpop.f32.mrb[0].mxu0
      %v1096 = vadd.f32 0.0, %v1095
      %v1097 = vpop.f32.mrb[0].mxu0
      %1098 = vdwg.mxu0
      %v1099 = vadd.f32 %v1015, %v1093
      %v1100 = vadd.f32 %v1018, %v1096
      %v1101 = vld [vmem:[%s6] sm:$0x1]
      %v1103 = vlaneseq
      %v1104 = vshrl.u32 %v1103, 7
      %v1105 = vsub.s32 0, %v1104
      %v1106 = vrot.slane %v1101, %v1105
      %v1108 = vadd.f32 %v1099, %v1106
      %v1109 = vadd.f32 %v1100, %v1106
      %v1110 = vld [vmem:[%s3] sm:$0x7]
      %v1111 = vld [vmem:[%s4] sm:$0x1]
      %v1113 = vlaneseq
      %v1114 = vshrl.u32 %v1113, 7
      %v1115 = vsub.s32 0, %v1114
      %v1116 = vrot.slane %v1111, %v1115
      %v1119 = vsel %vm698, %v1110, 0
      %1121 = vmatprep.subr.bf16.mxu0 0
      %1122 = vmatpush1.bf16.msra.mxu0 %v1119
      %1123 = vmatprep.subr.bf16.mxu0 0
      %1124 = vmatpush1.bf16.msra.mxu0 0
      %1125 = vmatprep.subr.bf16.mxu0 0
      %1126 = vmatpush1.bf16.msra.mxu0 0
      %1127 = vmatprep.subr.bf16.mxu0 0
      %1128 = vmatpush1.bf16.msra.mxu0 0
      %1129 = vmatprep.subr.bf16.mxu0 0
      %1130 = vmatpush1.bf16.msra.mxu0 0
      %1131 = vmatprep.subr.bf16.mxu0 0
      %1132 = vmatpush1.bf16.msra.mxu0 0
      %1133 = vmatprep.subr.bf16.mxu0 0
      %1134 = vmatpush1.bf16.msra.mxu0 0
      %1135 = vmatprep.subr.bf16.mxu0 0
      %1136 = vmatpush1.bf16.msra.mxu0 0
      %1137 = vmatprep.subr.bf16.mxu0 0
      %1138 = vmatpush1.bf16.msra.mxu0 0
      %1139 = vmatprep.subr.bf16.mxu0 0
      %1140 = vmatpush1.bf16.msra.mxu0 0
      %1141 = vmatprep.subr.bf16.mxu0 0
      %1142 = vmatpush1.bf16.msra.mxu0 0
      %1143 = vmatprep.subr.bf16.mxu0 0
      %1144 = vmatpush1.bf16.msra.mxu0 0
      %1145 = vmatprep.subr.bf16.mxu0 0
      %1146 = vmatpush1.bf16.msra.mxu0 0
      %1147 = vmatprep.subr.bf16.mxu0 0
      %1148 = vmatpush1.bf16.msra.mxu0 0
      %1149 = vmatprep.subr.bf16.mxu0 0
      %1150 = vmatpush1.bf16.msra.mxu0 0
      %1151 = vmatprep.subr.bf16.mxu0 0
      %1152 = vmatpush1.bf16.msra.mxu0 0
      %1153 = vmatprep.mubr.bf16.mxu0 0
      %1154 = vmatmul.mubr.bf16.gmra.mrb[0].mxu0 %v696
      %v1155 = vpop.f32.mrb[0].mxu0
      %v1156 = vadd.f32 %v1116, %v1155
      %v1157 = vpop.f32.mrb[0].mxu0
      %v1158 = vpop.f32.mrb[0].mxu0
      %v1159 = vadd.f32 %v1116, %v1158
      %v1160 = vpop.f32.mrb[0].mxu0
      %1161 = vdwg.mxu0
      %v1162 = vadd.f32 %v1108, %v1156
      %v1163 = vadd.f32 %v1109, %v1159
      %v1164 = vpack.c.bf16 %v1163, %v1162
      %v1165 = vld [vmem:[%s7] sm:$0xf]
      %v1166 = vld [vmem:[%s7 + $0x4] sm:$0xf]
      %v1167 = vld [vmem:[%s7 + $0x8] sm:$0xf]
      %v1168 = vld [vmem:[%s7 + $0xc] sm:$0xf]
      %v1169 = vld [vmem:[%s7 + $0x10] sm:$0xf]
      %v1170 = vld [vmem:[%s7 + $0x14] sm:$0xf]
      %v1171 = vld [vmem:[%s7 + $0x18] sm:$0xf]
      %v1172 = vld [vmem:[%s7 + $0x1c] sm:$0xf]
      %v1173 = vld [vmem:[%s8] sm:$0x1]
      %v1175 = vlaneseq
      %v1176 = vshrl.u32 %v1175, 7
      %v1177 = vsub.s32 0, %v1176
      %v1178 = vrot.slane %v1173, %v1177
      %v1188 = vunpack.c.l.b16 %v1165
      %v1189 = vunpack.c.l.b16 %v1166
      %v1190 = vunpack.c.l.b16 %v1167
      %v1191 = vunpack.c.l.b16 %v1168
      %v1192 = vunpack.c.l.b16 %v1169
      %v1193 = vunpack.c.l.b16 %v1170
      %v1194 = vunpack.c.l.b16 %v1171
      %v1195 = vunpack.c.l.b16 %v1172
      %v1196 = vpack.c.b16 %v1189, %v1188
      %v1197 = vpack.c.b16 %v1191, %v1190
      %v1198 = vpack.c.b16 %v1193, %v1192
      %v1199 = vpack.c.b16 %v1195, %v1194
      %v1205 = vsel %vm908, %v1164, 0
      %1207 = vmatprep.subr.bf16.mxu0 0
      %1208 = vmatpush1.bf16.msra.mxu0 %v1196
      %1209 = vmatprep.subr.bf16.mxu0 0
      %1210 = vmatpush1.bf16.msra.mxu0 %v1197
      %1211 = vmatprep.subr.bf16.mxu0 0
      %1212 = vmatpush1.bf16.msra.mxu0 %v1198
      %1213 = vmatprep.subr.bf16.mxu0 0
      %1214 = vmatpush1.bf16.msra.mxu0 %v1199
      %1215 = vmatprep.subr.bf16.mxu0 0
      %1216 = vmatpush1.bf16.msra.mxu0 0
      %1217 = vmatprep.subr.bf16.mxu0 0
      %1218 = vmatpush1.bf16.msra.mxu0 0
      %1219 = vmatprep.subr.bf16.mxu0 0
      %1220 = vmatpush1.bf16.msra.mxu0 0
      %1221 = vmatprep.subr.bf16.mxu0 0
      %1222 = vmatpush1.bf16.msra.mxu0 0
      %1223 = vmatprep.subr.bf16.mxu0 0
      %1224 = vmatpush1.bf16.msra.mxu0 0
      %1225 = vmatprep.subr.bf16.mxu0 0
      %1226 = vmatpush1.bf16.msra.mxu0 0
      %1227 = vmatprep.subr.bf16.mxu0 0
      %1228 = vmatpush1.bf16.msra.mxu0 0
      %1229 = vmatprep.subr.bf16.mxu0 0
      %1230 = vmatpush1.bf16.msra.mxu0 0
      %1231 = vmatprep.subr.bf16.mxu0 0
      %1232 = vmatpush1.bf16.msra.mxu0 0
      %1233 = vmatprep.subr.bf16.mxu0 0
      %1234 = vmatpush1.bf16.msra.mxu0 0
      %1235 = vmatprep.subr.bf16.mxu0 0
      %1236 = vmatpush1.bf16.msra.mxu0 0
      %1237 = vmatprep.subr.bf16.mxu0 0
      %1238 = vmatpush1.bf16.msra.mxu0 0
      %1239 = vmatprep.mubr.bf16.mxu0 0
      %1240 = vmatmul.mubr.bf16.gmra.mrb[0].mxu0 %v1205
      %v1241 = vpop.f32.mrb[0].mxu0
      %v1242 = vadd.f32 %v1178, %v1241
      %v1243 = vpop.f32.mrb[0].mxu0
      %v1244 = vpop.f32.mrb[0].mxu0
      %v1245 = vadd.f32 %v1178, %v1244
      %v1246 = vpop.f32.mrb[0].mxu0
      %1247 = vdwg.mxu0
      %v1248 = vmul.f32 %v1242, 0.17677669
      %v1249 = vmul.f32 %v1245, 0.17677669
      %s1250 = scalar_lea.vmem %s7, 64
      %v1251 = vld [vmem:[%s1250] sm:$0xf]
      %v1252 = vld [vmem:[%s1250 + $0x4] sm:$0xf]
      %v1253 = vld [vmem:[%s1250 + $0x8] sm:$0xf]
      %v1254 = vld [vmem:[%s1250 + $0xc] sm:$0xf]
      %v1255 = vld [vmem:[%s1250 + $0x10] sm:$0xf]
      %v1256 = vld [vmem:[%s1250 + $0x14] sm:$0xf]
      %v1257 = vld [vmem:[%s1250 + $0x18] sm:$0xf]
      %v1258 = vld [vmem:[%s1250 + $0x1c] sm:$0xf]
      %s1259 = scalar_lea.vmem %s8, 2
      %v1260 = vld [vmem:[%s1259] sm:$0x1]
      %v1262 = vlaneseq
      %v1263 = vshrl.u32 %v1262, 7
      %v1264 = vsub.s32 0, %v1263
      %v1265 = vrot.slane %v1260, %v1264
      %v1275 = vunpack.c.l.b16 %v1251
      %v1276 = vunpack.c.l.b16 %v1252
      %v1277 = vunpack.c.l.b16 %v1253
      %v1278 = vunpack.c.l.b16 %v1254
      %v1279 = vunpack.c.l.b16 %v1255
      %v1280 = vunpack.c.l.b16 %v1256
      %v1281 = vunpack.c.l.b16 %v1257
      %v1282 = vunpack.c.l.b16 %v1258
      %v1283 = vpack.c.b16 %v1276, %v1275
      %v1284 = vpack.c.b16 %v1278, %v1277
      %v1285 = vpack.c.b16 %v1280, %v1279
      %v1286 = vpack.c.b16 %v1282, %v1281
      %1291 = vmatprep.subr.bf16.mxu0 0
      %1292 = vmatpush1.bf16.msra.mxu0 %v1283
      %1293 = vmatprep.subr.bf16.mxu0 0
      %1294 = vmatpush1.bf16.msra.mxu0 %v1284
      %1295 = vmatprep.subr.bf16.mxu0 0
      %1296 = vmatpush1.bf16.msra.mxu0 %v1285
      %1297 = vmatprep.subr.bf16.mxu0 0
      %1298 = vmatpush1.bf16.msra.mxu0 %v1286
      %1299 = vmatprep.subr.bf16.mxu0 0
      %1300 = vmatpush1.bf16.msra.mxu0 0
      %1301 = vmatprep.subr.bf16.mxu0 0
      %1302 = vmatpush1.bf16.msra.mxu0 0
      %1303 = vmatprep.subr.bf16.mxu0 0
      %1304 = vmatpush1.bf16.msra.mxu0 0
      %1305 = vmatprep.subr.bf16.mxu0 0
      %1306 = vmatpush1.bf16.msra.mxu0 0
      %1307 = vmatprep.subr.bf16.mxu0 0
      %1308 = vmatpush1.bf16.msra.mxu0 0
      %1309 = vmatprep.subr.bf16.mxu0 0
      %1310 = vmatpush1.bf16.msra.mxu0 0
      %1311 = vmatprep.subr.bf16.mxu0 0
      %1312 = vmatpush1.bf16.msra.mxu0 0
      %1313 = vmatprep.subr.bf16.mxu0 0
      %1314 = vmatpush1.bf16.msra.mxu0 0
      %1315 = vmatprep.subr.bf16.mxu0 0
      %1316 = vmatpush1.bf16.msra.mxu0 0
      %1317 = vmatprep.subr.bf16.mxu0 0
      %1318 = vmatpush1.bf16.msra.mxu0 0
      %1319 = vmatprep.subr.bf16.mxu0 0
      %1320 = vmatpush1.bf16.msra.mxu0 0
      %1321 = vmatprep.subr.bf16.mxu0 0
      %1322 = vmatpush1.bf16.msra.mxu0 0
      %1323 = vmatprep.mubr.bf16.mxu0 0
      %1324 = vmatmul.mubr.bf16.gmra.mrb[0].mxu0 %v1205
      %v1325 = vpop.f32.mrb[0].mxu0
      %v1326 = vadd.f32 %v1265, %v1325
      %v1327 = vpop.f32.mrb[0].mxu0
      %v1328 = vpop.f32.mrb[0].mxu0
      %v1329 = vadd.f32 %v1265, %v1328
      %v1330 = vpop.f32.mrb[0].mxu0
      %1331 = vdwg.mxu0
      %s1332 = scalar_lea.vmem %s7, 128
      %v1333 = vld [vmem:[%s1332] sm:$0xf]
      %v1334 = vld [vmem:[%s1332 + $0x4] sm:$0xf]
      %v1335 = vld [vmem:[%s1332 + $0x8] sm:$0xf]
      %v1336 = vld [vmem:[%s1332 + $0xc] sm:$0xf]
      %v1337 = vld [vmem:[%s1332 + $0x10] sm:$0xf]
      %v1338 = vld [vmem:[%s1332 + $0x14] sm:$0xf]
      %v1339 = vld [vmem:[%s1332 + $0x18] sm:$0xf]
      %v1340 = vld [vmem:[%s1332 + $0x1c] sm:$0xf]
      %s1341 = scalar_lea.vmem %s8, 4
      %v1342 = vld [vmem:[%s1341] sm:$0x1]
      %v1344 = vlaneseq
      %v1345 = vshrl.u32 %v1344, 7
      %v1346 = vsub.s32 0, %v1345
      %v1347 = vrot.slane %v1342, %v1346
      %v1357 = vunpack.c.l.b16 %v1333
      %v1358 = vunpack.c.l.b16 %v1334
      %v1359 = vunpack.c.l.b16 %v1335
      %v1360 = vunpack.c.l.b16 %v1336
      %v1361 = vunpack.c.l.b16 %v1337
      %v1362 = vunpack.c.l.b16 %v1338
      %v1363 = vunpack.c.l.b16 %v1339
      %v1364 = vunpack.c.l.b16 %v1340
      %v1365 = vpack.c.b16 %v1358, %v1357
      %v1366 = vpack.c.b16 %v1360, %v1359
      %v1367 = vpack.c.b16 %v1362, %v1361
      %v1368 = vpack.c.b16 %v1364, %v1363
      %1373 = vmatprep.subr.bf16.mxu0 0
      %1374 = vmatpush1.bf16.msra.mxu0 %v1365
      %1375 = vmatprep.subr.bf16.mxu0 0
      %1376 = vmatpush1.bf16.msra.mxu0 %v1366
      %1377 = vmatprep.subr.bf16.mxu0 0
      %1378 = vmatpush1.bf16.msra.mxu0 %v1367
      %1379 = vmatprep.subr.bf16.mxu0 0
      %1380 = vmatpush1.bf16.msra.mxu0 %v1368
      %1381 = vmatprep.subr.bf16.mxu0 0
      %1382 = vmatpush1.bf16.msra.mxu0 0
      %1383 = vmatprep.subr.bf16.mxu0 0
      %1384 = vmatpush1.bf16.msra.mxu0 0
      %1385 = vmatprep.subr.bf16.mxu0 0
      %1386 = vmatpush1.bf16.msra.mxu0 0
      %1387 = vmatprep.subr.bf16.mxu0 0
      %1388 = vmatpush1.bf16.msra.mxu0 0
      %1389 = vmatprep.subr.bf16.mxu0 0
      %1390 = vmatpush1.bf16.msra.mxu0 0
      %1391 = vmatprep.subr.bf16.mxu0 0
      %1392 = vmatpush1.bf16.msra.mxu0 0
      %1393 = vmatprep.subr.bf16.mxu0 0
      %1394 = vmatpush1.bf16.msra.mxu0 0
      %1395 = vmatprep.subr.bf16.mxu0 0
      %1396 = vmatpush1.bf16.msra.mxu0 0
      %1397 = vmatprep.subr.bf16.mxu0 0
      %1398 = vmatpush1.bf16.msra.mxu0 0
      %1399 = vmatprep.subr.bf16.mxu0 0
      %1400 = vmatpush1.bf16.msra.mxu0 0
      %1401 = vmatprep.subr.bf16.mxu0 0
      %1402 = vmatpush1.bf16.msra.mxu0 0
      %1403 = vmatprep.subr.bf16.mxu0 0
      %1404 = vmatpush1.bf16.msra.mxu0 0
      %1405 = vmatprep.mubr.bf16.mxu0 0
      %1406 = vmatmul.mubr.bf16.gmra.mrb[0].mxu0 %v1205
      %v1407 = vpop.f32.mrb[0].mxu0
      %v1408 = vadd.f32 %v1347, %v1407
      %v1409 = vpop.f32.mrb[0].mxu0
      %v1410 = vpop.f32.mrb[0].mxu0
      %v1411 = vadd.f32 %v1347, %v1410
      %v1412 = vpop.f32.mrb[0].mxu0
      %1413 = vdwg.mxu0
      %v1414 = vpack.c.bf16 %v1249, %v1248
      %v1415 = vpack.c.bf16 %v1329, %v1326
      %vm1416 = vcmask 261120
      %v1418 = vsel %vm1416, %v1414, 0
      %v1421 = vsel %vm1416, %v1415, 0
      %1423 = vmatprep.subr.bf16.mxu0 0
      %1424 = vmatpush1.bf16.xpose.msra.mxu0 %v1421
      %1425 = vmatprep.subr.bf16.mxu0 0
      %1426 = vmatpush1.bf16.xpose.msra.mxu0 0
      %1427 = vmatprep.subr.bf16.mxu0 0
      %1428 = vmatpush1.bf16.xpose.msra.mxu0 0
      %1429 = vmatprep.subr.bf16.mxu0 0
      %1430 = vmatpush1.bf16.xpose.msra.mxu0 0
      %1431 = vmatprep.subr.bf16.mxu0 0
      %1432 = vmatpush1.bf16.xpose.msra.mxu0 0
      %1433 = vmatprep.subr.bf16.mxu0 0
      %1434 = vmatpush1.bf16.xpose.msra.mxu0 0
      %1435 = vmatprep.subr.bf16.mxu0 0
      %1436 = vmatpush1.bf16.xpose.msra.mxu0 0
      %1437 = vmatprep.subr.bf16.mxu0 0
      %1438 = vmatpush1.bf16.xpose.msra.mxu0 0
      %1439 = vmatprep.subr.bf16.mxu0 0
      %1440 = vmatpush1.bf16.xpose.msra.mxu0 0
      %1441 = vmatprep.subr.bf16.mxu0 0
      %1442 = vmatpush1.bf16.xpose.msra.mxu0 0
      %1443 = vmatprep.subr.bf16.mxu0 0
      %1444 = vmatpush1.bf16.xpose.msra.mxu0 0
      %1445 = vmatprep.subr.bf16.mxu0 0
      %1446 = vmatpush1.bf16.xpose.msra.mxu0 0
      %1447 = vmatprep.subr.bf16.mxu0 0
      %1448 = vmatpush1.bf16.xpose.msra.mxu0 0
      %1449 = vmatprep.subr.bf16.mxu0 0
      %1450 = vmatpush1.bf16.xpose.msra.mxu0 0
      %1451 = vmatprep.subr.bf16.mxu0 0
      %1452 = vmatpush1.bf16.xpose.msra.mxu0 0
      %1453 = vmatprep.subr.bf16.mxu0 0
      %1454 = vmatpush1.bf16.xpose.msra.mxu0 0
      %1455 = vmatprep.mubr.bf16.mxu0 0
      %1456 = vmatmul.mubr.bf16.gmra.mrb[0].mxu0 %v1418
      %v1457 = vpop.f32.mrb[0].mxu0
      %v1458 = vadd.f32 0.0, %v1457
      %v1459 = vpop.f32.mrb[0].mxu0
      %v1460 = vpop.f32.mrb[0].mxu0
      %v1461 = vadd.f32 0.0, %v1460
      %v1462 = vpop.f32.mrb[0].mxu0
      %1463 = vdwg.mxu0
      %vm1464 = vcmask 130048
      %v1465 = vsel %vm1464, %v1458, -inf
      %1466 = vmax.xlane.f32.xlu0 %v1465
      %v1467 = vpop.xlane.xlu0 %1466
      %v1468 = vsel %vm1464, %v1461, -inf
      %1469 = vmax.xlane.f32.xlu0 %v1468
      %v1470 = vpop.xlane.xlu0 %1469
      %v1471 = vsub.f32 %v1458, %v1467
      %v1472 = vsub.f32 %v1461, %v1470
      %v1473 = vmul.f32 %v1471, 1.442695
      %v1474 = vpow.pop %v1473
      %v1475 = vmul.f32 %v1472, 1.442695
      %v1476 = vpow.pop %v1475
      %v1477 = vsel %vm1464, %v1474, 0.0
      %1478 = vadd.xlane.f32.xlu0 %v1477
      %v1479 = vpop.xlane.xlu0 %1478
      %v1480 = vsel %vm1464, %v1476, 0.0
      %1481 = vadd.xlane.f32.xlu0 %v1480
      %v1482 = vpop.xlane.xlu0 %1481
      %v1483 = vrcp.pop %v1479
      %v1484 = vrcp.pop %v1482
      %v1485 = vmul.f32 %v1474, %v1483
      %v1486 = vmul.f32 %v1476, %v1484
      %v1487 = vpack.c.bf16 %v1486, %v1485
      %v1488 = vpack.c.bf16 %v1411, %v1408
      %v1490 = vsel %vm1464, %v1487, 0
      %1492 = vmatprep.subr.bf16.mxu0 0
      %1493 = vmatpush1.bf16.msra.mxu0 %v1488
      %1494 = vmatprep.subr.bf16.mxu0 0
      %1495 = vmatpush1.bf16.msra.mxu0 0
      %1496 = vmatprep.subr.bf16.mxu0 0
      %1497 = vmatpush1.bf16.msra.mxu0 0
      %1498 = vmatprep.subr.bf16.mxu0 0
      %1499 = vmatpush1.bf16.msra.mxu0 0
      %1500 = vmatprep.subr.bf16.mxu0 0
      %1501 = vmatpush1.bf16.msra.mxu0 0
      %1502 = vmatprep.subr.bf16.mxu0 0
      %1503 = vmatpush1.bf16.msra.mxu0 0
      %1504 = vmatprep.subr.bf16.mxu0 0
      %1505 = vmatpush1.bf16.msra.mxu0 0
      %1506 = vmatprep.subr.bf16.mxu0 0
      %1507 = vmatpush1.bf16.msra.mxu0 0
      %1508 = vmatprep.subr.bf16.mxu0 0
      %1509 = vmatpush1.bf16.msra.mxu0 0
      %1510 = vmatprep.subr.bf16.mxu0 0
      %1511 = vmatpush1.bf16.msra.mxu0 0
      %1512 = vmatprep.subr.bf16.mxu0 0
      %1513 = vmatpush1.bf16.msra.mxu0 0
      %1514 = vmatprep.subr.bf16.mxu0 0
      %1515 = vmatpush1.bf16.msra.mxu0 0
      %1516 = vmatprep.subr.bf16.mxu0 0
      %1517 = vmatpush1.bf16.msra.mxu0 0
      %1518 = vmatprep.subr.bf16.mxu0 0
      %1519 = vmatpush1.bf16.msra.mxu0 0
      %1520 = vmatprep.subr.bf16.mxu0 0
      %1521 = vmatpush1.bf16.msra.mxu0 0
      %1522 = vmatprep.subr.bf16.mxu0 0
      %1523 = vmatpush1.bf16.msra.mxu0 0
      %1524 = vmatprep.mubr.bf16.mxu0 0
      %1525 = vmatmul.mubr.bf16.gmra.mrb[0].mxu0 %v1490
      %v1526 = vpop.f32.mrb[0].mxu0
      %v1527 = vadd.f32 0.0, %v1526
      %v1528 = vpop.f32.mrb[0].mxu0
      %v1529 = vpop.f32.mrb[0].mxu0
      %v1530 = vadd.f32 0.0, %v1529
      %v1531 = vpop.f32.mrb[0].mxu0
      %1532 = vdwg.mxu0
      %v1533 = vpack.c.bf16 %v1530, %v1527
      %v1534 = vld [vmem:[%s9] sm:$0xf]
      %v1535 = vld [vmem:[%s9 + $0x4] sm:$0xf]
      %v1536 = vld [vmem:[%s9 + $0x8] sm:$0xf]
      %v1537 = vld [vmem:[%s9 + $0xc] sm:$0xf]
      %s1538 = scalar_lea.vmem %s7, 32
      %v1539 = vld [vmem:[%s1538] sm:$0xf]
      %v1540 = vld [vmem:[%s1538 + $0x4] sm:$0xf]
      %v1541 = vld [vmem:[%s1538 + $0x8] sm:$0xf]
      %v1542 = vld [vmem:[%s1538 + $0xc] sm:$0xf]
      %v1543 = vld [vmem:[%s1538 + $0x10] sm:$0xf]
      %v1544 = vld [vmem:[%s1538 + $0x14] sm:$0xf]
      %v1545 = vld [vmem:[%s1538 + $0x18] sm:$0xf]
      %v1546 = vld [vmem:[%s1538 + $0x1c] sm:$0xf]
      %s1547 = scalar_lea.vmem %s8, 1
      %v1548 = vld [vmem:[%s1547] sm:$0x1]
      %v1550 = vlaneseq
      %v1551 = vshrl.u32 %v1550, 7
      %v1552 = vsub.s32 0, %v1551
      %v1553 = vrot.slane %v1548, %v1552
      %v1563 = vunpack.c.l.b16 %v1539
      %v1564 = vunpack.c.l.b16 %v1540
      %v1565 = vunpack.c.l.b16 %v1541
      %v1566 = vunpack.c.l.b16 %v1542
      %v1567 = vunpack.c.l.b16 %v1543
      %v1568 = vunpack.c.l.b16 %v1544
      %v1569 = vunpack.c.l.b16 %v1545
      %v1570 = vunpack.c.l.b16 %v1546
      %v1571 = vpack.c.b16 %v1564, %v1563
      %v1572 = vpack.c.b16 %v1566, %v1565
      %v1573 = vpack.c.b16 %v1568, %v1567
      %v1574 = vpack.c.b16 %v1570, %v1569
      %1579 = vmatprep.subr.bf16.mxu0 0
      %1580 = vmatpush1.bf16.msra.mxu0 %v1571
      %1581 = vmatprep.subr.bf16.mxu0 0
      %1582 = vmatpush1.bf16.msra.mxu0 %v1572
      %1583 = vmatprep.subr.bf16.mxu0 0
      %1584 = vmatpush1.bf16.msra.mxu0 %v1573
      %1585 = vmatprep.subr.bf16.mxu0 0
      %1586 = vmatpush1.bf16.msra.mxu0 %v1574
      %1587 = vmatprep.subr.bf16.mxu0 0
      %1588 = vmatpush1.bf16.msra.mxu0 0
      %1589 = vmatprep.subr.bf16.mxu0 0
      %1590 = vmatpush1.bf16.msra.mxu0 0
      %1591 = vmatprep.subr.bf16.mxu0 0
      %1592 = vmatpush1.bf16.msra.mxu0 0
      %1593 = vmatprep.subr.bf16.mxu0 0
      %1594 = vmatpush1.bf16.msra.mxu0 0
      %1595 = vmatprep.subr.bf16.mxu0 0
      %1596 = vmatpush1.bf16.msra.mxu0 0
      %1597 = vmatprep.subr.bf16.mxu0 0
      %1598 = vmatpush1.bf16.msra.mxu0 0
      %1599 = vmatprep.subr.bf16.mxu0 0
      %1600 = vmatpush1.bf16.msra.mxu0 0
      %1601 = vmatprep.subr.bf16.mxu0 0
      %1602 = vmatpush1.bf16.msra.mxu0 0
      %1603 = vmatprep.subr.bf16.mxu0 0
      %1604 = vmatpush1.bf16.msra.mxu0 0
      %1605 = vmatprep.subr.bf16.mxu0 0
      %1606 = vmatpush1.bf16.msra.mxu0 0
      %1607 = vmatprep.subr.bf16.mxu0 0
      %1608 = vmatpush1.bf16.msra.mxu0 0
      %1609 = vmatprep.subr.bf16.mxu0 0
      %1610 = vmatpush1.bf16.msra.mxu0 0
      %1611 = vmatprep.mubr.bf16.mxu0 0
      %1612 = vmatmul.mubr.bf16.gmra.mrb[0].mxu0 %v1205
      %v1613 = vpop.f32.mrb[0].mxu0
      %v1614 = vadd.f32 %v1553, %v1613
      %v1615 = vpop.f32.mrb[0].mxu0
      %v1616 = vpop.f32.mrb[0].mxu0
      %v1617 = vadd.f32 %v1553, %v1616
      %v1618 = vpop.f32.mrb[0].mxu0
      %1619 = vdwg.mxu0
      %v1620 = vmul.f32 %v1614, 0.17677669
      %v1621 = vmul.f32 %v1617, 0.17677669
      %s1622 = scalar_lea.vmem %s7, 96
      %v1623 = vld [vmem:[%s1622] sm:$0xf]
      %v1624 = vld [vmem:[%s1622 + $0x4] sm:$0xf]
      %v1625 = vld [vmem:[%s1622 + $0x8] sm:$0xf]
      %v1626 = vld [vmem:[%s1622 + $0xc] sm:$0xf]
      %v1627 = vld [vmem:[%s1622 + $0x10] sm:$0xf]
      %v1628 = vld [vmem:[%s1622 + $0x14] sm:$0xf]
      %v1629 = vld [vmem:[%s1622 + $0x18] sm:$0xf]
      %v1630 = vld [vmem:[%s1622 + $0x1c] sm:$0xf]
      %s1631 = scalar_lea.vmem %s8, 3
      %v1632 = vld [vmem:[%s1631] sm:$0x1]
      %v1634 = vlaneseq
      %v1635 = vshrl.u32 %v1634, 7
      %v1636 = vsub.s32 0, %v1635
      %v1637 = vrot.slane %v1632, %v1636
      %v1647 = vunpack.c.l.b16 %v1623
      %v1648 = vunpack.c.l.b16 %v1624
      %v1649 = vunpack.c.l.b16 %v1625
      %v1650 = vunpack.c.l.b16 %v1626
      %v1651 = vunpack.c.l.b16 %v1627
      %v1652 = vunpack.c.l.b16 %v1628
      %v1653 = vunpack.c.l.b16 %v1629
      %v1654 = vunpack.c.l.b16 %v1630
      %v1655 = vpack.c.b16 %v1648, %v1647
      %v1656 = vpack.c.b16 %v1650, %v1649
      %v1657 = vpack.c.b16 %v1652, %v1651
      %v1658 = vpack.c.b16 %v1654, %v1653
      %1663 = vmatprep.subr.bf16.mxu0 0
      %1664 = vmatpush1.bf16.msra.mxu0 %v1655
      %1665 = vmatprep.subr.bf16.mxu0 0
      %1666 = vmatpush1.bf16.msra.mxu0 %v1656
      %1667 = vmatprep.subr.bf16.mxu0 0
      %1668 = vmatpush1.bf16.msra.mxu0 %v1657
      %1669 = vmatprep.subr.bf16.mxu0 0
      %1670 = vmatpush1.bf16.msra.mxu0 %v1658
      %1671 = vmatprep.subr.bf16.mxu0 0
      %1672 = vmatpush1.bf16.msra.mxu0 0
      %1673 = vmatprep.subr.bf16.mxu0 0
      %1674 = vmatpush1.bf16.msra.mxu0 0
      %1675 = vmatprep.subr.bf16.mxu0 0
      %1676 = vmatpush1.bf16.msra.mxu0 0
      %1677 = vmatprep.subr.bf16.mxu0 0
      %1678 = vmatpush1.bf16.msra.mxu0 0
      %1679 = vmatprep.subr.bf16.mxu0 0
      %1680 = vmatpush1.bf16.msra.mxu0 0
      %1681 = vmatprep.subr.bf16.mxu0 0
      %1682 = vmatpush1.bf16.msra.mxu0 0
      %1683 = vmatprep.subr.bf16.mxu0 0
      %1684 = vmatpush1.bf16.msra.mxu0 0
      %1685 = vmatprep.subr.bf16.mxu0 0
      %1686 = vmatpush1.bf16.msra.mxu0 0
      %1687 = vmatprep.subr.bf16.mxu0 0
      %1688 = vmatpush1.bf16.msra.mxu0 0
      %1689 = vmatprep.subr.bf16.mxu0 0
      %1690 = vmatpush1.bf16.msra.mxu0 0
      %1691 = vmatprep.subr.bf16.mxu0 0
      %1692 = vmatpush1.bf16.msra.mxu0 0
      %1693 = vmatprep.subr.bf16.mxu0 0
      %1694 = vmatpush1.bf16.msra.mxu0 0
      %1695 = vmatprep.mubr.bf16.mxu0 0
      %1696 = vmatmul.mubr.bf16.gmra.mrb[0].mxu0 %v1205
      %v1697 = vpop.f32.mrb[0].mxu0
      %v1698 = vadd.f32 %v1637, %v1697
      %v1699 = vpop.f32.mrb[0].mxu0
      %v1700 = vpop.f32.mrb[0].mxu0
      %v1701 = vadd.f32 %v1637, %v1700
      %v1702 = vpop.f32.mrb[0].mxu0
      %1703 = vdwg.mxu0
      %s1704 = scalar_lea.vmem %s7, 160
      %v1705 = vld [vmem:[%s1704] sm:$0xf]
      %v1706 = vld [vmem:[%s1704 + $0x4] sm:$0xf]
      %v1707 = vld [vmem:[%s1704 + $0x8] sm:$0xf]
      %v1708 = vld [vmem:[%s1704 + $0xc] sm:$0xf]
      %v1709 = vld [vmem:[%s1704 + $0x10] sm:$0xf]
      %v1710 = vld [vmem:[%s1704 + $0x14] sm:$0xf]
      %v1711 = vld [vmem:[%s1704 + $0x18] sm:$0xf]
      %v1712 = vld [vmem:[%s1704 + $0x1c] sm:$0xf]
      %s1713 = scalar_lea.vmem %s8, 5
      %v1714 = vld [vmem:[%s1713] sm:$0x1]
      %v1716 = vlaneseq
      %v1717 = vshrl.u32 %v1716, 7
      %v1718 = vsub.s32 0, %v1717
      %v1719 = vrot.slane %v1714, %v1718
      %v1729 = vunpack.c.l.b16 %v1705
      %v1730 = vunpack.c.l.b16 %v1706
      %v1731 = vunpack.c.l.b16 %v1707
      %v1732 = vunpack.c.l.b16 %v1708
      %v1733 = vunpack.c.l.b16 %v1709
      %v1734 = vunpack.c.l.b16 %v1710
      %v1735 = vunpack.c.l.b16 %v1711
      %v1736 = vunpack.c.l.b16 %v1712
      %v1737 = vpack.c.b16 %v1730, %v1729
      %v1738 = vpack.c.b16 %v1732, %v1731
      %v1739 = vpack.c.b16 %v1734, %v1733
      %v1740 = vpack.c.b16 %v1736, %v1735
      %1745 = vmatprep.subr.bf16.mxu0 0
      %1746 = vmatpush1.bf16.msra.mxu0 %v1737
      %1747 = vmatprep.subr.bf16.mxu0 0
      %1748 = vmatpush1.bf16.msra.mxu0 %v1738
      %1749 = vmatprep.subr.bf16.mxu0 0
      %1750 = vmatpush1.bf16.msra.mxu0 %v1739
      %1751 = vmatprep.subr.bf16.mxu0 0
      %1752 = vmatpush1.bf16.msra.mxu0 %v1740
      %1753 = vmatprep.subr.bf16.mxu0 0
      %1754 = vmatpush1.bf16.msra.mxu0 0
      %1755 = vmatprep.subr.bf16.mxu0 0
      %1756 = vmatpush1.bf16.msra.mxu0 0
      %1757 = vmatprep.subr.bf16.mxu0 0
      %1758 = vmatpush1.bf16.msra.mxu0 0
      %1759 = vmatprep.subr.bf16.mxu0 0
      %1760 = vmatpush1.bf16.msra.mxu0 0
      %1761 = vmatprep.subr.bf16.mxu0 0
      %1762 = vmatpush1.bf16.msra.mxu0 0
      %1763 = vmatprep.subr.bf16.mxu0 0
      %1764 = vmatpush1.bf16.msra.mxu0 0
      %1765 = vmatprep.subr.bf16.mxu0 0
      %1766 = vmatpush1.bf16.msra.mxu0 0
      %1767 = vmatprep.subr.bf16.mxu0 0
      %1768 = vmatpush1.bf16.msra.mxu0 0
      %1769 = vmatprep.subr.bf16.mxu0 0
      %1770 = vmatpush1.bf16.msra.mxu0 0
      %1771 = vmatprep.subr.bf16.mxu0 0
      %1772 = vmatpush1.bf16.msra.mxu0 0
      %1773 = vmatprep.subr.bf16.mxu0 0
      %1774 = vmatpush1.bf16.msra.mxu0 0
      %1775 = vmatprep.subr.bf16.mxu0 0
      %1776 = vmatpush1.bf16.msra.mxu0 0
      %1777 = vmatprep.mubr.bf16.mxu0 0
      %1778 = vmatmul.mubr.bf16.gmra.mrb[0].mxu0 %v1205
      %v1779 = vpop.f32.mrb[0].mxu0
      %v1780 = vadd.f32 %v1719, %v1779
      %v1781 = vpop.f32.mrb[0].mxu0
      %v1782 = vpop.f32.mrb[0].mxu0
      %v1783 = vadd.f32 %v1719, %v1782
      %v1784 = vpop.f32.mrb[0].mxu0
      %1785 = vdwg.mxu0
      %v1786 = vpack.c.bf16 %v1621, %v1620
      %v1787 = vpack.c.bf16 %v1701, %v1698
      %v1789 = vsel %vm1416, %v1786, 0
      %v1792 = vsel %vm1416, %v1787, 0
      %1794 = vmatprep.subr.bf16.mxu0 0
      %1795 = vmatpush1.bf16.xpose.msra.mxu0 %v1792
      %1796 = vmatprep.subr.bf16.mxu0 0
      %1797 = vmatpush1.bf16.xpose.msra.mxu0 0
      %1798 = vmatprep.subr.bf16.mxu0 0
      %1799 = vmatpush1.bf16.xpose.msra.mxu0 0
      %1800 = vmatprep.subr.bf16.mxu0 0
      %1801 = vmatpush1.bf16.xpose.msra.mxu0 0
      %1802 = vmatprep.subr.bf16.mxu0 0
      %1803 = vmatpush1.bf16.xpose.msra.mxu0 0
      %1804 = vmatprep.subr.bf16.mxu0 0
      %1805 = vmatpush1.bf16.xpose.msra.mxu0 0
      %1806 = vmatprep.subr.bf16.mxu0 0
      %1807 = vmatpush1.bf16.xpose.msra.mxu0 0
      %1808 = vmatprep.subr.bf16.mxu0 0
      %1809 = vmatpush1.bf16.xpose.msra.mxu0 0
      %1810 = vmatprep.subr.bf16.mxu0 0
      %1811 = vmatpush1.bf16.xpose.msra.mxu0 0
      %1812 = vmatprep.subr.bf16.mxu0 0
      %1813 = vmatpush1.bf16.xpose.msra.mxu0 0
      %1814 = vmatprep.subr.bf16.mxu0 0
      %1815 = vmatpush1.bf16.xpose.msra.mxu0 0
      %1816 = vmatprep.subr.bf16.mxu0 0
      %1817 = vmatpush1.bf16.xpose.msra.mxu0 0
      %1818 = vmatprep.subr.bf16.mxu0 0
      %1819 = vmatpush1.bf16.xpose.msra.mxu0 0
      %1820 = vmatprep.subr.bf16.mxu0 0
      %1821 = vmatpush1.bf16.xpose.msra.mxu0 0
      %1822 = vmatprep.subr.bf16.mxu0 0
      %1823 = vmatpush1.bf16.xpose.msra.mxu0 0
      %1824 = vmatprep.subr.bf16.mxu0 0
      %1825 = vmatpush1.bf16.xpose.msra.mxu0 0
      %1826 = vmatprep.mubr.bf16.mxu0 0
      %1827 = vmatmul.mubr.bf16.gmra.mrb[0].mxu0 %v1789
      %v1828 = vpop.f32.mrb[0].mxu0
      %v1829 = vadd.f32 0.0, %v1828
      %v1830 = vpop.f32.mrb[0].mxu0
      %v1831 = vpop.f32.mrb[0].mxu0
      %v1832 = vadd.f32 0.0, %v1831
      %v1833 = vpop.f32.mrb[0].mxu0
      %1834 = vdwg.mxu0
      %v1835 = vsel %vm1464, %v1829, -inf
      %1836 = vmax.xlane.f32.xlu0 %v1835
      %v1837 = vpop.xlane.xlu0 %1836
      %v1838 = vsel %vm1464, %v1832, -inf
      %1839 = vmax.xlane.f32.xlu0 %v1838
      %v1840 = vpop.xlane.xlu0 %1839
      %v1841 = vsub.f32 %v1829, %v1837
      %v1842 = vsub.f32 %v1832, %v1840
      %v1843 = vmul.f32 %v1841, 1.442695
      %v1844 = vpow.pop %v1843
      %v1845 = vmul.f32 %v1842, 1.442695
      %v1846 = vpow.pop %v1845
      %v1847 = vsel %vm1464, %v1844, 0.0
      %1848 = vadd.xlane.f32.xlu0 %v1847
      %v1849 = vpop.xlane.xlu0 %1848
      %v1850 = vsel %vm1464, %v1846, 0.0
      %1851 = vadd.xlane.f32.xlu0 %v1850
      %v1852 = vpop.xlane.xlu0 %1851
      %v1853 = vrcp.pop %v1849
      %v1854 = vrcp.pop %v1852
      %v1855 = vmul.f32 %v1844, %v1853
      %v1856 = vmul.f32 %v1846, %v1854
      %v1857 = vpack.c.bf16 %v1856, %v1855
      %v1858 = vpack.c.bf16 %v1783, %v1780
      %v1860 = vsel %vm1464, %v1857, 0
      %1862 = vmatprep.subr.bf16.mxu0 0
      %1863 = vmatpush1.bf16.msra.mxu0 %v1858
      %1864 = vmatprep.subr.bf16.mxu0 0
      %1865 = vmatpush1.bf16.msra.mxu0 0
      %1866 = vmatprep.subr.bf16.mxu0 0
      %1867 = vmatpush1.bf16.msra.mxu0 0
      %1868 = vmatprep.subr.bf16.mxu0 0
      %1869 = vmatpush1.bf16.msra.mxu0 0
      %1870 = vmatprep.subr.bf16.mxu0 0
      %1871 = vmatpush1.bf16.msra.mxu0 0
      %1872 = vmatprep.subr.bf16.mxu0 0
      %1873 = vmatpush1.bf16.msra.mxu0 0
      %1874 = vmatprep.subr.bf16.mxu0 0
      %1875 = vmatpush1.bf16.msra.mxu0 0
      %1876 = vmatprep.subr.bf16.mxu0 0
      %1877 = vmatpush1.bf16.msra.mxu0 0
      %1878 = vmatprep.subr.bf16.mxu0 0
      %1879 = vmatpush1.bf16.msra.mxu0 0
      %1880 = vmatprep.subr.bf16.mxu0 0
      %1881 = vmatpush1.bf16.msra.mxu0 0
      %1882 = vmatprep.subr.bf16.mxu0 0
      %1883 = vmatpush1.bf16.msra.mxu0 0
      %1884 = vmatprep.subr.bf16.mxu0 0
      %1885 = vmatpush1.bf16.msra.mxu0 0
      %1886 = vmatprep.subr.bf16.mxu0 0
      %1887 = vmatpush1.bf16.msra.mxu0 0
      %1888 = vmatprep.subr.bf16.mxu0 0
      %1889 = vmatpush1.bf16.msra.mxu0 0
      %1890 = vmatprep.subr.bf16.mxu0 0
      %1891 = vmatpush1.bf16.msra.mxu0 0
      %1892 = vmatprep.subr.bf16.mxu0 0
      %1893 = vmatpush1.bf16.msra.mxu0 0
      %1894 = vmatprep.mubr.bf16.mxu0 0
      %1895 = vmatmul.mubr.bf16.gmra.mrb[0].mxu0 %v1860
      %v1896 = vpop.f32.mrb[0].mxu0
      %v1897 = vadd.f32 0.0, %v1896
      %v1898 = vpop.f32.mrb[0].mxu0
      %v1899 = vpop.f32.mrb[0].mxu0
      %v1900 = vadd.f32 0.0, %v1899
      %v1901 = vpop.f32.mrb[0].mxu0
      %1902 = vdwg.mxu0
      %v1903 = vpack.c.bf16 %v1900, %v1897
      %s1904 = scalar_lea.vmem %s9, 16
      %v1905 = vld [vmem:[%s1904] sm:$0xf]
      %v1906 = vld [vmem:[%s1904 + $0x4] sm:$0xf]
      %v1907 = vld [vmem:[%s1904 + $0x8] sm:$0xf]
      %v1908 = vld [vmem:[%s1904 + $0xc] sm:$0xf]
      %v1913 = vunpack.c.l.b16 %v1905
      %v1914 = vunpack.c.l.b16 %v1906
      %v1915 = vunpack.c.l.b16 %v1907
      %v1916 = vunpack.c.l.b16 %v1908
      %v1917 = vpack.c.b16 %v1914, %v1913
      %v1918 = vpack.c.b16 %v1916, %v1915
      %v1922 = vsel %vm1416, %v1903, 0
      %1924 = vmatprep.subr.bf16.mxu0 0
      %1925 = vmatpush1.bf16.msra.mxu0 %v1917
      %1926 = vmatprep.subr.bf16.mxu0 0
      %1927 = vmatpush1.bf16.msra.mxu0 %v1918
      %1928 = vmatprep.subr.bf16.mxu0 0
      %1929 = vmatpush1.bf16.msra.mxu0 0
      %1930 = vmatprep.subr.bf16.mxu0 0
      %1931 = vmatpush1.bf16.msra.mxu0 0
      %1932 = vmatprep.subr.bf16.mxu0 0
      %1933 = vmatpush1.bf16.msra.mxu0 0
      %1934 = vmatprep.subr.bf16.mxu0 0
      %1935 = vmatpush1.bf16.msra.mxu0 0
      %1936 = vmatprep.subr.bf16.mxu0 0
      %1937 = vmatpush1.bf16.msra.mxu0 0
      %1938 = vmatprep.subr.bf16.mxu0 0
      %1939 = vmatpush1.bf16.msra.mxu0 0
      %1940 = vmatprep.subr.bf16.mxu0 0
      %1941 = vmatpush1.bf16.msra.mxu0 0
      %1942 = vmatprep.subr.bf16.mxu0 0
      %1943 = vmatpush1.bf16.msra.mxu0 0
      %1944 = vmatprep.subr.bf16.mxu0 0
      %1945 = vmatpush1.bf16.msra.mxu0 0
      %1946 = vmatprep.subr.bf16.mxu0 0
      %1947 = vmatpush1.bf16.msra.mxu0 0
      %1948 = vmatprep.subr.bf16.mxu0 0
      %1949 = vmatpush1.bf16.msra.mxu0 0
      %1950 = vmatprep.subr.bf16.mxu0 0
      %1951 = vmatpush1.bf16.msra.mxu0 0
      %1952 = vmatprep.subr.bf16.mxu0 0
      %1953 = vmatpush1.bf16.msra.mxu0 0
      %1954 = vmatprep.subr.bf16.mxu0 0
      %1955 = vmatpush1.bf16.msra.mxu0 0
      %1956 = vmatprep.mubr.bf16.mxu0 0
      %1957 = vmatmul.mubr.bf16.gmra.mrb[0].mxu0 %v1922
      %v1958 = vpop.f32.mrb[0].mxu0
      %v1959 = vadd.f32 0.0, %v1958
      %v1960 = vpop.f32.mrb[0].mxu0
      %v1961 = vpop.f32.mrb[0].mxu0
      %v1962 = vadd.f32 0.0, %v1961
      %v1963 = vpop.f32.mrb[0].mxu0
      %1964 = vdwg.mxu0
      %v1969 = vunpack.c.l.b16 %v1534
      %v1970 = vunpack.c.l.b16 %v1535
      %v1971 = vunpack.c.l.b16 %v1536
      %v1972 = vunpack.c.l.b16 %v1537
      %v1973 = vpack.c.b16 %v1970, %v1969
      %v1974 = vpack.c.b16 %v1972, %v1971
      %v1978 = vsel %vm1416, %v1533, 0
      %1980 = vmatprep.subr.bf16.mxu0 0
      %1981 = vmatpush1.bf16.msra.mxu0 %v1973
      %1982 = vmatprep.subr.bf16.mxu0 0
      %1983 = vmatpush1.bf16.msra.mxu0 %v1974
      %1984 = vmatprep.subr.bf16.mxu0 0
      %1985 = vmatpush1.bf16.msra.mxu0 0
      %1986 = vmatprep.subr.bf16.mxu0 0
      %1987 = vmatpush1.bf16.msra.mxu0 0
      %1988 = vmatprep.subr.bf16.mxu0 0
      %1989 = vmatpush1.bf16.msra.mxu0 0
      %1990 = vmatprep.subr.bf16.mxu0 0
      %1991 = vmatpush1.bf16.msra.mxu0 0
      %1992 = vmatprep.subr.bf16.mxu0 0
      %1993 = vmatpush1.bf16.msra.mxu0 0
      %1994 = vmatprep.subr.bf16.mxu0 0
      %1995 = vmatpush1.bf16.msra.mxu0 0
      %1996 = vmatprep.subr.bf16.mxu0 0
      %1997 = vmatpush1.bf16.msra.mxu0 0
      %1998 = vmatprep.subr.bf16.mxu0 0
      %1999 = vmatpush1.bf16.msra.mxu0 0
      %2000 = vmatprep.subr.bf16.mxu0 0
      %2001 = vmatpush1.bf16.msra.mxu0 0
      %2002 = vmatprep.subr.bf16.mxu0 0
      %2003 = vmatpush1.bf16.msra.mxu0 0
      %2004 = vmatprep.subr.bf16.mxu0 0
      %2005 = vmatpush1.bf16.msra.mxu0 0
      %2006 = vmatprep.subr.bf16.mxu0 0
      %2007 = vmatpush1.bf16.msra.mxu0 0
      %2008 = vmatprep.subr.bf16.mxu0 0
      %2009 = vmatpush1.bf16.msra.mxu0 0
      %2010 = vmatprep.subr.bf16.mxu0 0
      %2011 = vmatpush1.bf16.msra.mxu0 0
      %2012 = vmatprep.mubr.bf16.mxu0 0
      %2013 = vmatmul.mubr.bf16.gmra.mrb[0].mxu0 %v1978
      %v2014 = vpop.f32.mrb[0].mxu0
      %v2015 = vadd.f32 %v1959, %v2014
      %v2016 = vpop.f32.mrb[0].mxu0
      %v2017 = vpop.f32.mrb[0].mxu0
      %v2018 = vadd.f32 %v1962, %v2017
      %v2019 = vpop.f32.mrb[0].mxu0
      %2020 = vdwg.mxu0
      %v2021 = vadd.f32 %v1162, %v2015
      %v2022 = vadd.f32 %v1163, %v2018
      %v2023 = vld [vmem:[%s10] sm:$0x1]
      %v2025 = vlaneseq
      %v2026 = vshrl.u32 %v2025, 7
      %v2027 = vsub.s32 0, %v2026
      %v2028 = vrot.slane %v2023, %v2027
      %v2030 = vadd.f32 %v2021, %v2028
      %v2031 = vadd.f32 %v2022, %v2028
      %v2032 = vrot.slane %v2030, 7
      %v2033 = vrot.slane %v2031, 7
      %v2034 = vsel %vm669, %v2032, %v2033
      %v2035 = vsel %vm669, %v2033, %v2032
      %v2036 = vsel %vm674, %v2035, 0.0
      %v2037 = vsel %vm675, %v2034, 0.0
      %v2038 = vrot.slane %v2030, 1
      %v2039 = vrot.slane %v2031, 1
      %v2040 = vsel %vm680, %v2038, %v2039
      %v2041 = vsel %vm680, %v2039, %v2038
      %v2042 = vsel %vm685, %v2040, 0.0
      %v2043 = vsel %vm686, %v2041, 0.0
      %v2044 = vpack.c.bf16 %v2037, %v2036
      %v2045 = vld [vmem:[%s11] sm:$0xff]
      %v2046 = vld [vmem:[%s11 + $0x8] sm:$0xff]
      %v2047 = vld [vmem:[%s11 + $0x10] sm:$0xff]
      %v2048 = vld [vmem:[%s11 + $0x18] sm:$0xff]
      %v2049 = vld [vmem:[%s11 + $0x20] sm:$0xff]
      %v2050 = vld [vmem:[%s11 + $0x28] sm:$0xff]
      %v2051 = vld [vmem:[%s11 + $0x30] sm:$0xff]
      %v2052 = vld [vmem:[%s11 + $0x38] sm:$0xff]
      %v2053 = vpack.c.bf16 %v2031, %v2030
      %s2054 = scalar_lea.vmem %s11, 64
      %v2055 = vld [vmem:[%s2054] sm:$0xff]
      %v2056 = vld [vmem:[%s2054 + $0x8] sm:$0xff]
      %v2057 = vld [vmem:[%s2054 + $0x10] sm:$0xff]
      %v2058 = vld [vmem:[%s2054 + $0x18] sm:$0xff]
      %v2059 = vld [vmem:[%s2054 + $0x20] sm:$0xff]
      %v2060 = vld [vmem:[%s2054 + $0x28] sm:$0xff]
      %v2061 = vld [vmem:[%s2054 + $0x30] sm:$0xff]
      %v2062 = vld [vmem:[%s2054 + $0x38] sm:$0xff]
      %v2071 = vunpack.c.l.b16 %v2055
      %v2072 = vunpack.c.h.b16 %v2055
      %v2073 = vunpack.c.l.b16 %v2056
      %v2074 = vunpack.c.h.b16 %v2056
      %v2075 = vunpack.c.l.b16 %v2057
      %v2076 = vunpack.c.h.b16 %v2057
      %v2077 = vunpack.c.l.b16 %v2058
      %v2078 = vunpack.c.h.b16 %v2058
      %v2079 = vunpack.c.l.b16 %v2059
      %v2080 = vunpack.c.h.b16 %v2059
      %v2081 = vunpack.c.l.b16 %v2060
      %v2082 = vunpack.c.h.b16 %v2060
      %v2083 = vunpack.c.l.b16 %v2061
      %v2084 = vunpack.c.h.b16 %v2061
      %v2085 = vunpack.c.l.b16 %v2062
      %v2086 = vunpack.c.h.b16 %v2062
      %v2087 = vpack.c.b16 %v2073, %v2071
      %v2088 = vpack.c.b16 %v2074, %v2072
      %v2089 = vpack.c.b16 %v2077, %v2075
      %v2090 = vpack.c.b16 %v2078, %v2076
      %v2091 = vpack.c.b16 %v2081, %v2079
      %v2092 = vpack.c.b16 %v2082, %v2080
      %v2093 = vpack.c.b16 %v2085, %v2083
      %v2094 = vpack.c.b16 %v2086, %v2084
      %v2104 = vsel %vm908, %v2053, 0
      %2106 = vmatprep.subr.bf16.mxu0 %v2088
      %2107 = vmatpush1.bf16.msra.mxu0 %v2087
      %2108 = vmatprep.subr.bf16.mxu0 %v2090
      %2109 = vmatpush1.bf16.msra.mxu0 %v2089
      %2110 = vmatprep.subr.bf16.mxu0 %v2092
      %2111 = vmatpush1.bf16.msra.mxu0 %v2091
      %2112 = vmatprep.subr.bf16.mxu0 %v2094
      %2113 = vmatpush1.bf16.msra.mxu0 %v2093
      %2114 = vmatprep.subr.bf16.mxu0 0
      %2115 = vmatpush1.bf16.msra.mxu0 0
      %2116 = vmatprep.subr.bf16.mxu0 0
      %2117 = vmatpush1.bf16.msra.mxu0 0
      %2118 = vmatprep.subr.bf16.mxu0 0
      %2119 = vmatpush1.bf16.msra.mxu0 0
      %2120 = vmatprep.subr.bf16.mxu0 0
      %2121 = vmatpush1.bf16.msra.mxu0 0
      %2122 = vmatprep.subr.bf16.mxu0 0
      %2123 = vmatpush1.bf16.msra.mxu0 0
      %2124 = vmatprep.subr.bf16.mxu0 0
      %2125 = vmatpush1.bf16.msra.mxu0 0
      %2126 = vmatprep.subr.bf16.mxu0 0
      %2127 = vmatpush1.bf16.msra.mxu0 0
      %2128 = vmatprep.subr.bf16.mxu0 0
      %2129 = vmatpush1.bf16.msra.mxu0 0
      %2130 = vmatprep.subr.bf16.mxu0 0
      %2131 = vmatpush1.bf16.msra.mxu0 0
      %2132 = vmatprep.subr.bf16.mxu0 0
      %2133 = vmatpush1.bf16.msra.mxu0 0
      %2134 = vmatprep.subr.bf16.mxu0 0
      %2135 = vmatpush1.bf16.msra.mxu0 0
      %2136 = vmatprep.subr.bf16.mxu0 0
      %2137 = vmatpush1.bf16.msra.mxu0 0
      %2138 = vmatprep.mubr.bf16.mxu0 0
      %2139 = vmatmul.mubr.bf16.gmra.mrb[0].mxu0 %v2104
      %v2140 = vpop.f32.mrb[0].mxu0
      %v2141 = vadd.f32 0.0, %v2140
      %v2142 = vpop.f32.mrb[0].mxu0
      %v2143 = vadd.f32 0.0, %v2142
      %v2144 = vpop.f32.mrb[0].mxu0
      %v2145 = vadd.f32 0.0, %v2144
      %v2146 = vpop.f32.mrb[0].mxu0
      %v2147 = vadd.f32 0.0, %v2146
      %2148 = vdwg.mxu0
      %v2157 = vunpack.c.l.b16 %v2045
      %v2158 = vunpack.c.h.b16 %v2045
      %v2159 = vunpack.c.l.b16 %v2046
      %v2160 = vunpack.c.h.b16 %v2046
      %v2161 = vunpack.c.l.b16 %v2047
      %v2162 = vunpack.c.h.b16 %v2047
      %v2163 = vunpack.c.l.b16 %v2048
      %v2164 = vunpack.c.h.b16 %v2048
      %v2165 = vunpack.c.l.b16 %v2049
      %v2166 = vunpack.c.h.b16 %v2049
      %v2167 = vunpack.c.l.b16 %v2050
      %v2168 = vunpack.c.h.b16 %v2050
      %v2169 = vunpack.c.l.b16 %v2051
      %v2170 = vunpack.c.h.b16 %v2051
      %v2171 = vunpack.c.l.b16 %v2052
      %v2172 = vunpack.c.h.b16 %v2052
      %v2173 = vpack.c.b16 %v2159, %v2157
      %v2174 = vpack.c.b16 %v2160, %v2158
      %v2175 = vpack.c.b16 %v2163, %v2161
      %v2176 = vpack.c.b16 %v2164, %v2162
      %v2177 = vpack.c.b16 %v2167, %v2165
      %v2178 = vpack.c.b16 %v2168, %v2166
      %v2179 = vpack.c.b16 %v2171, %v2169
      %v2180 = vpack.c.b16 %v2172, %v2170
      %v2190 = vsel %vm908, %v2044, 0
      %2192 = vmatprep.subr.bf16.mxu0 %v2174
      %2193 = vmatpush1.bf16.msra.mxu0 %v2173
      %2194 = vmatprep.subr.bf16.mxu0 %v2176
      %2195 = vmatpush1.bf16.msra.mxu0 %v2175
      %2196 = vmatprep.subr.bf16.mxu0 %v2178
      %2197 = vmatpush1.bf16.msra.mxu0 %v2177
      %2198 = vmatprep.subr.bf16.mxu0 %v2180
      %2199 = vmatpush1.bf16.msra.mxu0 %v2179
      %2200 = vmatprep.subr.bf16.mxu0 0
      %2201 = vmatpush1.bf16.msra.mxu0 0
      %2202 = vmatprep.subr.bf16.mxu0 0
      %2203 = vmatpush1.bf16.msra.mxu0 0
      %2204 = vmatprep.subr.bf16.mxu0 0
      %2205 = vmatpush1.bf16.msra.mxu0 0
      %2206 = vmatprep.subr.bf16.mxu0 0
      %2207 = vmatpush1.bf16.msra.mxu0 0
      %2208 = vmatprep.subr.bf16.mxu0 0
      %2209 = vmatpush1.bf16.msra.mxu0 0
      %2210 = vmatprep.subr.bf16.mxu0 0
      %2211 = vmatpush1.bf16.msra.mxu0 0
      %2212 = vmatprep.subr.bf16.mxu0 0
      %2213 = vmatpush1.bf16.msra.mxu0 0
      %2214 = vmatprep.subr.bf16.mxu0 0
      %2215 = vmatpush1.bf16.msra.mxu0 0
      %2216 = vmatprep.subr.bf16.mxu0 0
      %2217 = vmatpush1.bf16.msra.mxu0 0
      %2218 = vmatprep.subr.bf16.mxu0 0
      %2219 = vmatpush1.bf16.msra.mxu0 0
      %2220 = vmatprep.subr.bf16.mxu0 0
      %2221 = vmatpush1.bf16.msra.mxu0 0
      %2222 = vmatprep.subr.bf16.mxu0 0
      %2223 = vmatpush1.bf16.msra.mxu0 0
      %2224 = vmatprep.mubr.bf16.mxu0 0
      %2225 = vmatmul.mubr.bf16.gmra.mrb[0].mxu0 %v2190
      %v2226 = vpop.f32.mrb[0].mxu0
      %v2227 = vadd.f32 %v2141, %v2226
      %v2228 = vpop.f32.mrb[0].mxu0
      %v2229 = vadd.f32 %v2143, %v2228
      %v2230 = vpop.f32.mrb[0].mxu0
      %v2231 = vadd.f32 %v2145, %v2230
      %v2232 = vpop.f32.mrb[0].mxu0
      %v2233 = vadd.f32 %v2147, %v2232
      %2234 = vdwg.mxu0
      %v2235 = vpack.c.bf16 %v2043, %v2042
      %s2236 = scalar_lea.vmem %s11, 128
      %v2237 = vld [vmem:[%s2236] sm:$0xff]
      %v2238 = vld [vmem:[%s2236 + $0x8] sm:$0xff]
      %v2239 = vld [vmem:[%s2236 + $0x10] sm:$0xff]
      %v2240 = vld [vmem:[%s2236 + $0x18] sm:$0xff]
      %v2241 = vld [vmem:[%s2236 + $0x20] sm:$0xff]
      %v2242 = vld [vmem:[%s2236 + $0x28] sm:$0xff]
      %v2243 = vld [vmem:[%s2236 + $0x30] sm:$0xff]
      %v2244 = vld [vmem:[%s2236 + $0x38] sm:$0xff]
      %v2253 = vunpack.c.l.b16 %v2237
      %v2254 = vunpack.c.h.b16 %v2237
      %v2255 = vunpack.c.l.b16 %v2238
      %v2256 = vunpack.c.h.b16 %v2238
      %v2257 = vunpack.c.l.b16 %v2239
      %v2258 = vunpack.c.h.b16 %v2239
      %v2259 = vunpack.c.l.b16 %v2240
      %v2260 = vunpack.c.h.b16 %v2240
      %v2261 = vunpack.c.l.b16 %v2241
      %v2262 = vunpack.c.h.b16 %v2241
      %v2263 = vunpack.c.l.b16 %v2242
      %v2264 = vunpack.c.h.b16 %v2242
      %v2265 = vunpack.c.l.b16 %v2243
      %v2266 = vunpack.c.h.b16 %v2243
      %v2267 = vunpack.c.l.b16 %v2244
      %v2268 = vunpack.c.h.b16 %v2244
      %v2269 = vpack.c.b16 %v2255, %v2253
      %v2270 = vpack.c.b16 %v2256, %v2254
      %v2271 = vpack.c.b16 %v2259, %v2257
      %v2272 = vpack.c.b16 %v2260, %v2258
      %v2273 = vpack.c.b16 %v2263, %v2261
      %v2274 = vpack.c.b16 %v2264, %v2262
      %v2275 = vpack.c.b16 %v2267, %v2265
      %v2276 = vpack.c.b16 %v2268, %v2266
      %v2286 = vsel %vm908, %v2235, 0
      %2288 = vmatprep.subr.bf16.mxu0 %v2270
      %2289 = vmatpush1.bf16.msra.mxu0 %v2269
      %2290 = vmatprep.subr.bf16.mxu0 %v2272
      %2291 = vmatpush1.bf16.msra.mxu0 %v2271
      %2292 = vmatprep.subr.bf16.mxu0 %v2274
      %2293 = vmatpush1.bf16.msra.mxu0 %v2273
      %2294 = vmatprep.subr.bf16.mxu0 %v2276
      %2295 = vmatpush1.bf16.msra.mxu0 %v2275
      %2296 = vmatprep.subr.bf16.mxu0 0
      %2297 = vmatpush1.bf16.msra.mxu0 0
      %2298 = vmatprep.subr.bf16.mxu0 0
      %2299 = vmatpush1.bf16.msra.mxu0 0
      %2300 = vmatprep.subr.bf16.mxu0 0
      %2301 = vmatpush1.bf16.msra.mxu0 0
      %2302 = vmatprep.subr.bf16.mxu0 0
      %2303 = vmatpush1.bf16.msra.mxu0 0
      %2304 = vmatprep.subr.bf16.mxu0 0
      %2305 = vmatpush1.bf16.msra.mxu0 0
      %2306 = vmatprep.subr.bf16.mxu0 0
      %2307 = vmatpush1.bf16.msra.mxu0 0
      %2308 = vmatprep.subr.bf16.mxu0 0
      %2309 = vmatpush1.bf16.msra.mxu0 0
      %2310 = vmatprep.subr.bf16.mxu0 0
      %2311 = vmatpush1.bf16.msra.mxu0 0
      %2312 = vmatprep.subr.bf16.mxu0 0
      %2313 = vmatpush1.bf16.msra.mxu0 0
      %2314 = vmatprep.subr.bf16.mxu0 0
      %2315 = vmatpush1.bf16.msra.mxu0 0
      %2316 = vmatprep.subr.bf16.mxu0 0
      %2317 = vmatpush1.bf16.msra.mxu0 0
      %2318 = vmatprep.subr.bf16.mxu0 0
      %2319 = vmatpush1.bf16.msra.mxu0 0
      %2320 = vmatprep.mubr.bf16.mxu0 0
      %2321 = vmatmul.mubr.bf16.gmra.mrb[0].mxu0 %v2286
      %v2322 = vpop.f32.mrb[0].mxu0
      %v2323 = vadd.f32 0.0, %v2322
      %v2324 = vpop.f32.mrb[0].mxu0
      %v2325 = vadd.f32 0.0, %v2324
      %v2326 = vpop.f32.mrb[0].mxu0
      %v2327 = vadd.f32 0.0, %v2326
      %v2328 = vpop.f32.mrb[0].mxu0
      %v2329 = vadd.f32 0.0, %v2328
      %2330 = vdwg.mxu0
      %v2331 = vadd.f32 %v2227, %v2323
      %v2332 = vadd.f32 %v2229, %v2325
      %v2333 = vadd.f32 %v2231, %v2327
      %v2334 = vadd.f32 %v2233, %v2329
      %v2335 = vld [vmem:[%s12] sm:$0x3]
      %v2337 = vlaneseq
      %v2338 = vshrl.u32 %v2337, 7
      %v2339 = vsub.s32 0, %v2338
      %v2340 = vrot.slane %v2335, %v2339
      %v2341 = vlaneseq
      %v2342 = vshrl.u32 %v2341, 7
      %v2343 = vsub.s32 1, %v2342
      %v2344 = vrot.slane %v2335, %v2343
      %v2347 = vadd.f32 %v2331, %v2340
      %v2348 = vadd.f32 %v2332, %v2344
      %v2349 = vadd.f32 %v2333, %v2340
      %v2350 = vadd.f32 %v2334, %v2344
      %v2351 = vmax.f32 %v2347, 0.0
      %v2352 = vmax.f32 %v2348, 0.0
      %v2353 = vmax.f32 %v2349, 0.0
      %v2354 = vmax.f32 %v2350, 0.0
      %v2355 = vrot.slane %v2351, 7
      %v2356 = vrot.slane %v2352, 7
      %v2357 = vrot.slane %v2353, 7
      %v2358 = vrot.slane %v2354, 7
      %v2359 = vsel %vm669, %v2355, %v2357
      %v2360 = vsel %vm669, %v2356, %v2358
      %v2361 = vsel %vm669, %v2357, %v2355
      %v2362 = vsel %vm669, %v2358, %v2356
      %v2363 = vsel %vm674, %v2361, 0.0
      %v2364 = vsel %vm674, %v2362, 0.0
      %v2365 = vsel %vm675, %v2359, 0.0
      %v2366 = vsel %vm675, %v2360, 0.0
      %v2367 = vrot.slane %v2351, 1
      %v2368 = vrot.slane %v2352, 1
      %v2369 = vrot.slane %v2353, 1
      %v2370 = vrot.slane %v2354, 1
      %v2371 = vsel %vm680, %v2367, %v2369
      %v2372 = vsel %vm680, %v2368, %v2370
      %v2373 = vsel %vm680, %v2369, %v2367
      %v2374 = vsel %vm680, %v2370, %v2368
      %v2375 = vsel %vm685, %v2371, 0.0
      %v2376 = vsel %vm685, %v2372, 0.0
      %v2377 = vsel %vm686, %v2373, 0.0
      %v2378 = vsel %vm686, %v2374, 0.0
      %v2379 = vpack.c.bf16 %v2365, %v2363
      %v2380 = vpack.c.bf16 %v2366, %v2364
      %v2381 = vld [vmem:[%s13] sm:$0xf]
      %v2382 = vld [vmem:[%s13 + $0x4] sm:$0xf]
      %v2383 = vld [vmem:[%s13 + $0x8] sm:$0xf]
      %v2384 = vld [vmem:[%s13 + $0xc] sm:$0xf]
      %v2385 = vld [vmem:[%s13 + $0x10] sm:$0xf]
      %v2386 = vld [vmem:[%s13 + $0x14] sm:$0xf]
      %v2387 = vld [vmem:[%s13 + $0x18] sm:$0xf]
      %v2388 = vld [vmem:[%s13 + $0x1c] sm:$0xf]
      %v2389 = vld [vmem:[%s13 + $0x20] sm:$0xf]
      %v2390 = vld [vmem:[%s13 + $0x24] sm:$0xf]
      %v2391 = vld [vmem:[%s13 + $0x28] sm:$0xf]
      %v2392 = vld [vmem:[%s13 + $0x2c] sm:$0xf]
      %v2393 = vld [vmem:[%s13 + $0x30] sm:$0xf]
      %v2394 = vld [vmem:[%s13 + $0x34] sm:$0xf]
      %v2395 = vld [vmem:[%s13 + $0x38] sm:$0xf]
      %v2396 = vld [vmem:[%s13 + $0x3c] sm:$0xf]
      %v2397 = vld [vmem:[%s13 + $0x40] sm:$0xf]
      %v2398 = vld [vmem:[%s13 + $0x44] sm:$0xf]
      %v2399 = vld [vmem:[%s13 + $0x48] sm:$0xf]
      %v2400 = vld [vmem:[%s13 + $0x4c] sm:$0xf]
      %v2401 = vld [vmem:[%s13 + $0x50] sm:$0xf]
      %v2402 = vld [vmem:[%s13 + $0x54] sm:$0xf]
      %v2403 = vld [vmem:[%s13 + $0x58] sm:$0xf]
      %v2404 = vld [vmem:[%s13 + $0x5c] sm:$0xf]
      %v2405 = vld [vmem:[%s13 + $0x60] sm:$0xf]
      %v2406 = vld [vmem:[%s13 + $0x64] sm:$0xf]
      %v2407 = vld [vmem:[%s13 + $0x68] sm:$0xf]
      %v2408 = vld [vmem:[%s13 + $0x6c] sm:$0xf]
      %v2409 = vld [vmem:[%s13 + $0x70] sm:$0xf]
      %v2410 = vld [vmem:[%s13 + $0x74] sm:$0xf]
      %v2411 = vld [vmem:[%s13 + $0x78] sm:$0xf]
      %v2412 = vld [vmem:[%s13 + $0x7c] sm:$0xf]
      %v2413 = vpack.c.bf16 %v2353, %v2351
      %v2414 = vpack.c.bf16 %v2354, %v2352
      %s2415 = scalar_lea.vmem %s13, 128
      %v2416 = vld [vmem:[%s2415] sm:$0xf]
      %v2417 = vld [vmem:[%s2415 + $0x4] sm:$0xf]
      %v2418 = vld [vmem:[%s2415 + $0x8] sm:$0xf]
      %v2419 = vld [vmem:[%s2415 + $0xc] sm:$0xf]
      %v2420 = vld [vmem:[%s2415 + $0x10] sm:$0xf]
      %v2421 = vld [vmem:[%s2415 + $0x14] sm:$0xf]
      %v2422 = vld [vmem:[%s2415 + $0x18] sm:$0xf]
      %v2423 = vld [vmem:[%s2415 + $0x1c] sm:$0xf]
      %v2424 = vld [vmem:[%s2415 + $0x20] sm:$0xf]
      %v2425 = vld [vmem:[%s2415 + $0x24] sm:$0xf]
      %v2426 = vld [vmem:[%s2415 + $0x28] sm:$0xf]
      %v2427 = vld [vmem:[%s2415 + $0x2c] sm:$0xf]
      %v2428 = vld [vmem:[%s2415 + $0x30] sm:$0xf]
      %v2429 = vld [vmem:[%s2415 + $0x34] sm:$0xf]
      %v2430 = vld [vmem:[%s2415 + $0x38] sm:$0xf]
      %v2431 = vld [vmem:[%s2415 + $0x3c] sm:$0xf]
      %v2432 = vld [vmem:[%s2415 + $0x40] sm:$0xf]
      %v2433 = vld [vmem:[%s2415 + $0x44] sm:$0xf]
      %v2434 = vld [vmem:[%s2415 + $0x48] sm:$0xf]
      %v2435 = vld [vmem:[%s2415 + $0x4c] sm:$0xf]
      %v2436 = vld [vmem:[%s2415 + $0x50] sm:$0xf]
      %v2437 = vld [vmem:[%s2415 + $0x54] sm:$0xf]
      %v2438 = vld [vmem:[%s2415 + $0x58] sm:$0xf]
      %v2439 = vld [vmem:[%s2415 + $0x5c] sm:$0xf]
      %v2440 = vld [vmem:[%s2415 + $0x60] sm:$0xf]
      %v2441 = vld [vmem:[%s2415 + $0x64] sm:$0xf]
      %v2442 = vld [vmem:[%s2415 + $0x68] sm:$0xf]
      %v2443 = vld [vmem:[%s2415 + $0x6c] sm:$0xf]
      %v2444 = vld [vmem:[%s2415 + $0x70] sm:$0xf]
      %v2445 = vld [vmem:[%s2415 + $0x74] sm:$0xf]
      %v2446 = vld [vmem:[%s2415 + $0x78] sm:$0xf]
      %v2447 = vld [vmem:[%s2415 + $0x7c] sm:$0xf]
      %v2480 = vunpack.c.l.b16 %v2416
      %v2481 = vunpack.c.l.b16 %v2417
      %v2482 = vunpack.c.l.b16 %v2418
      %v2483 = vunpack.c.l.b16 %v2419
      %v2484 = vunpack.c.l.b16 %v2420
      %v2485 = vunpack.c.l.b16 %v2421
      %v2486 = vunpack.c.l.b16 %v2422
      %v2487 = vunpack.c.l.b16 %v2423
      %v2488 = vunpack.c.l.b16 %v2424
      %v2489 = vunpack.c.l.b16 %v2425
      %v2490 = vunpack.c.l.b16 %v2426
      %v2491 = vunpack.c.l.b16 %v2427
      %v2492 = vunpack.c.l.b16 %v2428
      %v2493 = vunpack.c.l.b16 %v2429
      %v2494 = vunpack.c.l.b16 %v2430
      %v2495 = vunpack.c.l.b16 %v2431
      %v2496 = vunpack.c.l.b16 %v2432
      %v2497 = vunpack.c.l.b16 %v2433
      %v2498 = vunpack.c.l.b16 %v2434
      %v2499 = vunpack.c.l.b16 %v2435
      %v2500 = vunpack.c.l.b16 %v2436
      %v2501 = vunpack.c.l.b16 %v2437
      %v2502 = vunpack.c.l.b16 %v2438
      %v2503 = vunpack.c.l.b16 %v2439
      %v2504 = vunpack.c.l.b16 %v2440
      %v2505 = vunpack.c.l.b16 %v2441
      %v2506 = vunpack.c.l.b16 %v2442
      %v2507 = vunpack.c.l.b16 %v2443
      %v2508 = vunpack.c.l.b16 %v2444
      %v2509 = vunpack.c.l.b16 %v2445
      %v2510 = vunpack.c.l.b16 %v2446
      %v2511 = vunpack.c.l.b16 %v2447
      %v2512 = vpack.c.b16 %v2481, %v2480
      %v2513 = vpack.c.b16 %v2483, %v2482
      %v2514 = vpack.c.b16 %v2485, %v2484
      %v2515 = vpack.c.b16 %v2487, %v2486
      %v2516 = vpack.c.b16 %v2489, %v2488
      %v2517 = vpack.c.b16 %v2491, %v2490
      %v2518 = vpack.c.b16 %v2493, %v2492
      %v2519 = vpack.c.b16 %v2495, %v2494
      %v2520 = vpack.c.b16 %v2497, %v2496
      %v2521 = vpack.c.b16 %v2499, %v2498
      %v2522 = vpack.c.b16 %v2501, %v2500
      %v2523 = vpack.c.b16 %v2503, %v2502
      %v2524 = vpack.c.b16 %v2505, %v2504
      %v2525 = vpack.c.b16 %v2507, %v2506
      %v2526 = vpack.c.b16 %v2509, %v2508
      %v2527 = vpack.c.b16 %v2511, %v2510
      %2544 = vmatprep.subr.bf16.mxu0 0
      %2545 = vmatpush1.bf16.msra.mxu0 %v2512
      %2546 = vmatprep.subr.bf16.mxu0 0
      %2547 = vmatpush1.bf16.msra.mxu0 %v2513
      %2548 = vmatprep.subr.bf16.mxu0 0
      %2549 = vmatpush1.bf16.msra.mxu0 %v2514
      %2550 = vmatprep.subr.bf16.mxu0 0
      %2551 = vmatpush1.bf16.msra.mxu0 %v2515
      %2552 = vmatprep.subr.bf16.mxu0 0
      %2553 = vmatpush1.bf16.msra.mxu0 %v2516
      %2554 = vmatprep.subr.bf16.mxu0 0
      %2555 = vmatpush1.bf16.msra.mxu0 %v2517
      %2556 = vmatprep.subr.bf16.mxu0 0
      %2557 = vmatpush1.bf16.msra.mxu0 %v2518
      %2558 = vmatprep.subr.bf16.mxu0 0
      %2559 = vmatpush1.bf16.msra.mxu0 %v2519
      %2560 = vmatprep.subr.bf16.mxu0 0
      %2561 = vmatpush1.bf16.msra.mxu0 %v2520
      %2562 = vmatprep.subr.bf16.mxu0 0
      %2563 = vmatpush1.bf16.msra.mxu0 %v2521
      %2564 = vmatprep.subr.bf16.mxu0 0
      %2565 = vmatpush1.bf16.msra.mxu0 %v2522
      %2566 = vmatprep.subr.bf16.mxu0 0
      %2567 = vmatpush1.bf16.msra.mxu0 %v2523
      %2568 = vmatprep.subr.bf16.mxu0 0
      %2569 = vmatpush1.bf16.msra.mxu0 %v2524
      %2570 = vmatprep.subr.bf16.mxu0 0
      %2571 = vmatpush1.bf16.msra.mxu0 %v2525
      %2572 = vmatprep.subr.bf16.mxu0 0
      %2573 = vmatpush1.bf16.msra.mxu0 %v2526
      %2574 = vmatprep.subr.bf16.mxu0 0
      %2575 = vmatpush1.bf16.msra.mxu0 %v2527
      %2576 = vmatprep.mubr.bf16.mxu0 %v2414
      %2577 = vmatmul.mubr.bf16.gmra.mrb[0].mxu0 %v2413
      %v2578 = vpop.f32.mrb[0].mxu0
      %v2579 = vadd.f32 0.0, %v2578
      %v2580 = vpop.f32.mrb[0].mxu0
      %v2581 = vpop.f32.mrb[0].mxu0
      %v2582 = vadd.f32 0.0, %v2581
      %v2583 = vpop.f32.mrb[0].mxu0
      %2584 = vdwg.mxu0
      %v2617 = vunpack.c.l.b16 %v2381
      %v2618 = vunpack.c.l.b16 %v2382
      %v2619 = vunpack.c.l.b16 %v2383
      %v2620 = vunpack.c.l.b16 %v2384
      %v2621 = vunpack.c.l.b16 %v2385
      %v2622 = vunpack.c.l.b16 %v2386
      %v2623 = vunpack.c.l.b16 %v2387
      %v2624 = vunpack.c.l.b16 %v2388
      %v2625 = vunpack.c.l.b16 %v2389
      %v2626 = vunpack.c.l.b16 %v2390
      %v2627 = vunpack.c.l.b16 %v2391
      %v2628 = vunpack.c.l.b16 %v2392
      %v2629 = vunpack.c.l.b16 %v2393
      %v2630 = vunpack.c.l.b16 %v2394
      %v2631 = vunpack.c.l.b16 %v2395
      %v2632 = vunpack.c.l.b16 %v2396
      %v2633 = vunpack.c.l.b16 %v2397
      %v2634 = vunpack.c.l.b16 %v2398
      %v2635 = vunpack.c.l.b16 %v2399
      %v2636 = vunpack.c.l.b16 %v2400
      %v2637 = vunpack.c.l.b16 %v2401
      %v2638 = vunpack.c.l.b16 %v2402
      %v2639 = vunpack.c.l.b16 %v2403
      %v2640 = vunpack.c.l.b16 %v2404
      %v2641 = vunpack.c.l.b16 %v2405
      %v2642 = vunpack.c.l.b16 %v2406
      %v2643 = vunpack.c.l.b16 %v2407
      %v2644 = vunpack.c.l.b16 %v2408
      %v2645 = vunpack.c.l.b16 %v2409
      %v2646 = vunpack.c.l.b16 %v2410
      %v2647 = vunpack.c.l.b16 %v2411
      %v2648 = vunpack.c.l.b16 %v2412
      %v2649 = vpack.c.b16 %v2618, %v2617
      %v2650 = vpack.c.b16 %v2620, %v2619
      %v2651 = vpack.c.b16 %v2622, %v2621
      %v2652 = vpack.c.b16 %v2624, %v2623
      %v2653 = vpack.c.b16 %v2626, %v2625
      %v2654 = vpack.c.b16 %v2628, %v2627
      %v2655 = vpack.c.b16 %v2630, %v2629
      %v2656 = vpack.c.b16 %v2632, %v2631
      %v2657 = vpack.c.b16 %v2634, %v2633
      %v2658 = vpack.c.b16 %v2636, %v2635
      %v2659 = vpack.c.b16 %v2638, %v2637
      %v2660 = vpack.c.b16 %v2640, %v2639
      %v2661 = vpack.c.b16 %v2642, %v2641
      %v2662 = vpack.c.b16 %v2644, %v2643
      %v2663 = vpack.c.b16 %v2646, %v2645
      %v2664 = vpack.c.b16 %v2648, %v2647
      %2681 = vmatprep.subr.bf16.mxu0 0
      %2682 = vmatpush1.bf16.msra.mxu0 %v2649
      %2683 = vmatprep.subr.bf16.mxu0 0
      %2684 = vmatpush1.bf16.msra.mxu0 %v2650
      %2685 = vmatprep.subr.bf16.mxu0 0
      %2686 = vmatpush1.bf16.msra.mxu0 %v2651
      %2687 = vmatprep.subr.bf16.mxu0 0
      %2688 = vmatpush1.bf16.msra.mxu0 %v2652
      %2689 = vmatprep.subr.bf16.mxu0 0
      %2690 = vmatpush1.bf16.msra.mxu0 %v2653
      %2691 = vmatprep.subr.bf16.mxu0 0
      %2692 = vmatpush1.bf16.msra.mxu0 %v2654
      %2693 = vmatprep.subr.bf16.mxu0 0
      %2694 = vmatpush1.bf16.msra.mxu0 %v2655
      %2695 = vmatprep.subr.bf16.mxu0 0
      %2696 = vmatpush1.bf16.msra.mxu0 %v2656
      %2697 = vmatprep.subr.bf16.mxu0 0
      %2698 = vmatpush1.bf16.msra.mxu0 %v2657
      %2699 = vmatprep.subr.bf16.mxu0 0
      %2700 = vmatpush1.bf16.msra.mxu0 %v2658
      %2701 = vmatprep.subr.bf16.mxu0 0
      %2702 = vmatpush1.bf16.msra.mxu0 %v2659
      %2703 = vmatprep.subr.bf16.mxu0 0
      %2704 = vmatpush1.bf16.msra.mxu0 %v2660
      %2705 = vmatprep.subr.bf16.mxu0 0
      %2706 = vmatpush1.bf16.msra.mxu0 %v2661
      %2707 = vmatprep.subr.bf16.mxu0 0
      %2708 = vmatpush1.bf16.msra.mxu0 %v2662
      %2709 = vmatprep.subr.bf16.mxu0 0
      %2710 = vmatpush1.bf16.msra.mxu0 %v2663
      %2711 = vmatprep.subr.bf16.mxu0 0
      %2712 = vmatpush1.bf16.msra.mxu0 %v2664
      %2713 = vmatprep.mubr.bf16.mxu0 %v2380
      %2714 = vmatmul.mubr.bf16.gmra.mrb[0].mxu0 %v2379
      %v2715 = vpop.f32.mrb[0].mxu0
      %v2716 = vadd.f32 %v2579, %v2715
      %v2717 = vpop.f32.mrb[0].mxu0
      %v2718 = vpop.f32.mrb[0].mxu0
      %v2719 = vadd.f32 %v2582, %v2718
      %v2720 = vpop.f32.mrb[0].mxu0
      %2721 = vdwg.mxu0
      %v2722 = vpack.c.bf16 %v2377, %v2375
      %v2723 = vpack.c.bf16 %v2378, %v2376
      %s2724 = scalar_lea.vmem %s13, 256
      %v2725 = vld [vmem:[%s2724] sm:$0xf]
      %v2726 = vld [vmem:[%s2724 + $0x4] sm:$0xf]
      %v2727 = vld [vmem:[%s2724 + $0x8] sm:$0xf]
      %v2728 = vld [vmem:[%s2724 + $0xc] sm:$0xf]
      %v2729 = vld [vmem:[%s2724 + $0x10] sm:$0xf]
      %v2730 = vld [vmem:[%s2724 + $0x14] sm:$0xf]
      %v2731 = vld [vmem:[%s2724 + $0x18] sm:$0xf]
      %v2732 = vld [vmem:[%s2724 + $0x1c] sm:$0xf]
      %v2733 = vld [vmem:[%s2724 + $0x20] sm:$0xf]
      %v2734 = vld [vmem:[%s2724 + $0x24] sm:$0xf]
      %v2735 = vld [vmem:[%s2724 + $0x28] sm:$0xf]
      %v2736 = vld [vmem:[%s2724 + $0x2c] sm:$0xf]
      %v2737 = vld [vmem:[%s2724 + $0x30] sm:$0xf]
      %v2738 = vld [vmem:[%s2724 + $0x34] sm:$0xf]
      %v2739 = vld [vmem:[%s2724 + $0x38] sm:$0xf]
      %v2740 = vld [vmem:[%s2724 + $0x3c] sm:$0xf]
      %v2741 = vld [vmem:[%s2724 + $0x40] sm:$0xf]
      %v2742 = vld [vmem:[%s2724 + $0x44] sm:$0xf]
      %v2743 = vld [vmem:[%s2724 + $0x48] sm:$0xf]
      %v2744 = vld [vmem:[%s2724 + $0x4c] sm:$0xf]
      %v2745 = vld [vmem:[%s2724 + $0x50] sm:$0xf]
      %v2746 = vld [vmem:[%s2724 + $0x54] sm:$0xf]
      %v2747 = vld [vmem:[%s2724 + $0x58] sm:$0xf]
      %v2748 = vld [vmem:[%s2724 + $0x5c] sm:$0xf]
      %v2749 = vld [vmem:[%s2724 + $0x60] sm:$0xf]
      %v2750 = vld [vmem:[%s2724 + $0x64] sm:$0xf]
      %v2751 = vld [vmem:[%s2724 + $0x68] sm:$0xf]
      %v2752 = vld [vmem:[%s2724 + $0x6c] sm:$0xf]
      %v2753 = vld [vmem:[%s2724 + $0x70] sm:$0xf]
      %v2754 = vld [vmem:[%s2724 + $0x74] sm:$0xf]
      %v2755 = vld [vmem:[%s2724 + $0x78] sm:$0xf]
      %v2756 = vld [vmem:[%s2724 + $0x7c] sm:$0xf]
      %v2789 = vunpack.c.l.b16 %v2725
      %v2790 = vunpack.c.l.b16 %v2726
      %v2791 = vunpack.c.l.b16 %v2727
      %v2792 = vunpack.c.l.b16 %v2728
      %v2793 = vunpack.c.l.b16 %v2729
      %v2794 = vunpack.c.l.b16 %v2730
      %v2795 = vunpack.c.l.b16 %v2731
      %v2796 = vunpack.c.l.b16 %v2732
      %v2797 = vunpack.c.l.b16 %v2733
      %v2798 = vunpack.c.l.b16 %v2734
      %v2799 = vunpack.c.l.b16 %v2735
      %v2800 = vunpack.c.l.b16 %v2736
      %v2801 = vunpack.c.l.b16 %v2737
      %v2802 = vunpack.c.l.b16 %v2738
      %v2803 = vunpack.c.l.b16 %v2739
      %v2804 = vunpack.c.l.b16 %v2740
      %v2805 = vunpack.c.l.b16 %v2741
      %v2806 = vunpack.c.l.b16 %v2742
      %v2807 = vunpack.c.l.b16 %v2743
      %v2808 = vunpack.c.l.b16 %v2744
      %v2809 = vunpack.c.l.b16 %v2745
      %v2810 = vunpack.c.l.b16 %v2746
      %v2811 = vunpack.c.l.b16 %v2747
      %v2812 = vunpack.c.l.b16 %v2748
      %v2813 = vunpack.c.l.b16 %v2749
      %v2814 = vunpack.c.l.b16 %v2750
      %v2815 = vunpack.c.l.b16 %v2751
      %v2816 = vunpack.c.l.b16 %v2752
      %v2817 = vunpack.c.l.b16 %v2753
      %v2818 = vunpack.c.l.b16 %v2754
      %v2819 = vunpack.c.l.b16 %v2755
      %v2820 = vunpack.c.l.b16 %v2756
      %v2821 = vpack.c.b16 %v2790, %v2789
      %v2822 = vpack.c.b16 %v2792, %v2791
      %v2823 = vpack.c.b16 %v2794, %v2793
      %v2824 = vpack.c.b16 %v2796, %v2795
      %v2825 = vpack.c.b16 %v2798, %v2797
      %v2826 = vpack.c.b16 %v2800, %v2799
      %v2827 = vpack.c.b16 %v2802, %v2801
      %v2828 = vpack.c.b16 %v2804, %v2803
      %v2829 = vpack.c.b16 %v2806, %v2805
      %v2830 = vpack.c.b16 %v2808, %v2807
      %v2831 = vpack.c.b16 %v2810, %v2809
      %v2832 = vpack.c.b16 %v2812, %v2811
      %v2833 = vpack.c.b16 %v2814, %v2813
      %v2834 = vpack.c.b16 %v2816, %v2815
      %v2835 = vpack.c.b16 %v2818, %v2817
      %v2836 = vpack.c.b16 %v2820, %v2819
      %2853 = vmatprep.subr.bf16.mxu0 0
      %2854 = vmatpush1.bf16.msra.mxu0 %v2821
      %2855 = vmatprep.subr.bf16.mxu0 0
      %2856 = vmatpush1.bf16.msra.mxu0 %v2822
      %2857 = vmatprep.subr.bf16.mxu0 0
      %2858 = vmatpush1.bf16.msra.mxu0 %v2823
      %2859 = vmatprep.subr.bf16.mxu0 0
      %2860 = vmatpush1.bf16.msra.mxu0 %v2824
      %2861 = vmatprep.subr.bf16.mxu0 0
      %2862 = vmatpush1.bf16.msra.mxu0 %v2825
      %2863 = vmatprep.subr.bf16.mxu0 0
      %2864 = vmatpush1.bf16.msra.mxu0 %v2826
      %2865 = vmatprep.subr.bf16.mxu0 0
      %2866 = vmatpush1.bf16.msra.mxu0 %v2827
      %2867 = vmatprep.subr.bf16.mxu0 0
      %2868 = vmatpush1.bf16.msra.mxu0 %v2828
      %2869 = vmatprep.subr.bf16.mxu0 0
      %2870 = vmatpush1.bf16.msra.mxu0 %v2829
      %2871 = vmatprep.subr.bf16.mxu0 0
      %2872 = vmatpush1.bf16.msra.mxu0 %v2830
      %2873 = vmatprep.subr.bf16.mxu0 0
      %2874 = vmatpush1.bf16.msra.mxu0 %v2831
      %2875 = vmatprep.subr.bf16.mxu0 0
      %2876 = vmatpush1.bf16.msra.mxu0 %v2832
      %2877 = vmatprep.subr.bf16.mxu0 0
      %2878 = vmatpush1.bf16.msra.mxu0 %v2833
      %2879 = vmatprep.subr.bf16.mxu0 0
      %2880 = vmatpush1.bf16.msra.mxu0 %v2834
      %2881 = vmatprep.subr.bf16.mxu0 0
      %2882 = vmatpush1.bf16.msra.mxu0 %v2835
      %2883 = vmatprep.subr.bf16.mxu0 0
      %2884 = vmatpush1.bf16.msra.mxu0 %v2836
      %2885 = vmatprep.mubr.bf16.mxu0 %v2723
      %2886 = vmatmul.mubr.bf16.gmra.mrb[0].mxu0 %v2722
      %v2887 = vpop.f32.mrb[0].mxu0
      %v2888 = vadd.f32 0.0, %v2887
      %v2889 = vpop.f32.mrb[0].mxu0
      %v2890 = vpop.f32.mrb[0].mxu0
      %v2891 = vadd.f32 0.0, %v2890
      %v2892 = vpop.f32.mrb[0].mxu0
      %2893 = vdwg.mxu0
      %v2894 = vadd.f32 %v2716, %v2888
      %v2895 = vadd.f32 %v2719, %v2891
      %v2896 = vld [vmem:[%s14] sm:$0x1]
      %v2898 = vlaneseq
      %v2899 = vshrl.u32 %v2898, 7
      %v2900 = vsub.s32 0, %v2899
      %v2901 = vrot.slane %v2896, %v2900
      %v2903 = vadd.f32 %v2894, %v2901
      %v2904 = vadd.f32 %v2895, %v2901
      %v2905 = vadd.f32 %v2030, %v2903
      %v2906 = vadd.f32 %v2031, %v2904
      %v2907 = vrot.slane %v2905, 7
      %v2908 = vrot.slane %v2906, 7
      %v2909 = vsel %vm669, %v2907, %v2908
      %v2910 = vsel %vm669, %v2908, %v2907
      %v2911 = vsel %vm674, %v2910, 0.0
      %v2912 = vsel %vm675, %v2909, 0.0
      %v2913 = vrot.slane %v2905, 1
      %v2914 = vrot.slane %v2906, 1
      %v2915 = vsel %vm680, %v2913, %v2914
      %v2916 = vsel %vm680, %v2914, %v2913
      %v2917 = vsel %vm685, %v2915, 0.0
      %v2918 = vsel %vm686, %v2916, 0.0
      %v2919 = vpack.c.bf16 %v2912, %v2911
      %v2920 = vld [vmem:[%s15] sm:$0xf]
      %v2921 = vld [vmem:[%s15 + $0x4] sm:$0xf]
      %v2922 = vld [vmem:[%s15 + $0x8] sm:$0xf]
      %v2923 = vld [vmem:[%s15 + $0xc] sm:$0xf]
      %v2924 = vld [vmem:[%s15 + $0x10] sm:$0xf]
      %v2925 = vld [vmem:[%s15 + $0x14] sm:$0xf]
      %v2926 = vld [vmem:[%s15 + $0x18] sm:$0xf]
      %v2927 = vld [vmem:[%s15 + $0x1c] sm:$0xf]
      %v2928 = vpack.c.bf16 %v2906, %v2905
      %s2929 = scalar_lea.vmem %s15, 32
      %v2930 = vld [vmem:[%s2929] sm:$0xf]
      %v2931 = vld [vmem:[%s2929 + $0x4] sm:$0xf]
      %v2932 = vld [vmem:[%s2929 + $0x8] sm:$0xf]
      %v2933 = vld [vmem:[%s2929 + $0xc] sm:$0xf]
      %v2934 = vld [vmem:[%s2929 + $0x10] sm:$0xf]
      %v2935 = vld [vmem:[%s2929 + $0x14] sm:$0xf]
      %v2936 = vld [vmem:[%s2929 + $0x18] sm:$0xf]
      %v2937 = vld [vmem:[%s2929 + $0x1c] sm:$0xf]
      %v2946 = vunpack.c.l.b16 %v2930
      %v2947 = vunpack.c.l.b16 %v2931
      %v2948 = vunpack.c.l.b16 %v2932
      %v2949 = vunpack.c.l.b16 %v2933
      %v2950 = vunpack.c.l.b16 %v2934
      %v2951 = vunpack.c.l.b16 %v2935
      %v2952 = vunpack.c.l.b16 %v2936
      %v2953 = vunpack.c.l.b16 %v2937
      %v2954 = vpack.c.b16 %v2947, %v2946
      %v2955 = vpack.c.b16 %v2949, %v2948
      %v2956 = vpack.c.b16 %v2951, %v2950
      %v2957 = vpack.c.b16 %v2953, %v2952
      %v2963 = vsel %vm908, %v2928, 0
      %2965 = vmatprep.subr.bf16.mxu0 0
      %2966 = vmatpush1.bf16.msra.mxu0 %v2954
      %2967 = vmatprep.subr.bf16.mxu0 0
      %2968 = vmatpush1.bf16.msra.mxu0 %v2955
      %2969 = vmatprep.subr.bf16.mxu0 0
      %2970 = vmatpush1.bf16.msra.mxu0 %v2956
      %2971 = vmatprep.subr.bf16.mxu0 0
      %2972 = vmatpush1.bf16.msra.mxu0 %v2957
      %2973 = vmatprep.subr.bf16.mxu0 0
      %2974 = vmatpush1.bf16.msra.mxu0 0
      %2975 = vmatprep.subr.bf16.mxu0 0
      %2976 = vmatpush1.bf16.msra.mxu0 0
      %2977 = vmatprep.subr.bf16.mxu0 0
      %2978 = vmatpush1.bf16.msra.mxu0 0
      %2979 = vmatprep.subr.bf16.mxu0 0
      %2980 = vmatpush1.bf16.msra.mxu0 0
      %2981 = vmatprep.subr.bf16.mxu0 0
      %2982 = vmatpush1.bf16.msra.mxu0 0
      %2983 = vmatprep.subr.bf16.mxu0 0
      %2984 = vmatpush1.bf16.msra.mxu0 0
      %2985 = vmatprep.subr.bf16.mxu0 0
      %2986 = vmatpush1.bf16.msra.mxu0 0
      %2987 = vmatprep.subr.bf16.mxu0 0
      %2988 = vmatpush1.bf16.msra.mxu0 0
      %2989 = vmatprep.subr.bf16.mxu0 0
      %2990 = vmatpush1.bf16.msra.mxu0 0
      %2991 = vmatprep.subr.bf16.mxu0 0
      %2992 = vmatpush1.bf16.msra.mxu0 0
      %2993 = vmatprep.subr.bf16.mxu0 0
      %2994 = vmatpush1.bf16.msra.mxu0 0
      %2995 = vmatprep.subr.bf16.mxu0 0
      %2996 = vmatpush1.bf16.msra.mxu0 0
      %2997 = vmatprep.mubr.bf16.mxu0 0
      %2998 = vmatmul.mubr.bf16.gmra.mrb[0].mxu0 %v2963
      %v2999 = vpop.f32.mrb[0].mxu0
      %v3000 = vadd.f32 0.0, %v2999
      %v3001 = vpop.f32.mrb[0].mxu0
      %v3002 = vpop.f32.mrb[0].mxu0
      %v3003 = vadd.f32 0.0, %v3002
      %v3004 = vpop.f32.mrb[0].mxu0
      %3005 = vdwg.mxu0
      %v3014 = vunpack.c.l.b16 %v2920
      %v3015 = vunpack.c.l.b16 %v2921
      %v3016 = vunpack.c.l.b16 %v2922
      %v3017 = vunpack.c.l.b16 %v2923
      %v3018 = vunpack.c.l.b16 %v2924
      %v3019 = vunpack.c.l.b16 %v2925
      %v3020 = vunpack.c.l.b16 %v2926
      %v3021 = vunpack.c.l.b16 %v2927
      %v3022 = vpack.c.b16 %v3015, %v3014
      %v3023 = vpack.c.b16 %v3017, %v3016
      %v3024 = vpack.c.b16 %v3019, %v3018
      %v3025 = vpack.c.b16 %v3021, %v3020
      %v3031 = vsel %vm908, %v2919, 0
      %3033 = vmatprep.subr.bf16.mxu0 0
      %3034 = vmatpush1.bf16.msra.mxu0 %v3022
      %3035 = vmatprep.subr.bf16.mxu0 0
      %3036 = vmatpush1.bf16.msra.mxu0 %v3023
      %3037 = vmatprep.subr.bf16.mxu0 0
      %3038 = vmatpush1.bf16.msra.mxu0 %v3024
      %3039 = vmatprep.subr.bf16.mxu0 0
      %3040 = vmatpush1.bf16.msra.mxu0 %v3025
      %3041 = vmatprep.subr.bf16.mxu0 0
      %3042 = vmatpush1.bf16.msra.mxu0 0
      %3043 = vmatprep.subr.bf16.mxu0 0
      %3044 = vmatpush1.bf16.msra.mxu0 0
      %3045 = vmatprep.subr.bf16.mxu0 0
      %3046 = vmatpush1.bf16.msra.mxu0 0
      %3047 = vmatprep.subr.bf16.mxu0 0
      %3048 = vmatpush1.bf16.msra.mxu0 0
      %3049 = vmatprep.subr.bf16.mxu0 0
      %3050 = vmatpush1.bf16.msra.mxu0 0
      %3051 = vmatprep.subr.bf16.mxu0 0
      %3052 = vmatpush1.bf16.msra.mxu0 0
      %3053 = vmatprep.subr.bf16.mxu0 0
      %3054 = vmatpush1.bf16.msra.mxu0 0
      %3055 = vmatprep.subr.bf16.mxu0 0
      %3056 = vmatpush1.bf16.msra.mxu0 0
      %3057 = vmatprep.subr.bf16.mxu0 0
      %3058 = vmatpush1.bf16.msra.mxu0 0
      %3059 = vmatprep.subr.bf16.mxu0 0
      %3060 = vmatpush1.bf16.msra.mxu0 0
      %3061 = vmatprep.subr.bf16.mxu0 0
      %3062 = vmatpush1.bf16.msra.mxu0 0
      %3063 = vmatprep.subr.bf16.mxu0 0
      %3064 = vmatpush1.bf16.msra.mxu0 0
      %3065 = vmatprep.mubr.bf16.mxu0 0
      %3066 = vmatmul.mubr.bf16.gmra.mrb[0].mxu0 %v3031
      %v3067 = vpop.f32.mrb[0].mxu0
      %v3068 = vadd.f32 %v3000, %v3067
      %v3069 = vpop.f32.mrb[0].mxu0
      %v3070 = vpop.f32.mrb[0].mxu0
      %v3071 = vadd.f32 %v3003, %v3070
      %v3072 = vpop.f32.mrb[0].mxu0
      %3073 = vdwg.mxu0
      %v3074 = vpack.c.bf16 %v2918, %v2917
      %s3075 = scalar_lea.vmem %s15, 64
      %v3076 = vld [vmem:[%s3075] sm:$0xf]
      %v3077 = vld [vmem:[%s3075 + $0x4] sm:$0xf]
      %v3078 = vld [vmem:[%s3075 + $0x8] sm:$0xf]
      %v3079 = vld [vmem:[%s3075 + $0xc] sm:$0xf]
      %v3080 = vld [vmem:[%s3075 + $0x10] sm:$0xf]
      %v3081 = vld [vmem:[%s3075 + $0x14] sm:$0xf]
      %v3082 = vld [vmem:[%s3075 + $0x18] sm:$0xf]
      %v3083 = vld [vmem:[%s3075 + $0x1c] sm:$0xf]
      %v3092 = vunpack.c.l.b16 %v3076
      %v3093 = vunpack.c.l.b16 %v3077
      %v3094 = vunpack.c.l.b16 %v3078
      %v3095 = vunpack.c.l.b16 %v3079
      %v3096 = vunpack.c.l.b16 %v3080
      %v3097 = vunpack.c.l.b16 %v3081
      %v3098 = vunpack.c.l.b16 %v3082
      %v3099 = vunpack.c.l.b16 %v3083
      %v3100 = vpack.c.b16 %v3093, %v3092
      %v3101 = vpack.c.b16 %v3095, %v3094
      %v3102 = vpack.c.b16 %v3097, %v3096
      %v3103 = vpack.c.b16 %v3099, %v3098
      %v3109 = vsel %vm908, %v3074, 0
      %3111 = vmatprep.subr.bf16.mxu0 0
      %3112 = vmatpush1.bf16.msra.mxu0 %v3100
      %3113 = vmatprep.subr.bf16.mxu0 0
      %3114 = vmatpush1.bf16.msra.mxu0 %v3101
      %3115 = vmatprep.subr.bf16.mxu0 0
      %3116 = vmatpush1.bf16.msra.mxu0 %v3102
      %3117 = vmatprep.subr.bf16.mxu0 0
      %3118 = vmatpush1.bf16.msra.mxu0 %v3103
      %3119 = vmatprep.subr.bf16.mxu0 0
      %3120 = vmatpush1.bf16.msra.mxu0 0
      %3121 = vmatprep.subr.bf16.mxu0 0
      %3122 = vmatpush1.bf16.msra.mxu0 0
      %3123 = vmatprep.subr.bf16.mxu0 0
      %3124 = vmatpush1.bf16.msra.mxu0 0
      %3125 = vmatprep.subr.bf16.mxu0 0
      %3126 = vmatpush1.bf16.msra.mxu0 0
      %3127 = vmatprep.subr.bf16.mxu0 0
      %3128 = vmatpush1.bf16.msra.mxu0 0
      %3129 = vmatprep.subr.bf16.mxu0 0
      %3130 = vmatpush1.bf16.msra.mxu0 0
      %3131 = vmatprep.subr.bf16.mxu0 0
      %3132 = vmatpush1.bf16.msra.mxu0 0
      %3133 = vmatprep.subr.bf16.mxu0 0
      %3134 = vmatpush1.bf16.msra.mxu0 0
      %3135 = vmatprep.subr.bf16.mxu0 0
      %3136 = vmatpush1.bf16.msra.mxu0 0
      %3137 = vmatprep.subr.bf16.mxu0 0
      %3138 = vmatpush1.bf16.msra.mxu0 0
      %3139 = vmatprep.subr.bf16.mxu0 0
      %3140 = vmatpush1.bf16.msra.mxu0 0
      %3141 = vmatprep.subr.bf16.mxu0 0
      %3142 = vmatpush1.bf16.msra.mxu0 0
      %3143 = vmatprep.mubr.bf16.mxu0 0
      %3144 = vmatmul.mubr.bf16.gmra.mrb[0].mxu0 %v3109
      %v3145 = vpop.f32.mrb[0].mxu0
      %v3146 = vadd.f32 0.0, %v3145
      %v3147 = vpop.f32.mrb[0].mxu0
      %v3148 = vpop.f32.mrb[0].mxu0
      %v3149 = vadd.f32 0.0, %v3148
      %v3150 = vpop.f32.mrb[0].mxu0
      %3151 = vdwg.mxu0
      %v3152 = vadd.f32 %v3068, %v3146
      %v3153 = vadd.f32 %v3071, %v3149
      %v3154 = vld [vmem:[%s16] sm:$0x1]
      %v3156 = vlaneseq
      %v3157 = vshrl.u32 %v3156, 7
      %v3158 = vsub.s32 0, %v3157
      %v3159 = vrot.slane %v3154, %v3158
      %v3161 = vadd.f32 %v3152, %v3159
      %v3162 = vadd.f32 %v3153, %v3159
      %v3163 = vmax.f32 %v3161, 0.0
      %v3164 = vmax.f32 %v3162, 0.0
      %v3165 = vrot.slane %v3163, 7
      %v3166 = vrot.slane %v3164, 7
      %v3167 = vsel %vm669, %v3165, %v3166
      %v3168 = vsel %vm669, %v3166, %v3165
      %v3169 = vsel %vm674, %v3168, 0.0
      %v3170 = vsel %vm675, %v3167, 0.0
      %v3171 = vrot.slane %v3163, 1
      %v3172 = vrot.slane %v3164, 1
      %v3173 = vsel %vm680, %v3171, %v3172
      %v3174 = vsel %vm680, %v3172, %v3171
      %v3175 = vsel %vm685, %v3173, 0.0
      %v3176 = vsel %vm686, %v3174, 0.0
      %v3177 = vpack.c.bf16 %v3170, %v3169
      %v3178 = vld [vmem:[%s19] sm:$0xf]
      %v3179 = vld [vmem:[%s19 + $0x4] sm:$0xf]
      %v3180 = vld [vmem:[%s19 + $0x8] sm:$0xf]
      %v3181 = vld [vmem:[%s19 + $0xc] sm:$0xf]
      %v3182 = vld [vmem:[%s19 + $0x10] sm:$0xf]
      %v3183 = vld [vmem:[%s19 + $0x14] sm:$0xf]
      %v3184 = vld [vmem:[%s19 + $0x18] sm:$0xf]
      %v3185 = vld [vmem:[%s19 + $0x1c] sm:$0xf]
      %v3186 = vld [vmem:[%s19 + $0x20] sm:$0xf]
      %v3187 = vld [vmem:[%s19 + $0x24] sm:$0xf]
      %v3188 = vld [vmem:[%s19 + $0x28] sm:$0xf]
      %v3189 = vld [vmem:[%s19 + $0x2c] sm:$0xf]
      %v3190 = vld [vmem:[%s19 + $0x30] sm:$0xf]
      %v3191 = vld [vmem:[%s19 + $0x34] sm:$0xf]
      %v3192 = vld [vmem:[%s19 + $0x38] sm:$0xf]
      %v3193 = vld [vmem:[%s19 + $0x3c] sm:$0xf]
      %v3194 = vpack.c.bf16 %v3164, %v3163
      %s3195 = scalar_lea.vmem %s19, 64
      %v3196 = vld [vmem:[%s3195] sm:$0xf]
      %v3197 = vld [vmem:[%s3195 + $0x4] sm:$0xf]
      %v3198 = vld [vmem:[%s3195 + $0x8] sm:$0xf]
      %v3199 = vld [vmem:[%s3195 + $0xc] sm:$0xf]
      %v3200 = vld [vmem:[%s3195 + $0x10] sm:$0xf]
      %v3201 = vld [vmem:[%s3195 + $0x14] sm:$0xf]
      %v3202 = vld [vmem:[%s3195 + $0x18] sm:$0xf]
      %v3203 = vld [vmem:[%s3195 + $0x1c] sm:$0xf]
      %v3204 = vld [vmem:[%s3195 + $0x20] sm:$0xf]
      %v3205 = vld [vmem:[%s3195 + $0x24] sm:$0xf]
      %v3206 = vld [vmem:[%s3195 + $0x28] sm:$0xf]
      %v3207 = vld [vmem:[%s3195 + $0x2c] sm:$0xf]
      %v3208 = vld [vmem:[%s3195 + $0x30] sm:$0xf]
      %v3209 = vld [vmem:[%s3195 + $0x34] sm:$0xf]
      %v3210 = vld [vmem:[%s3195 + $0x38] sm:$0xf]
      %v3211 = vld [vmem:[%s3195 + $0x3c] sm:$0xf]
      %v3228 = vunpack.c.l.b16 %v3196
      %v3229 = vunpack.c.l.b16 %v3197
      %v3230 = vunpack.c.l.b16 %v3198
      %v3231 = vunpack.c.l.b16 %v3199
      %v3232 = vunpack.c.l.b16 %v3200
      %v3233 = vunpack.c.l.b16 %v3201
      %v3234 = vunpack.c.l.b16 %v3202
      %v3235 = vunpack.c.l.b16 %v3203
      %v3236 = vunpack.c.l.b16 %v3204
      %v3237 = vunpack.c.l.b16 %v3205
      %v3238 = vunpack.c.l.b16 %v3206
      %v3239 = vunpack.c.l.b16 %v3207
      %v3240 = vunpack.c.l.b16 %v3208
      %v3241 = vunpack.c.l.b16 %v3209
      %v3242 = vunpack.c.l.b16 %v3210
      %v3243 = vunpack.c.l.b16 %v3211
      %v3244 = vpack.c.b16 %v3229, %v3228
      %v3245 = vpack.c.b16 %v3231, %v3230
      %v3246 = vpack.c.b16 %v3233, %v3232
      %v3247 = vpack.c.b16 %v3235, %v3234
      %v3248 = vpack.c.b16 %v3237, %v3236
      %v3249 = vpack.c.b16 %v3239, %v3238
      %v3250 = vpack.c.b16 %v3241, %v3240
      %v3251 = vpack.c.b16 %v3243, %v3242
      %3260 = vmatprep.subr.bf16.mxu0 0
      %3261 = vmatpush1.bf16.msra.mxu0 %v3244
      %3262 = vmatprep.subr.bf16.mxu0 0
      %3263 = vmatpush1.bf16.msra.mxu0 %v3245
      %3264 = vmatprep.subr.bf16.mxu0 0
      %3265 = vmatpush1.bf16.msra.mxu0 %v3246
      %3266 = vmatprep.subr.bf16.mxu0 0
      %3267 = vmatpush1.bf16.msra.mxu0 %v3247
      %3268 = vmatprep.subr.bf16.mxu0 0
      %3269 = vmatpush1.bf16.msra.mxu0 %v3248
      %3270 = vmatprep.subr.bf16.mxu0 0
      %3271 = vmatpush1.bf16.msra.mxu0 %v3249
      %3272 = vmatprep.subr.bf16.mxu0 0
      %3273 = vmatpush1.bf16.msra.mxu0 %v3250
      %3274 = vmatprep.subr.bf16.mxu0 0
      %3275 = vmatpush1.bf16.msra.mxu0 %v3251
      %3276 = vmatprep.subr.bf16.mxu0 0
      %3277 = vmatpush1.bf16.msra.mxu0 0
      %3278 = vmatprep.subr.bf16.mxu0 0
      %3279 = vmatpush1.bf16.msra.mxu0 0
      %3280 = vmatprep.subr.bf16.mxu0 0
      %3281 = vmatpush1.bf16.msra.mxu0 0
      %3282 = vmatprep.subr.bf16.mxu0 0
      %3283 = vmatpush1.bf16.msra.mxu0 0
      %3284 = vmatprep.subr.bf16.mxu0 0
      %3285 = vmatpush1.bf16.msra.mxu0 0
      %3286 = vmatprep.subr.bf16.mxu0 0
      %3287 = vmatpush1.bf16.msra.mxu0 0
      %3288 = vmatprep.subr.bf16.mxu0 0
      %3289 = vmatpush1.bf16.msra.mxu0 0
      %3290 = vmatprep.subr.bf16.mxu0 0
      %3291 = vmatpush1.bf16.msra.mxu0 0
      %3292 = vmatprep.mubr.bf16.mxu0 0
      %3293 = vmatmul.mubr.bf16.gmra.mrb[0].mxu0 %v3194
      %v3294 = vpop.f32.mrb[0].mxu0
      %v3295 = vadd.f32 0.0, %v3294
      %v3296 = vpop.f32.mrb[0].mxu0
      %v3297 = vpop.f32.mrb[0].mxu0
      %v3298 = vadd.f32 0.0, %v3297
      %v3299 = vpop.f32.mrb[0].mxu0
      %3300 = vdwg.mxu0
      %v3317 = vunpack.c.l.b16 %v3178
      %v3318 = vunpack.c.l.b16 %v3179
      %v3319 = vunpack.c.l.b16 %v3180
      %v3320 = vunpack.c.l.b16 %v3181
      %v3321 = vunpack.c.l.b16 %v3182
      %v3322 = vunpack.c.l.b16 %v3183
      %v3323 = vunpack.c.l.b16 %v3184
      %v3324 = vunpack.c.l.b16 %v3185
      %v3325 = vunpack.c.l.b16 %v3186
      %v3326 = vunpack.c.l.b16 %v3187
      %v3327 = vunpack.c.l.b16 %v3188
      %v3328 = vunpack.c.l.b16 %v3189
      %v3329 = vunpack.c.l.b16 %v3190
      %v3330 = vunpack.c.l.b16 %v3191
      %v3331 = vunpack.c.l.b16 %v3192
      %v3332 = vunpack.c.l.b16 %v3193
      %v3333 = vpack.c.b16 %v3318, %v3317
      %v3334 = vpack.c.b16 %v3320, %v3319
      %v3335 = vpack.c.b16 %v3322, %v3321
      %v3336 = vpack.c.b16 %v3324, %v3323
      %v3337 = vpack.c.b16 %v3326, %v3325
      %v3338 = vpack.c.b16 %v3328, %v3327
      %v3339 = vpack.c.b16 %v3330, %v3329
      %v3340 = vpack.c.b16 %v3332, %v3331
      %3349 = vmatprep.subr.bf16.mxu0 0
      %3350 = vmatpush1.bf16.msra.mxu0 %v3333
      %3351 = vmatprep.subr.bf16.mxu0 0
      %3352 = vmatpush1.bf16.msra.mxu0 %v3334
      %3353 = vmatprep.subr.bf16.mxu0 0
      %3354 = vmatpush1.bf16.msra.mxu0 %v3335
      %3355 = vmatprep.subr.bf16.mxu0 0
      %3356 = vmatpush1.bf16.msra.mxu0 %v3336
      %3357 = vmatprep.subr.bf16.mxu0 0
      %3358 = vmatpush1.bf16.msra.mxu0 %v3337
      %3359 = vmatprep.subr.bf16.mxu0 0
      %3360 = vmatpush1.bf16.msra.mxu0 %v3338
      %3361 = vmatprep.subr.bf16.mxu0 0
      %3362 = vmatpush1.bf16.msra.mxu0 %v3339
      %3363 = vmatprep.subr.bf16.mxu0 0
      %3364 = vmatpush1.bf16.msra.mxu0 %v3340
      %3365 = vmatprep.subr.bf16.mxu0 0
      %3366 = vmatpush1.bf16.msra.mxu0 0
      %3367 = vmatprep.subr.bf16.mxu0 0
      %3368 = vmatpush1.bf16.msra.mxu0 0
      %3369 = vmatprep.subr.bf16.mxu0 0
      %3370 = vmatpush1.bf16.msra.mxu0 0
      %3371 = vmatprep.subr.bf16.mxu0 0
      %3372 = vmatpush1.bf16.msra.mxu0 0
      %3373 = vmatprep.subr.bf16.mxu0 0
      %3374 = vmatpush1.bf16.msra.mxu0 0
      %3375 = vmatprep.subr.bf16.mxu0 0
      %3376 = vmatpush1.bf16.msra.mxu0 0
      %3377 = vmatprep.subr.bf16.mxu0 0
      %3378 = vmatpush1.bf16.msra.mxu0 0
      %3379 = vmatprep.subr.bf16.mxu0 0
      %3380 = vmatpush1.bf16.msra.mxu0 0
      %3381 = vmatprep.mubr.bf16.mxu0 0
      %3382 = vmatmul.mubr.bf16.gmra.mrb[0].mxu0 %v3177
      %v3383 = vpop.f32.mrb[0].mxu0
      %v3384 = vadd.f32 %v3295, %v3383
      %v3385 = vpop.f32.mrb[0].mxu0
      %v3386 = vpop.f32.mrb[0].mxu0
      %v3387 = vadd.f32 %v3298, %v3386
      %v3388 = vpop.f32.mrb[0].mxu0
      %3389 = vdwg.mxu0
      %v3390 = vpack.c.bf16 %v3176, %v3175
      %s3391 = scalar_lea.vmem %s19, 128
      %v3392 = vld [vmem:[%s3391] sm:$0xf]
      %v3393 = vld [vmem:[%s3391 + $0x4] sm:$0xf]
      %v3394 = vld [vmem:[%s3391 + $0x8] sm:$0xf]
      %v3395 = vld [vmem:[%s3391 + $0xc] sm:$0xf]
      %v3396 = vld [vmem:[%s3391 + $0x10] sm:$0xf]
      %v3397 = vld [vmem:[%s3391 + $0x14] sm:$0xf]
      %v3398 = vld [vmem:[%s3391 + $0x18] sm:$0xf]
      %v3399 = vld [vmem:[%s3391 + $0x1c] sm:$0xf]
      %v3400 = vld [vmem:[%s3391 + $0x20] sm:$0xf]
      %v3401 = vld [vmem:[%s3391 + $0x24] sm:$0xf]
      %v3402 = vld [vmem:[%s3391 + $0x28] sm:$0xf]
      %v3403 = vld [vmem:[%s3391 + $0x2c] sm:$0xf]
      %v3404 = vld [vmem:[%s3391 + $0x30] sm:$0xf]
      %v3405 = vld [vmem:[%s3391 + $0x34] sm:$0xf]
      %v3406 = vld [vmem:[%s3391 + $0x38] sm:$0xf]
      %v3407 = vld [vmem:[%s3391 + $0x3c] sm:$0xf]
      %v3424 = vunpack.c.l.b16 %v3392
      %v3425 = vunpack.c.l.b16 %v3393
      %v3426 = vunpack.c.l.b16 %v3394
      %v3427 = vunpack.c.l.b16 %v3395
      %v3428 = vunpack.c.l.b16 %v3396
      %v3429 = vunpack.c.l.b16 %v3397
      %v3430 = vunpack.c.l.b16 %v3398
      %v3431 = vunpack.c.l.b16 %v3399
      %v3432 = vunpack.c.l.b16 %v3400
      %v3433 = vunpack.c.l.b16 %v3401
      %v3434 = vunpack.c.l.b16 %v3402
      %v3435 = vunpack.c.l.b16 %v3403
      %v3436 = vunpack.c.l.b16 %v3404
      %v3437 = vunpack.c.l.b16 %v3405
      %v3438 = vunpack.c.l.b16 %v3406
      %v3439 = vunpack.c.l.b16 %v3407
      %v3440 = vpack.c.b16 %v3425, %v3424
      %v3441 = vpack.c.b16 %v3427, %v3426
      %v3442 = vpack.c.b16 %v3429, %v3428
      %v3443 = vpack.c.b16 %v3431, %v3430
      %v3444 = vpack.c.b16 %v3433, %v3432
      %v3445 = vpack.c.b16 %v3435, %v3434
      %v3446 = vpack.c.b16 %v3437, %v3436
      %v3447 = vpack.c.b16 %v3439, %v3438
      %3456 = vmatprep.subr.bf16.mxu0 0
      %3457 = vmatpush1.bf16.msra.mxu0 %v3440
      %3458 = vmatprep.subr.bf16.mxu0 0
      %3459 = vmatpush1.bf16.msra.mxu0 %v3441
      %3460 = vmatprep.subr.bf16.mxu0 0
      %3461 = vmatpush1.bf16.msra.mxu0 %v3442
      %3462 = vmatprep.subr.bf16.mxu0 0
      %3463 = vmatpush1.bf16.msra.mxu0 %v3443
      %3464 = vmatprep.subr.bf16.mxu0 0
      %3465 = vmatpush1.bf16.msra.mxu0 %v3444
      %3466 = vmatprep.subr.bf16.mxu0 0
      %3467 = vmatpush1.bf16.msra.mxu0 %v3445
      %3468 = vmatprep.subr.bf16.mxu0 0
      %3469 = vmatpush1.bf16.msra.mxu0 %v3446
      %3470 = vmatprep.subr.bf16.mxu0 0
      %3471 = vmatpush1.bf16.msra.mxu0 %v3447
      %3472 = vmatprep.subr.bf16.mxu0 0
      %3473 = vmatpush1.bf16.msra.mxu0 0
      %3474 = vmatprep.subr.bf16.mxu0 0
      %3475 = vmatpush1.bf16.msra.mxu0 0
      %3476 = vmatprep.subr.bf16.mxu0 0
      %3477 = vmatpush1.bf16.msra.mxu0 0
      %3478 = vmatprep.subr.bf16.mxu0 0
      %3479 = vmatpush1.bf16.msra.mxu0 0
      %3480 = vmatprep.subr.bf16.mxu0 0
      %3481 = vmatpush1.bf16.msra.mxu0 0
      %3482 = vmatprep.subr.bf16.mxu0 0
      %3483 = vmatpush1.bf16.msra.mxu0 0
      %3484 = vmatprep.subr.bf16.mxu0 0
      %3485 = vmatpush1.bf16.msra.mxu0 0
      %3486 = vmatprep.subr.bf16.mxu0 0
      %3487 = vmatpush1.bf16.msra.mxu0 0
      %3488 = vmatprep.mubr.bf16.mxu0 0
      %3489 = vmatmul.mubr.bf16.gmra.mrb[0].mxu0 %v3390
      %v3490 = vpop.f32.mrb[0].mxu0
      %v3491 = vadd.f32 0.0, %v3490
      %v3492 = vpop.f32.mrb[0].mxu0
      %v3493 = vpop.f32.mrb[0].mxu0
      %v3494 = vadd.f32 0.0, %v3493
      %v3495 = vpop.f32.mrb[0].mxu0
      %3496 = vdwg.mxu0
      %v3497 = vadd.f32 %v3384, %v3491
      %v3498 = vadd.f32 %v3387, %v3494
      %v3499 = vld [vmem:[%s20] sm:$0x1]
      %v3501 = vlaneseq
      %v3502 = vshrl.u32 %v3501, 7
      %v3503 = vsub.s32 0, %v3502
      %v3504 = vrot.slane %v3499, %v3503
      %v3506 = vadd.f32 %v3497, %v3504
      %v3507 = vadd.f32 %v3498, %v3504
      %v3508 = vmax.f32 %v3506, 0.0
      %v3509 = vmax.f32 %v3507, 0.0
      %v3510 = vld [vmem:[%s17] sm:$0xf]
      %v3511 = vld [vmem:[%s17 + $0x4] sm:$0xf]
      %v3512 = vld [vmem:[%s17 + $0x8] sm:$0xf]
      %v3513 = vld [vmem:[%s17 + $0xc] sm:$0xf]
      %v3514 = vld [vmem:[%s17 + $0x10] sm:$0xf]
      %v3515 = vld [vmem:[%s17 + $0x14] sm:$0xf]
      %v3516 = vld [vmem:[%s17 + $0x18] sm:$0xf]
      %v3517 = vld [vmem:[%s17 + $0x1c] sm:$0xf]
      %v3518 = vld [vmem:[%s18] sm:$0x1]
      %v3520 = vlaneseq
      %v3521 = vshrl.u32 %v3520, 7
      %v3522 = vsub.s32 0, %v3521
      %v3523 = vrot.slane %v3518, %v3522
      %v3533 = vunpack.c.l.b16 %v3510
      %v3534 = vunpack.c.l.b16 %v3511
      %v3535 = vunpack.c.l.b16 %v3512
      %v3536 = vunpack.c.l.b16 %v3513
      %v3537 = vunpack.c.l.b16 %v3514
      %v3538 = vunpack.c.l.b16 %v3515
      %v3539 = vunpack.c.l.b16 %v3516
      %v3540 = vunpack.c.l.b16 %v3517
      %v3541 = vpack.c.b16 %v3534, %v3533
      %v3542 = vpack.c.b16 %v3536, %v3535
      %v3543 = vpack.c.b16 %v3538, %v3537
      %v3544 = vpack.c.b16 %v3540, %v3539
      %3549 = vmatprep.subr.bf16.mxu0 0
      %3550 = vmatpush1.bf16.msra.mxu0 %v3541
      %3551 = vmatprep.subr.bf16.mxu0 0
      %3552 = vmatpush1.bf16.msra.mxu0 %v3542
      %3553 = vmatprep.subr.bf16.mxu0 0
      %3554 = vmatpush1.bf16.msra.mxu0 %v3543
      %3555 = vmatprep.subr.bf16.mxu0 0
      %3556 = vmatpush1.bf16.msra.mxu0 %v3544
      %3557 = vmatprep.subr.bf16.mxu0 0
      %3558 = vmatpush1.bf16.msra.mxu0 0
      %3559 = vmatprep.subr.bf16.mxu0 0
      %3560 = vmatpush1.bf16.msra.mxu0 0
      %3561 = vmatprep.subr.bf16.mxu0 0
      %3562 = vmatpush1.bf16.msra.mxu0 0
      %3563 = vmatprep.subr.bf16.mxu0 0
      %3564 = vmatpush1.bf16.msra.mxu0 0
      %3565 = vmatprep.subr.bf16.mxu0 0
      %3566 = vmatpush1.bf16.msra.mxu0 0
      %3567 = vmatprep.subr.bf16.mxu0 0
      %3568 = vmatpush1.bf16.msra.mxu0 0
      %3569 = vmatprep.subr.bf16.mxu0 0
      %3570 = vmatpush1.bf16.msra.mxu0 0
      %3571 = vmatprep.subr.bf16.mxu0 0
      %3572 = vmatpush1.bf16.msra.mxu0 0
      %3573 = vmatprep.subr.bf16.mxu0 0
      %3574 = vmatpush1.bf16.msra.mxu0 0
      %3575 = vmatprep.subr.bf16.mxu0 0
      %3576 = vmatpush1.bf16.msra.mxu0 0
      %3577 = vmatprep.subr.bf16.mxu0 0
      %3578 = vmatpush1.bf16.msra.mxu0 0
      %3579 = vmatprep.subr.bf16.mxu0 0
      %3580 = vmatpush1.bf16.msra.mxu0 0
      %3581 = vmatprep.mubr.bf16.mxu0 0
      %3582 = vmatmul.mubr.bf16.gmra.mrb[0].mxu0 %v2963
      %v3583 = vpop.f32.mrb[0].mxu0
      %v3584 = vadd.f32 %v3523, %v3583
      %v3585 = vpop.f32.mrb[0].mxu0
      %v3586 = vpop.f32.mrb[0].mxu0
      %v3587 = vadd.f32 %v3523, %v3586
      %v3588 = vpop.f32.mrb[0].mxu0
      %3589 = vdwg.mxu0
      %v3590 = vadd.f32 %v3508, %v3584
      %v3591 = vadd.f32 %v3509, %v3587
      %3592 = vst [vmem:[%s656] sm:$0xff] %v3590
      %3593 = vst [vmem:[%s656 + $0x8] sm:$0xff] %v3591
      %p3594 = scmp.lt.s32.totalorder %s32, 1
      %s3595 = scalar_select %p3594, %s32, 1
      %s3596 = smul.addr %s3595, 2
      %s3597 = smul.addr %s3596, 8
      %s3598 = scalar_lea.vmem %s21, %s3597
      // Predicated region
      $region105: #{handler_forward.1} parent=103 // pred_check
        %p3599 = pneg %p496
      $region106: #{handler_forward.1} parent=103 // pred_check_branch
        %3601 = sbr.rel (%p3599) target = $region108
      $region107: #{handler_forward.1} parent=103 // pred_region
        _
      $region108: #{handler_forward.1} parent=103 // pred_fallthru
        _
    $region104: #{handler_forward.1} parent=5 // pred_fallthru
      _
    %p3602 = scmp.le.s32.totalorder 2, %s27
    // Predicated region
    $region109: #{handler_forward.1} parent=5 // pred_check
      %p3603 = pneg %p3602
    $region110: #{handler_forward.1} parent=5 // pred_check_branch
      %3605 = sbr.rel (%p3603) target = $region112
    $region111: #{handler_forward.1} parent=5 // pred_region
      %s3606 = ssub.s32 %s27, 2
      // Predicated region
      $region113: #{handler_forward.1} parent=111 // pred_check
        %p3607 = pneg %p502
      $region114: #{handler_forward.1} parent=111 // pred_check_branch
        %3609 = sbr.rel (%p3607) target = $region116
      $region115: #{handler_forward.1} parent=111 // pred_region
        %p3610 = scmp.lt.s32.totalorder %s33, 1
        %s3611 = scalar_select %p3610, %s33, 1
        %s3612 = smul.addr %s3611, 2
        %s3613 = smul.addr %s3612, 8
        %s3614 = scalar_lea.vmem %s21, %s3613
      $region116: #{handler_forward.1} parent=111 // pred_fallthru
        _
    $region112: #{handler_forward.1} parent=5 // pred_fallthru
      _
  $region6: #{handler_forward.1} parent=0 // loop_footer
    %s31 = sadd.s32 1, %s27
  $region7: #{handler_forward.1} parent=0 // loop_footer_branch
    %26 = sbr.rel target = $region3
  $region8: #{handler_forward.1} parent=0 // loop_exit
    _

</llo_original>
